<compile_context>
chip_gen: v5e
topology: v5e:2x2
jax: 0.10.0
libtpu: 0.0.40
codegen_flags: <defaults>
</compile_context>

<pallas_src>
from functools import partial

import jax
import jax.numpy as jnp
from jax import lax
from jax.experimental import pallas as pl
from jax.experimental.pallas import tpu as pltpu

N_NODES = 32          # nodes per graph (small synthetic graphs)
F_IN = 512            # GATConv in_channels
F_OUT = 512           # GATConv out_channels (heads=1, concat=True)
D3_PAD = 128          # dense3 output padded 3 -> 128 cols (zeros; cdist unchanged)

NEG_SLOPE = 0.2       # GATConv LeakyReLU negative slope (PyG default)
NEG_INF = -1e30


# ----------------------------------------------------------------------------
# Fused kernel: GATConv + relu -> densea..dense3 (+relu) -> cdist(y, y, p=2)
# One grid step == one chunk of stacked graphs (R rows).
# ----------------------------------------------------------------------------
def _gatnet_kernel(x_ref, bias_ref, w_ref, asrc_ref, adst_ref, gb_ref,
                   wa_ref, ba_ref, w1_ref, b1_ref, w2_ref, b2_ref,
                   w3_ref, b3_ref, out_ref):
    x = x_ref[...]                       # (R, 512) bf16
    bias = bias_ref[...]                 # (R, R)   f32 additive mask (0 / -1e30)

    # ---- GATConv(512, 512, heads=1) ----
    xh = jnp.dot(x, w_ref[...], preferred_element_type=jnp.float32)     # (R, 512) f32
    xh_bf = xh.astype(jnp.bfloat16)

    # Attention logits: e[i, j] = a_dst[i] + a_src[j]  (edge j -> i).
    # a_dst as a column via VPU mul + XLU lane reduce; a_src directly as a row
    # via a contracting-last-dims dot (no transpose feeding the VPU).
    a_d = jnp.sum(xh * adst_ref[...], axis=-1, keepdims=True)           # (R, 1)
    a_s = lax.dot_general(asrc_ref[...], xh_bf,
                          (((1,), (1,)), ((), ())),
                          preferred_element_type=jnp.float32)           # (1, R)
    e = a_d + a_s                                                        # (R, R)
    e = jnp.where(e > 0, e, NEG_SLOPE * e) + bias                        # LeakyReLU + mask
    e_max = jnp.max(e, axis=-1, keepdims=True)
    p = jnp.exp(e - e_max)               # masked entries underflow to exactly 0
    attn = p * pl.reciprocal(jnp.sum(p, axis=-1, keepdims=True), approx=True)

    h = jnp.dot(attn.astype(jnp.bfloat16), xh_bf,
                preferred_element_type=jnp.float32) + gb_ref[...]       # (R, 512)
    h = jnp.maximum(h, 0.0)              # relu (dropout = identity, eval)

    # ---- MLP: densea -> relu -> dense1 -> relu -> dense2 -> relu -> dense3 ----
    h = jnp.maximum(
        jnp.dot(h.astype(jnp.bfloat16), wa_ref[...],
                preferred_element_type=jnp.float32) + ba_ref[...], 0.0)  # (R, 256)
    h = jnp.maximum(
        jnp.dot(h.astype(jnp.bfloat16), w1_ref[...],
                preferred_element_type=jnp.float32) + b1_ref[...], 0.0)  # (R, 128)
    h = jnp.maximum(
        jnp.dot(h.astype(jnp.bfloat16), w2_ref[...],
                preferred_element_type=jnp.float32) + b2_ref[...], 0.0)  # (R, 64)
    y = jnp.dot(h.astype(jnp.bfloat16), w3_ref[...],
                preferred_element_type=jnp.float32) + b3_ref[...]        # (R, 128); cols 3.. are 0

    # ---- cdist(y, y, p=2): ||yi||^2 + ||yj||^2 - 2 yi.yj, clamp, sqrt ----
    sq = jnp.sum(y * y, axis=-1, keepdims=True)                          # (R, 1)
    gram = lax.dot_general(y, y, (((1,), (1,)), ((), ())),
                           preferred_element_type=jnp.float32)           # (R, R)
    d2 = jnp.maximum(sq + sq.T - 2.0 * gram, 0.0)
    out_ref[...] = jnp.sqrt(d2)


# ----------------------------------------------------------------------------
# pallas_call wrapper: grid over chunks, weights resident across steps
# ----------------------------------------------------------------------------
def gatnet_pallas(x_rows, bias_rows, params):
    m, f_in = x_rows.shape
    r = bias_rows.shape[-1]              # rows per chunk
    assert bias_rows.shape[0] == m and m % r == 0
    n_chunks = m // r

    weights = (params["gat_w"], params["att_src"], params["att_dst"], params["gat_b"],
               params["wa"], params["ba"], params["w1"], params["b1"],
               params["w2"], params["b2"], params["w3"], params["b3"])

    row_spec = lambda cols: pl.BlockSpec((r, cols), lambda i: (i, 0))
    const_spec = lambda w: pl.BlockSpec(w.shape, lambda i: (0, 0))   # resident weights

    return pl.pallas_call(
        _gatnet_kernel,
        out_shape=jax.ShapeDtypeStruct((m, r), jnp.float32),
        grid=(n_chunks,),
        in_specs=[row_spec(f_in), row_spec(r)] + [const_spec(w) for w in weights],
        out_specs=row_spec(r),
        compiler_params=pltpu.CompilerParams(
            dimension_semantics=("parallel",)),   # v7x: shard chunks across both TCs
    )(x_rows, bias_rows, *weights)


# ----------------------------------------------------------------------------
# Graph preprocessing (outside the kernel, plain XLA)
# ----------------------------------------------------------------------------
def edge_index_to_bias(edge_index, n):
    """Additive attention mask: 0 where edge j->i (or self-loop), -1e30 elsewhere."""
    src, dst = edge_index[0], edge_index[1]
    adj = jnp.zeros((n, n), jnp.float32).at[dst, src].set(1.0)
    adj = jnp.maximum(adj, jnp.eye(n, dtype=jnp.float32))   # add_self_loops=True
    return jnp.where(adj > 0, 0.0, NEG_INF)


@jax.jit
def forward(params, x, edge_index):
    """Single-graph forward, identical semantics to the PyTorch module."""
    n = x.shape[0]
    bias = edge_index_to_bias(edge_index, n)
    return gatnet_pallas(x.astype(jnp.bfloat16), bias, params)


@partial(jax.jit, static_argnames=("graphs_per_chunk",))
def forward_batched(params, x_batch, edge_index_batch, graphs_per_chunk=4):
    """Run B independent graphs through one kernel.

    Graphs are stacked into the matmul row dimension (graphs_per_chunk * N rows
    per grid step) with a block-diagonal attention mask, so results per graph
    are identical to running `forward` on each graph separately.
    """
    b, n, f = x_batch.shape
    gpc = graphs_per_chunk
    assert b % gpc == 0
    n_chunks = b // gpc
    r = gpc * n

    pgb = jax.vmap(lambda ei: edge_index_to_bias(ei, n))(edge_index_batch)   # (B, n, n)
    pgb = pgb.reshape(n_chunks, gpc, n, n)
    eye = jnp.eye(gpc, dtype=jnp.float32)[None, :, None, :, None]            # (1,g,1,g,1)
    bias = eye * pgb[:, :, :, None, :] + (1.0 - eye) * NEG_INF               # (C,g,n,g,n)
    bias_rows = bias.reshape(n_chunks * r, r)

    x_rows = x_batch.reshape(b * n, f).astype(jnp.bfloat16)
    out = gatnet_pallas(x_rows, bias_rows, params)                           # (C*r, r)

    # Per-graph (n, n) diagonal blocks; cross-graph distances are discarded.
    dists = [out[c * r + g * n: c * r + (g + 1) * n, g * n:(g + 1) * n]
             for c in range(n_chunks) for g in range(gpc)]
    return jnp.stack(dists, axis=0)                                          # (B, n, n)


# ----------------------------------------------------------------------------
# Deterministic parameter init (weights stored as [in, out] == torch W.T,
# matmul weights resident in bf16, biases / att_dst in f32)
# ----------------------------------------------------------------------------
def init_params(key):
    ks = jax.random.split(key, 12)

    def u(k, shape, fan_in):
        bound = 1.0 / jnp.sqrt(jnp.float32(fan_in))
        return jax.random.uniform(k, shape, jnp.float32, -bound, bound)

    gat_w = u(ks[0], (F_IN, F_OUT), F_IN)            # GATConv lin weight
    att_src = u(ks[1], (1, F_OUT), F_OUT)
    att_dst = u(ks[2], (1, F_OUT), F_OUT)

    # dense3: Linear(64, 3) zero-padded to 128 output columns (cdist unchanged).
    w3 = jnp.zeros((64, D3_PAD), jnp.float32).at[:, :3].set(u(ks[9], (64, 3), 64))
    b3 = jnp.zeros((1, D3_PAD), jnp.float32).at[:, :3].set(u(ks[10], (1, 3), 64))

    return {
        "gat_w": gat_w.astype(jnp.bfloat16),
        "att_src": att_src.astype(jnp.bfloat16),     # row, used in bf16 matmul
        "att_dst": att_dst,                          # row, used on VPU in f32
        "gat_b": jnp.zeros((1, F_OUT), jnp.float32),
        # densea: Linear(512, 256)
        "wa": u(ks[3], (512, 256), 512).astype(jnp.bfloat16),
        "ba": u(ks[4], (1, 256), 512),
        # dense1: Linear(256, 128)
        "w1": u(ks[5], (256, 128), 256).astype(jnp.bfloat16),
        "b1": u(ks[6], (1, 128), 256),
        # dense2: Linear(128, 64)
        "w2": u(ks[7], (128, 64), 128).astype(jnp.bfloat16),
        "b2": u(ks[8], (1, 64), 128),
        # dense3: Linear(64, 3) (padded)
        "w3": w3.astype(jnp.bfloat16),
        "b3": b3,
    }


if __name__ == "__main__":
    key = jax.random.PRNGKey(0)
    k_x, k_src, k_dst, k_par = jax.random.split(key, 4)

    B, n, e = 8, N_NODES, 96             # 8 graphs -> 2 chunks of 128 rows
    x = jax.random.normal(k_x, (B, n, F_IN), jnp.float32)
    src = jax.random.randint(k_src, (B, e), 0, n)
    dst = jax.random.randint(k_dst, (B, e), 0, n)
    edge_index = jnp.stack([src, dst], axis=1)       # (B, 2, E), source_to_target

    params = init_params(k_par)

    # Batched path: 8 graphs in one fused kernel (2 parallel grid steps).
    out_b = forward_batched(params, x, edge_index, graphs_per_chunk=4)
    out_b = jax.block_until_ready(out_b)
    assert out_b.shape == (B, n, n)
    assert bool(jnp.all(jnp.isfinite(out_b)))

    # Single-graph path (original module interface / semantics).
    out_1 = forward(params, x[0], edge_index[0])
    out_1 = jax.block_until_ready(out_1)
    assert out_1.shape == (n, n)
    assert bool(jnp.all(jnp.isfinite(out_1)))

    print("KERNEL_OK")
</pallas_src>

<mosaic_0001>
module attributes {stable_mosaic.version = 11 : i64} {
  func.func @_gatnet_kernel(%arg0: i32, %arg1: memref<128x512xbf16, #tpu.memory_space<vmem>>, %arg2: memref<128x128xf32, #tpu.memory_space<vmem>>, %arg3: memref<512x512xbf16, #tpu.memory_space<vmem>>, %arg4: memref<1x512xbf16, #tpu.memory_space<vmem>>, %arg5: memref<1x512xf32, #tpu.memory_space<vmem>>, %arg6: memref<1x512xf32, #tpu.memory_space<vmem>>, %arg7: memref<512x256xbf16, #tpu.memory_space<vmem>>, %arg8: memref<1x256xf32, #tpu.memory_space<vmem>>, %arg9: memref<256x128xbf16, #tpu.memory_space<vmem>>, %arg10: memref<1x128xf32, #tpu.memory_space<vmem>>, %arg11: memref<128x64xbf16, #tpu.memory_space<vmem>>, %arg12: memref<1x64xf32, #tpu.memory_space<vmem>>, %arg13: memref<64x128xbf16, #tpu.memory_space<vmem>>, %arg14: memref<1x128xf32, #tpu.memory_space<vmem>>, %arg15: memref<128x128xf32, #tpu.memory_space<vmem>>) attributes {dimension_semantics = [#tpu.dimension_semantics<parallel>], iteration_bounds = array<i64: 2>, scalar_prefetch = 0 : i64, scratch_operands = 0 : i64, tpu.core_type = #tpu.core_type<tc>, window_params = [{transform_indices = @transform_0, window_bounds = array<i64: 128, 512>}, {transform_indices = @transform_1, window_bounds = array<i64: 128, 128>}, {pipeline_mode = #tpu.pipeline_mode<synchronous>, transform_indices = @transform_2, window_bounds = array<i64: 512, 512>}, {pipeline_mode = #tpu.pipeline_mode<synchronous>, transform_indices = @transform_3, window_bounds = array<i64: 1, 512>}, {pipeline_mode = #tpu.pipeline_mode<synchronous>, transform_indices = @transform_4, window_bounds = array<i64: 1, 512>}, {pipeline_mode = #tpu.pipeline_mode<synchronous>, transform_indices = @transform_5, window_bounds = array<i64: 1, 512>}, {pipeline_mode = #tpu.pipeline_mode<synchronous>, transform_indices = @transform_6, window_bounds = array<i64: 512, 256>}, {pipeline_mode = #tpu.pipeline_mode<synchronous>, transform_indices = @transform_7, window_bounds = array<i64: 1, 256>}, {pipeline_mode = #tpu.pipeline_mode<synchronous>, transform_indices = @transform_8, window_bounds = array<i64: 256, 128>}, {pipeline_mode = #tpu.pipeline_mode<synchronous>, transform_indices = @transform_9, window_bounds = array<i64: 1, 128>}, {pipeline_mode = #tpu.pipeline_mode<synchronous>, transform_indices = @transform_10, window_bounds = array<i64: 128, 64>}, {pipeline_mode = #tpu.pipeline_mode<synchronous>, transform_indices = @transform_11, window_bounds = array<i64: 1, 64>}, {pipeline_mode = #tpu.pipeline_mode<synchronous>, transform_indices = @transform_12, window_bounds = array<i64: 64, 128>}, {pipeline_mode = #tpu.pipeline_mode<synchronous>, transform_indices = @transform_13, window_bounds = array<i64: 1, 128>}, {transform_indices = @transform_14, window_bounds = array<i64: 128, 128>}]} {
    %c0 = arith.constant 0 : index
    %c0_0 = arith.constant 0 : index
    %0 = vector.load %arg1[%c0, %c0_0] : memref<128x512xbf16, #tpu.memory_space<vmem>>, vector<128x512xbf16>
    %c0_1 = arith.constant 0 : index
    %c0_2 = arith.constant 0 : index
    %1 = vector.load %arg2[%c0_1, %c0_2] : memref<128x128xf32, #tpu.memory_space<vmem>>, vector<128x128xf32>
    %c0_3 = arith.constant 0 : index
    %c0_4 = arith.constant 0 : index
    %2 = vector.load %arg3[%c0_3, %c0_4] : memref<512x512xbf16, #tpu.memory_space<vmem>>, vector<512x512xbf16>
    %cst = arith.constant dense<0.000000e+00> : vector<128x512xf32>
    %3 = tpu.matmul %0, %2, %cst {dimension_numbers = #tpu.dot_dimension_numbers<[1], [0], [0], [1], [0, 0, 1, 1], [], []>} : vector<128x512xbf16>, vector<512x512xbf16>, vector<128x512xf32> -> vector<128x512xf32>
    %4 = arith.truncf %3 : vector<128x512xf32> to vector<128x512xbf16>
    %c0_5 = arith.constant 0 : index
    %c0_6 = arith.constant 0 : index
    %5 = vector.load %arg5[%c0_5, %c0_6] : memref<1x512xf32, #tpu.memory_space<vmem>>, vector<1x512xf32>
    %6 = vector.broadcast %5 : vector<1x512xf32> to vector<128x512xf32>
    %7 = arith.mulf %3, %6 : vector<128x512xf32>
    %cst_7 = arith.constant dense<0.000000e+00> : vector<128xf32>
    %8 = vector.multi_reduction <add>, %7, %cst_7 [1] : vector<128x512xf32> to vector<128xf32>
    %9 = vector.shape_cast %8 : vector<128xf32> to vector<128x1xf32>
    %c0_8 = arith.constant 0 : index
    %c0_9 = arith.constant 0 : index
    %10 = vector.load %arg4[%c0_8, %c0_9] : memref<1x512xbf16, #tpu.memory_space<vmem>>, vector<1x512xbf16>
    %cst_10 = arith.constant dense<0.000000e+00> : vector<1x128xf32>
    %11 = tpu.matmul %10, %4, %cst_10 {dimension_numbers = #tpu.dot_dimension_numbers<[1], [1], [0], [0], [0, 0, 1, 0], [], []>} : vector<1x512xbf16>, vector<128x512xbf16>, vector<1x128xf32> -> vector<1x128xf32>
    %12 = vector.broadcast %9 : vector<128x1xf32> to vector<128x128xf32>
    %13 = vector.broadcast %11 : vector<1x128xf32> to vector<128x128xf32>
    %14 = arith.addf %12, %13 : vector<128x128xf32>
    %cst_11 = arith.constant 0.000000e+00 : f32
    %15 = vector.broadcast %cst_11 : f32 to vector<128x128xf32>
    %16 = arith.cmpf ogt, %14, %15 : vector<128x128xf32>
    %cst_12 = arith.constant 2.000000e-01 : f32
    %17 = vector.broadcast %cst_12 : f32 to vector<128x128xf32>
    %18 = arith.mulf %17, %14 : vector<128x128xf32>
    %19 = arith.select %16, %14, %18 : vector<128x128xi1>, vector<128x128xf32>
    %20 = arith.addf %19, %1 : vector<128x128xf32>
    %cst_13 = arith.constant dense<0xFF800000> : vector<128xf32>
    %21 = vector.multi_reduction <maximumf>, %20, %cst_13 [1] : vector<128x128xf32> to vector<128xf32>
    %22 = vector.shape_cast %21 : vector<128xf32> to vector<128x1xf32>
    %23 = vector.broadcast %22 : vector<128x1xf32> to vector<128x128xf32>
    %24 = arith.subf %20, %23 : vector<128x128xf32>
    %25 = math.exp %24 : vector<128x128xf32>
    %cst_14 = arith.constant dense<0.000000e+00> : vector<128xf32>
    %26 = vector.multi_reduction <add>, %25, %cst_14 [1] : vector<128x128xf32> to vector<128xf32>
    %27 = vector.shape_cast %26 : vector<128xf32> to vector<128x1xf32>
    %28 = tpu.reciprocal %27 {approx = true} : vector<128x1xf32> -> vector<128x1xf32>
    %29 = vector.broadcast %28 : vector<128x1xf32> to vector<128x128xf32>
    %30 = arith.mulf %25, %29 : vector<128x128xf32>
    %31 = arith.truncf %30 : vector<128x128xf32> to vector<128x128xbf16>
    %cst_15 = arith.constant dense<0.000000e+00> : vector<128x512xf32>
    %32 = tpu.matmul %31, %4, %cst_15 {dimension_numbers = #tpu.dot_dimension_numbers<[1], [0], [0], [1], [0, 0, 1, 1], [], []>} : vector<128x128xbf16>, vector<128x512xbf16>, vector<128x512xf32> -> vector<128x512xf32>
    %c0_16 = arith.constant 0 : index
    %c0_17 = arith.constant 0 : index
    %33 = vector.load %arg6[%c0_16, %c0_17] : memref<1x512xf32, #tpu.memory_space<vmem>>, vector<1x512xf32>
    %34 = vector.broadcast %33 : vector<1x512xf32> to vector<128x512xf32>
    %35 = arith.addf %32, %34 : vector<128x512xf32>
    %cst_18 = arith.constant 0.000000e+00 : f32
    %36 = vector.broadcast %cst_18 : f32 to vector<128x512xf32>
    %37 = arith.maximumf %35, %36 : vector<128x512xf32>
    %38 = arith.truncf %37 : vector<128x512xf32> to vector<128x512xbf16>
    %c0_19 = arith.constant 0 : index
    %c0_20 = arith.constant 0 : index
    %39 = vector.load %arg7[%c0_19, %c0_20] : memref<512x256xbf16, #tpu.memory_space<vmem>>, vector<512x256xbf16>
    %cst_21 = arith.constant dense<0.000000e+00> : vector<128x256xf32>
    %40 = tpu.matmul %38, %39, %cst_21 {dimension_numbers = #tpu.dot_dimension_numbers<[1], [0], [0], [1], [0, 0, 1, 1], [], []>} : vector<128x512xbf16>, vector<512x256xbf16>, vector<128x256xf32> -> vector<128x256xf32>
    %c0_22 = arith.constant 0 : index
    %c0_23 = arith.constant 0 : index
    %41 = vector.load %arg8[%c0_22, %c0_23] : memref<1x256xf32, #tpu.memory_space<vmem>>, vector<1x256xf32>
    %42 = vector.broadcast %41 : vector<1x256xf32> to vector<128x256xf32>
    %43 = arith.addf %40, %42 : vector<128x256xf32>
    %cst_24 = arith.constant 0.000000e+00 : f32
    %44 = vector.broadcast %cst_24 : f32 to vector<128x256xf32>
    %45 = arith.maximumf %43, %44 : vector<128x256xf32>
    %46 = arith.truncf %45 : vector<128x256xf32> to vector<128x256xbf16>
    %c0_25 = arith.constant 0 : index
    %c0_26 = arith.constant 0 : index
    %47 = vector.load %arg9[%c0_25, %c0_26] : memref<256x128xbf16, #tpu.memory_space<vmem>>, vector<256x128xbf16>
    %cst_27 = arith.constant dense<0.000000e+00> : vector<128x128xf32>
    %48 = tpu.matmul %46, %47, %cst_27 {dimension_numbers = #tpu.dot_dimension_numbers<[1], [0], [0], [1], [0, 0, 1, 1], [], []>} : vector<128x256xbf16>, vector<256x128xbf16>, vector<128x128xf32> -> vector<128x128xf32>
    %c0_28 = arith.constant 0 : index
    %c0_29 = arith.constant 0 : index
    %49 = vector.load %arg10[%c0_28, %c0_29] : memref<1x128xf32, #tpu.memory_space<vmem>>, vector<1x128xf32>
    %50 = vector.broadcast %49 : vector<1x128xf32> to vector<128x128xf32>
    %51 = arith.addf %48, %50 : vector<128x128xf32>
    %cst_30 = arith.constant 0.000000e+00 : f32
    %52 = vector.broadcast %cst_30 : f32 to vector<128x128xf32>
    %53 = arith.maximumf %51, %52 : vector<128x128xf32>
    %54 = arith.truncf %53 : vector<128x128xf32> to vector<128x128xbf16>
    %c0_31 = arith.constant 0 : index
    %c0_32 = arith.constant 0 : index
    %55 = vector.load %arg11[%c0_31, %c0_32] : memref<128x64xbf16, #tpu.memory_space<vmem>>, vector<128x64xbf16>
    %cst_33 = arith.constant dense<0.000000e+00> : vector<128x64xf32>
    %56 = tpu.matmul %54, %55, %cst_33 {dimension_numbers = #tpu.dot_dimension_numbers<[1], [0], [0], [1], [0, 0, 1, 1], [], []>} : vector<128x128xbf16>, vector<128x64xbf16>, vector<128x64xf32> -> vector<128x64xf32>
    %c0_34 = arith.constant 0 : index
    %c0_35 = arith.constant 0 : index
    %57 = vector.load %arg12[%c0_34, %c0_35] : memref<1x64xf32, #tpu.memory_space<vmem>>, vector<1x64xf32>
    %58 = vector.broadcast %57 : vector<1x64xf32> to vector<128x64xf32>
    %59 = arith.addf %56, %58 : vector<128x64xf32>
    %cst_36 = arith.constant 0.000000e+00 : f32
    %60 = vector.broadcast %cst_36 : f32 to vector<128x64xf32>
    %61 = arith.maximumf %59, %60 : vector<128x64xf32>
    %62 = arith.truncf %61 : vector<128x64xf32> to vector<128x64xbf16>
    %c0_37 = arith.constant 0 : index
    %c0_38 = arith.constant 0 : index
    %63 = vector.load %arg13[%c0_37, %c0_38] : memref<64x128xbf16, #tpu.memory_space<vmem>>, vector<64x128xbf16>
    %cst_39 = arith.constant dense<0.000000e+00> : vector<128x128xf32>
    %64 = tpu.matmul %62, %63, %cst_39 {dimension_numbers = #tpu.dot_dimension_numbers<[1], [0], [0], [1], [0, 0, 1, 1], [], []>} : vector<128x64xbf16>, vector<64x128xbf16>, vector<128x128xf32> -> vector<128x128xf32>
    %c0_40 = arith.constant 0 : index
    %c0_41 = arith.constant 0 : index
    %65 = vector.load %arg14[%c0_40, %c0_41] : memref<1x128xf32, #tpu.memory_space<vmem>>, vector<1x128xf32>
    %66 = vector.broadcast %65 : vector<1x128xf32> to vector<128x128xf32>
    %67 = arith.addf %64, %66 : vector<128x128xf32>
    %68 = arith.mulf %67, %67 : vector<128x128xf32>
    %cst_42 = arith.constant dense<0.000000e+00> : vector<128xf32>
    %69 = vector.multi_reduction <add>, %68, %cst_42 [1] : vector<128x128xf32> to vector<128xf32>
    %70 = vector.shape_cast %69 : vector<128xf32> to vector<128x1xf32>
    %cst_43 = arith.constant dense<0.000000e+00> : vector<128x128xf32>
    %71 = tpu.matmul %67, %67, %cst_43 {dimension_numbers = #tpu.dot_dimension_numbers<[1], [1], [0], [0], [0, 0, 1, 0], [], []>} : vector<128x128xf32>, vector<128x128xf32>, vector<128x128xf32> -> vector<128x128xf32>
    %72 = tpu.transpose %70, [1, 0] : vector<128x1xf32> -> vector<1x128xf32>
    %73 = vector.broadcast %70 : vector<128x1xf32> to vector<128x128xf32>
    %74 = vector.broadcast %72 : vector<1x128xf32> to vector<128x128xf32>
    %75 = arith.addf %73, %74 : vector<128x128xf32>
    %cst_44 = arith.constant 2.000000e+00 : f32
    %76 = vector.broadcast %cst_44 : f32 to vector<128x128xf32>
    %77 = arith.mulf %76, %71 : vector<128x128xf32>
    %78 = arith.subf %75, %77 : vector<128x128xf32>
    %cst_45 = arith.constant 0.000000e+00 : f32
    %79 = vector.broadcast %cst_45 : f32 to vector<128x128xf32>
    %80 = arith.maximumf %78, %79 : vector<128x128xf32>
    %81 = math.sqrt %80 : vector<128x128xf32>
    %c0_46 = arith.constant 0 : index
    %c0_47 = arith.constant 0 : index
    %82 = vector.load %arg15[%c0_46, %c0_47] : memref<128x128xf32, #tpu.memory_space<vmem>>, vector<128x128xf32>
    tpu.vector_store %arg15[%c0_46, %c0_47], %81 {strides = array<i32>} : memref<128x128xf32, #tpu.memory_space<vmem>>, vector<128x128xf32>,
    return
  }
  func.func @transform_0(%arg0: i32) -> (i32, i32) {
    %c0_i32 = arith.constant 0 : i32
    %c0_i32_0 = arith.constant 0 : i32
    return %arg0, %c0_i32 : i32, i32
  }
  func.func @transform_1(%arg0: i32) -> (i32, i32) {
    %c0_i32 = arith.constant 0 : i32
    %c0_i32_0 = arith.constant 0 : i32
    return %arg0, %c0_i32 : i32, i32
  }
  func.func @transform_2(%arg0: i32) -> (i32, i32) {
    %c0_i32 = arith.constant 0 : i32
    %c0_i32_0 = arith.constant 0 : i32
    %c0_i32_1 = arith.constant 0 : i32
    return %c0_i32, %c0_i32_0 : i32, i32
  }
  func.func @transform_3(%arg0: i32) -> (i32, i32) {
    %c0_i32 = arith.constant 0 : i32
    %c0_i32_0 = arith.constant 0 : i32
    %c0_i32_1 = arith.constant 0 : i32
    return %c0_i32, %c0_i32_0 : i32, i32
  }
  func.func @transform_4(%arg0: i32) -> (i32, i32) {
    %c0_i32 = arith.constant 0 : i32
    %c0_i32_0 = arith.constant 0 : i32
    %c0_i32_1 = arith.constant 0 : i32
    return %c0_i32, %c0_i32_0 : i32, i32
  }
  func.func @transform_5(%arg0: i32) -> (i32, i32) {
    %c0_i32 = arith.constant 0 : i32
    %c0_i32_0 = arith.constant 0 : i32
    %c0_i32_1 = arith.constant 0 : i32
    return %c0_i32, %c0_i32_0 : i32, i32
  }
  func.func @transform_6(%arg0: i32) -> (i32, i32) {
    %c0_i32 = arith.constant 0 : i32
    %c0_i32_0 = arith.constant 0 : i32
    %c0_i32_1 = arith.constant 0 : i32
    return %c0_i32, %c0_i32_0 : i32, i32
  }
  func.func @transform_7(%arg0: i32) -> (i32, i32) {
    %c0_i32 = arith.constant 0 : i32
    %c0_i32_0 = arith.constant 0 : i32
    %c0_i32_1 = arith.constant 0 : i32
    return %c0_i32, %c0_i32_0 : i32, i32
  }
  func.func @transform_8(%arg0: i32) -> (i32, i32) {
    %c0_i32 = arith.constant 0 : i32
    %c0_i32_0 = arith.constant 0 : i32
    %c0_i32_1 = arith.constant 0 : i32
    return %c0_i32, %c0_i32_0 : i32, i32
  }
  func.func @transform_9(%arg0: i32) -> (i32, i32) {
    %c0_i32 = arith.constant 0 : i32
    %c0_i32_0 = arith.constant 0 : i32
    %c0_i32_1 = arith.constant 0 : i32
    return %c0_i32, %c0_i32_0 : i32, i32
  }
  func.func @transform_10(%arg0: i32) -> (i32, i32) {
    %c0_i32 = arith.constant 0 : i32
    %c0_i32_0 = arith.constant 0 : i32
    %c0_i32_1 = arith.constant 0 : i32
    return %c0_i32, %c0_i32_0 : i32, i32
  }
  func.func @transform_11(%arg0: i32) -> (i32, i32) {
    %c0_i32 = arith.constant 0 : i32
    %c0_i32_0 = arith.constant 0 : i32
    %c0_i32_1 = arith.constant 0 : i32
    return %c0_i32, %c0_i32_0 : i32, i32
  }
  func.func @transform_12(%arg0: i32) -> (i32, i32) {
    %c0_i32 = arith.constant 0 : i32
    %c0_i32_0 = arith.constant 0 : i32
    %c0_i32_1 = arith.constant 0 : i32
    return %c0_i32, %c0_i32_0 : i32, i32
  }
  func.func @transform_13(%arg0: i32) -> (i32, i32) {
    %c0_i32 = arith.constant 0 : i32
    %c0_i32_0 = arith.constant 0 : i32
    %c0_i32_1 = arith.constant 0 : i32
    return %c0_i32, %c0_i32_0 : i32, i32
  }
  func.func @transform_14(%arg0: i32) -> (i32, i32) {
    %c0_i32 = arith.constant 0 : i32
    %c0_i32_0 = arith.constant 0 : i32
    return %arg0, %c0_i32 : i32, i32
  }
}

</mosaic_0001>

<llo_original>
// kernel: forward_batched.1
$region0: #{forward_batched.1}
  #allocation0 [shape = 'u32[]', space=smem, size = 0x4, offset = 0x4, fixed_abs, tag = 'smem constant byte address 0x4 - core index']
  #allocation1 [shape = 'u32[72,128]{1,0:T(1,128)}', space=vmem, size = 0x9000, scoped, tag = 'internal scratch']
  %s0 = inlined_call_operand.vmem [shape: bf16[256,512], index: 0, kind: input, shape index: {}]
  %s1 = inlined_call_operand.vmem [shape: f32[256,128], index: 1, kind: input, shape index: {}]
  %s2 = inlined_call_operand.vmem [shape: bf16[512,512], index: 2, kind: input, shape index: {}]
  %s3 = inlined_call_operand.vmem [shape: bf16[1,512], index: 3, kind: input, shape index: {}]
  %s4 = inlined_call_operand.vmem [shape: f32[1,512], index: 4, kind: input, shape index: {}]
  %s5 = inlined_call_operand.vmem [shape: f32[1,512], index: 5, kind: input, shape index: {}]
  %s6 = inlined_call_operand.vmem [shape: bf16[512,256], index: 6, kind: input, shape index: {}]
  %s7 = inlined_call_operand.vmem [shape: f32[1,256], index: 7, kind: input, shape index: {}]
  %s8 = inlined_call_operand.vmem [shape: bf16[256,128], index: 8, kind: input, shape index: {}]
  %s9 = inlined_call_operand.vmem [shape: f32[1,128], index: 9, kind: input, shape index: {}]
  %s10 = inlined_call_operand.vmem [shape: bf16[128,64], index: 10, kind: input, shape index: {}]
  %s11 = inlined_call_operand.vmem [shape: f32[1,64], index: 11, kind: input, shape index: {}]
  %s12 = inlined_call_operand.vmem [shape: bf16[64,128], index: 12, kind: input, shape index: {}]
  %s13 = inlined_call_operand.vmem [shape: f32[1,128], index: 13, kind: input, shape index: {}]
  %s14 = inlined_call_operand.vmem [shape: f32[256,128], index: 14, kind: output, shape index: {}]
  %s15 = sld [smem:[#allocation0]]
  $region89: #{forward_batched.1} parent=0
    _
  %s17 = ssub.s32 1, %s15
  %s18 = scalar_select 0, %s17, %s15
  loop: start=0, step=1, limit=4
  $region2: #{forward_batched.1} parent=0 // loop_pre_header
    _
  $region3: #{forward_batched.1} parent=0 // loop_header
    %s20 = sphi 0, %s24
    %p21 = scmp.ge.s32.totalorder %s20, 4
    %s30 = sphi 0, %s32
    %s33 = sphi 0, %s30
    %s34 = sphi 0, %s33
    %s50 = sphi 0, %s34
    %s56 = sphi 0, %s58
    %s59 = sphi 0, %s56
    %s60 = sphi 0, %s59
    %s76 = sphi 0, %s60
    %s80 = sphi 0, %s80
    %s82 = sphi 0, %s80
    %s83 = sphi 0, %s82
    %s97 = sphi 0, %s83
    %s101 = sphi 0, %s101
    %s103 = sphi 0, %s101
    %s104 = sphi 0, %s103
    %s118 = sphi 0, %s104
    %s122 = sphi 0, %s122
    %s124 = sphi 0, %s122
    %s125 = sphi 0, %s124
    %s139 = sphi 0, %s125
    %s143 = sphi 0, %s143
    %s145 = sphi 0, %s143
    %s146 = sphi 0, %s145
    %s160 = sphi 0, %s146
    %s164 = sphi 0, %s164
    %s166 = sphi 0, %s164
    %s167 = sphi 0, %s166
    %s181 = sphi 0, %s167
    %s185 = sphi 0, %s185
    %s187 = sphi 0, %s185
    %s188 = sphi 0, %s187
    %s202 = sphi 0, %s188
    %s206 = sphi 0, %s206
    %s208 = sphi 0, %s206
    %s209 = sphi 0, %s208
    %s223 = sphi 0, %s209
    %s227 = sphi 0, %s227
    %s229 = sphi 0, %s227
    %s230 = sphi 0, %s229
    %s244 = sphi 0, %s230
    %s248 = sphi 0, %s248
    %s250 = sphi 0, %s248
    %s251 = sphi 0, %s250
    %s265 = sphi 0, %s251
    %s269 = sphi 0, %s269
    %s271 = sphi 0, %s269
    %s272 = sphi 0, %s271
    %s286 = sphi 0, %s272
    %s290 = sphi 0, %s290
    %s292 = sphi 0, %s290
    %s293 = sphi 0, %s292
    %s307 = sphi 0, %s293
    %s311 = sphi 0, %s311
    %s313 = sphi 0, %s311
    %s314 = sphi 0, %s313
    %s328 = sphi 0, %s314
    %s334 = sphi 0, %s336
    %s337 = sphi 0, %s334
    %s338 = sphi 0, %s337
    %s354 = sphi 0, %s338
  $region4: #{forward_batched.1} parent=0 // loop_header_branch
    %23 = sbr.rel (%p21) target = $region8
  $region5: #{forward_batched.1} parent=0 // loop_body
    %s25 = ssub.s32 %s20, 1
    %s26 = ssub.s32 %s20, 2
    %s27 = sadd.s32 %s20, 1
    %s28 = ssub.s32 %s20, %s27
    %p29 = scmp.eq.s32.totalorder %s28, 0
    %s31 = sadd.s32 %s30, 1
    %s32 = scalar_select %p29, %s30, %s31
    %p35 = pneg %p29
    %p36 = scmp.eq.s32.totalorder %s20, 1
    %p37 = por %p35, %p36
    %p38 = scmp.ne.s32.totalorder %s30, %s33
    %p39 = scmp.eq.s32.totalorder %s20, 0
    %p40 = por %p38, %p39
    %p41 = scmp.ne.s32.totalorder %s30, %s33
    %p42 = scmp.eq.s32.totalorder %s25, 1
    %p43 = por %p41, %p42
    %p44 = scmp.ne.s32.totalorder %s33, %s34
    %p45 = scmp.eq.s32.totalorder %s25, 0
    %p46 = por %p44, %p45
    %p47 = scmp.ne.s32.totalorder %s33, %s34
    %p48 = scmp.eq.s32.totalorder %s26, 1
    %p49 = por %p47, %p48
    %p51 = scmp.ne.s32.totalorder %s34, %s50
    %p52 = scmp.eq.s32.totalorder %s26, 0
    %p53 = por %p51, %p52
    %s54 = ssub.s32 %s20, %s27
    %p55 = scmp.eq.s32.totalorder %s54, 0
    %s57 = sadd.s32 %s56, 1
    %s58 = scalar_select %p55, %s56, %s57
    %p61 = pneg %p55
    %p62 = scmp.eq.s32.totalorder %s20, 1
    %p63 = por %p61, %p62
    %p64 = scmp.ne.s32.totalorder %s56, %s59
    %p65 = scmp.eq.s32.totalorder %s20, 0
    %p66 = por %p64, %p65
    %p67 = scmp.ne.s32.totalorder %s56, %s59
    %p68 = scmp.eq.s32.totalorder %s25, 1
    %p69 = por %p67, %p68
    %p70 = scmp.ne.s32.totalorder %s59, %s60
    %p71 = scmp.eq.s32.totalorder %s25, 0
    %p72 = por %p70, %p71
    %p73 = scmp.ne.s32.totalorder %s59, %s60
    %p74 = scmp.eq.s32.totalorder %s26, 1
    %p75 = por %p73, %p74
    %p77 = scmp.ne.s32.totalorder %s60, %s76
    %p78 = scmp.eq.s32.totalorder %s26, 0
    %p79 = por %p77, %p78
    %s81 = sadd.s32 %s80, 1
    %p84 = scmp.eq.s32.totalorder %s20, 1
    %p85 = scmp.ne.s32.totalorder %s80, %s82
    %p86 = scmp.eq.s32.totalorder %s20, 0
    %p87 = por %p85, %p86
    %p88 = scmp.ne.s32.totalorder %s80, %s82
    %p89 = scmp.eq.s32.totalorder %s25, 1
    %p90 = por %p88, %p89
    %p91 = scmp.ne.s32.totalorder %s82, %s83
    %p92 = scmp.eq.s32.totalorder %s25, 0
    %p93 = por %p91, %p92
    %p94 = scmp.ne.s32.totalorder %s82, %s83
    %p95 = scmp.eq.s32.totalorder %s26, 1
    %p96 = por %p94, %p95
    %p98 = scmp.ne.s32.totalorder %s83, %s97
    %p99 = scmp.eq.s32.totalorder %s26, 0
    %p100 = por %p98, %p99
    %s102 = sadd.s32 %s101, 1
    %p105 = scmp.eq.s32.totalorder %s20, 1
    %p106 = scmp.ne.s32.totalorder %s101, %s103
    %p107 = scmp.eq.s32.totalorder %s20, 0
    %p108 = por %p106, %p107
    %p109 = scmp.ne.s32.totalorder %s101, %s103
    %p110 = scmp.eq.s32.totalorder %s25, 1
    %p111 = por %p109, %p110
    %p112 = scmp.ne.s32.totalorder %s103, %s104
    %p113 = scmp.eq.s32.totalorder %s25, 0
    %p114 = por %p112, %p113
    %p115 = scmp.ne.s32.totalorder %s103, %s104
    %p116 = scmp.eq.s32.totalorder %s26, 1
    %p117 = por %p115, %p116
    %p119 = scmp.ne.s32.totalorder %s104, %s118
    %p120 = scmp.eq.s32.totalorder %s26, 0
    %p121 = por %p119, %p120
    %s123 = sadd.s32 %s122, 1
    %p126 = scmp.eq.s32.totalorder %s20, 1
    %p127 = scmp.ne.s32.totalorder %s122, %s124
    %p128 = scmp.eq.s32.totalorder %s20, 0
    %p129 = por %p127, %p128
    %p130 = scmp.ne.s32.totalorder %s122, %s124
    %p131 = scmp.eq.s32.totalorder %s25, 1
    %p132 = por %p130, %p131
    %p133 = scmp.ne.s32.totalorder %s124, %s125
    %p134 = scmp.eq.s32.totalorder %s25, 0
    %p135 = por %p133, %p134
    %p136 = scmp.ne.s32.totalorder %s124, %s125
    %p137 = scmp.eq.s32.totalorder %s26, 1
    %p138 = por %p136, %p137
    %p140 = scmp.ne.s32.totalorder %s125, %s139
    %p141 = scmp.eq.s32.totalorder %s26, 0
    %p142 = por %p140, %p141
    %s144 = sadd.s32 %s143, 1
    %p147 = scmp.eq.s32.totalorder %s20, 1
    %p148 = scmp.ne.s32.totalorder %s143, %s145
    %p149 = scmp.eq.s32.totalorder %s20, 0
    %p150 = por %p148, %p149
    %p151 = scmp.ne.s32.totalorder %s143, %s145
    %p152 = scmp.eq.s32.totalorder %s25, 1
    %p153 = por %p151, %p152
    %p154 = scmp.ne.s32.totalorder %s145, %s146
    %p155 = scmp.eq.s32.totalorder %s25, 0
    %p156 = por %p154, %p155
    %p157 = scmp.ne.s32.totalorder %s145, %s146
    %p158 = scmp.eq.s32.totalorder %s26, 1
    %p159 = por %p157, %p158
    %p161 = scmp.ne.s32.totalorder %s146, %s160
    %p162 = scmp.eq.s32.totalorder %s26, 0
    %p163 = por %p161, %p162
    %s165 = sadd.s32 %s164, 1
    %p168 = scmp.eq.s32.totalorder %s20, 1
    %p169 = scmp.ne.s32.totalorder %s164, %s166
    %p170 = scmp.eq.s32.totalorder %s20, 0
    %p171 = por %p169, %p170
    %p172 = scmp.ne.s32.totalorder %s164, %s166
    %p173 = scmp.eq.s32.totalorder %s25, 1
    %p174 = por %p172, %p173
    %p175 = scmp.ne.s32.totalorder %s166, %s167
    %p176 = scmp.eq.s32.totalorder %s25, 0
    %p177 = por %p175, %p176
    %p178 = scmp.ne.s32.totalorder %s166, %s167
    %p179 = scmp.eq.s32.totalorder %s26, 1
    %p180 = por %p178, %p179
    %p182 = scmp.ne.s32.totalorder %s167, %s181
    %p183 = scmp.eq.s32.totalorder %s26, 0
    %p184 = por %p182, %p183
    %s186 = sadd.s32 %s185, 1
    %p189 = scmp.eq.s32.totalorder %s20, 1
    %p190 = scmp.ne.s32.totalorder %s185, %s187
    %p191 = scmp.eq.s32.totalorder %s20, 0
    %p192 = por %p190, %p191
    %p193 = scmp.ne.s32.totalorder %s185, %s187
    %p194 = scmp.eq.s32.totalorder %s25, 1
    %p195 = por %p193, %p194
    %p196 = scmp.ne.s32.totalorder %s187, %s188
    %p197 = scmp.eq.s32.totalorder %s25, 0
    %p198 = por %p196, %p197
    %p199 = scmp.ne.s32.totalorder %s187, %s188
    %p200 = scmp.eq.s32.totalorder %s26, 1
    %p201 = por %p199, %p200
    %p203 = scmp.ne.s32.totalorder %s188, %s202
    %p204 = scmp.eq.s32.totalorder %s26, 0
    %p205 = por %p203, %p204
    %s207 = sadd.s32 %s206, 1
    %p210 = scmp.eq.s32.totalorder %s20, 1
    %p211 = scmp.ne.s32.totalorder %s206, %s208
    %p212 = scmp.eq.s32.totalorder %s20, 0
    %p213 = por %p211, %p212
    %p214 = scmp.ne.s32.totalorder %s206, %s208
    %p215 = scmp.eq.s32.totalorder %s25, 1
    %p216 = por %p214, %p215
    %p217 = scmp.ne.s32.totalorder %s208, %s209
    %p218 = scmp.eq.s32.totalorder %s25, 0
    %p219 = por %p217, %p218
    %p220 = scmp.ne.s32.totalorder %s208, %s209
    %p221 = scmp.eq.s32.totalorder %s26, 1
    %p222 = por %p220, %p221
    %p224 = scmp.ne.s32.totalorder %s209, %s223
    %p225 = scmp.eq.s32.totalorder %s26, 0
    %p226 = por %p224, %p225
    %s228 = sadd.s32 %s227, 1
    %p231 = scmp.eq.s32.totalorder %s20, 1
    %p232 = scmp.ne.s32.totalorder %s227, %s229
    %p233 = scmp.eq.s32.totalorder %s20, 0
    %p234 = por %p232, %p233
    %p235 = scmp.ne.s32.totalorder %s227, %s229
    %p236 = scmp.eq.s32.totalorder %s25, 1
    %p237 = por %p235, %p236
    %p238 = scmp.ne.s32.totalorder %s229, %s230
    %p239 = scmp.eq.s32.totalorder %s25, 0
    %p240 = por %p238, %p239
    %p241 = scmp.ne.s32.totalorder %s229, %s230
    %p242 = scmp.eq.s32.totalorder %s26, 1
    %p243 = por %p241, %p242
    %p245 = scmp.ne.s32.totalorder %s230, %s244
    %p246 = scmp.eq.s32.totalorder %s26, 0
    %p247 = por %p245, %p246
    %s249 = sadd.s32 %s248, 1
    %p252 = scmp.eq.s32.totalorder %s20, 1
    %p253 = scmp.ne.s32.totalorder %s248, %s250
    %p254 = scmp.eq.s32.totalorder %s20, 0
    %p255 = por %p253, %p254
    %p256 = scmp.ne.s32.totalorder %s248, %s250
    %p257 = scmp.eq.s32.totalorder %s25, 1
    %p258 = por %p256, %p257
    %p259 = scmp.ne.s32.totalorder %s250, %s251
    %p260 = scmp.eq.s32.totalorder %s25, 0
    %p261 = por %p259, %p260
    %p262 = scmp.ne.s32.totalorder %s250, %s251
    %p263 = scmp.eq.s32.totalorder %s26, 1
    %p264 = por %p262, %p263
    %p266 = scmp.ne.s32.totalorder %s251, %s265
    %p267 = scmp.eq.s32.totalorder %s26, 0
    %p268 = por %p266, %p267
    %s270 = sadd.s32 %s269, 1
    %p273 = scmp.eq.s32.totalorder %s20, 1
    %p274 = scmp.ne.s32.totalorder %s269, %s271
    %p275 = scmp.eq.s32.totalorder %s20, 0
    %p276 = por %p274, %p275
    %p277 = scmp.ne.s32.totalorder %s269, %s271
    %p278 = scmp.eq.s32.totalorder %s25, 1
    %p279 = por %p277, %p278
    %p280 = scmp.ne.s32.totalorder %s271, %s272
    %p281 = scmp.eq.s32.totalorder %s25, 0
    %p282 = por %p280, %p281
    %p283 = scmp.ne.s32.totalorder %s271, %s272
    %p284 = scmp.eq.s32.totalorder %s26, 1
    %p285 = por %p283, %p284
    %p287 = scmp.ne.s32.totalorder %s272, %s286
    %p288 = scmp.eq.s32.totalorder %s26, 0
    %p289 = por %p287, %p288
    %s291 = sadd.s32 %s290, 1
    %p294 = scmp.eq.s32.totalorder %s20, 1
    %p295 = scmp.ne.s32.totalorder %s290, %s292
    %p296 = scmp.eq.s32.totalorder %s20, 0
    %p297 = por %p295, %p296
    %p298 = scmp.ne.s32.totalorder %s290, %s292
    %p299 = scmp.eq.s32.totalorder %s25, 1
    %p300 = por %p298, %p299
    %p301 = scmp.ne.s32.totalorder %s292, %s293
    %p302 = scmp.eq.s32.totalorder %s25, 0
    %p303 = por %p301, %p302
    %p304 = scmp.ne.s32.totalorder %s292, %s293
    %p305 = scmp.eq.s32.totalorder %s26, 1
    %p306 = por %p304, %p305
    %p308 = scmp.ne.s32.totalorder %s293, %s307
    %p309 = scmp.eq.s32.totalorder %s26, 0
    %p310 = por %p308, %p309
    %s312 = sadd.s32 %s311, 1
    %p315 = scmp.eq.s32.totalorder %s20, 1
    %p316 = scmp.ne.s32.totalorder %s311, %s313
    %p317 = scmp.eq.s32.totalorder %s20, 0
    %p318 = por %p316, %p317
    %p319 = scmp.ne.s32.totalorder %s311, %s313
    %p320 = scmp.eq.s32.totalorder %s25, 1
    %p321 = por %p319, %p320
    %p322 = scmp.ne.s32.totalorder %s313, %s314
    %p323 = scmp.eq.s32.totalorder %s25, 0
    %p324 = por %p322, %p323
    %p325 = scmp.ne.s32.totalorder %s313, %s314
    %p326 = scmp.eq.s32.totalorder %s26, 1
    %p327 = por %p325, %p326
    %p329 = scmp.ne.s32.totalorder %s314, %s328
    %p330 = scmp.eq.s32.totalorder %s26, 0
    %p331 = por %p329, %p330
    %s332 = ssub.s32 %s20, %s27
    %p333 = scmp.eq.s32.totalorder %s332, 0
    %s335 = sadd.s32 %s334, 1
    %s336 = scalar_select %p333, %s334, %s335
    %p339 = pneg %p333
    %p340 = scmp.eq.s32.totalorder %s20, 1
    %p341 = por %p339, %p340
    %p342 = scmp.ne.s32.totalorder %s334, %s337
    %p343 = scmp.eq.s32.totalorder %s20, 0
    %p344 = por %p342, %p343
    %p345 = scmp.ne.s32.totalorder %s334, %s337
    %p346 = scmp.eq.s32.totalorder %s25, 1
    %p347 = por %p345, %p346
    %p348 = scmp.ne.s32.totalorder %s337, %s338
    %p349 = scmp.eq.s32.totalorder %s25, 0
    %p350 = por %p348, %p349
    %p351 = scmp.ne.s32.totalorder %s337, %s338
    %p352 = scmp.eq.s32.totalorder %s26, 1
    %p353 = por %p351, %p352
    %p355 = scmp.ne.s32.totalorder %s338, %s354
    %p356 = scmp.eq.s32.totalorder %s26, 0
    %p357 = por %p355, %p356
    %p358 = scmp.le.s32.totalorder 1, %s20
    %p359 = scmp.lt.s32.totalorder %s20, 3
    %p360 = pnand %p358, %p359
    %p361 = pneg %p360
    // Predicated region
    $region9: #{forward_batched.1} parent=5 // pred_check
      _
    $region10: #{forward_batched.1} parent=5 // pred_check_branch
      %363 = sbr.rel (%p360) target = $region12
    $region11: #{forward_batched.1} parent=5 // pred_region
      %s364 = ssub.s32 %s20, 1
      // Predicated region
      $region13: #{forward_batched.1} parent=11 // pred_check
        %p365 = pneg %p93
      $region14: #{forward_batched.1} parent=11 // pred_check_branch
        %367 = sbr.rel (%p365) target = $region16
      $region15: #{forward_batched.1} parent=11 // pred_region
        _
      $region16: #{forward_batched.1} parent=11 // pred_fallthru
        _
      // Predicated region
      $region17: #{forward_batched.1} parent=11 // pred_check
        %p368 = pneg %p114
      $region18: #{forward_batched.1} parent=11 // pred_check_branch
        %370 = sbr.rel (%p368) target = $region20
      $region19: #{forward_batched.1} parent=11 // pred_region
        _
      $region20: #{forward_batched.1} parent=11 // pred_fallthru
        _
      // Predicated region
      $region21: #{forward_batched.1} parent=11 // pred_check
        %p371 = pneg %p135
      $region22: #{forward_batched.1} parent=11 // pred_check_branch
        %373 = sbr.rel (%p371) target = $region24
      $region23: #{forward_batched.1} parent=11 // pred_region
        _
      $region24: #{forward_batched.1} parent=11 // pred_fallthru
        _
      // Predicated region
      $region25: #{forward_batched.1} parent=11 // pred_check
        %p374 = pneg %p156
      $region26: #{forward_batched.1} parent=11 // pred_check_branch
        %376 = sbr.rel (%p374) target = $region28
      $region27: #{forward_batched.1} parent=11 // pred_region
        _
      $region28: #{forward_batched.1} parent=11 // pred_fallthru
        _
      // Predicated region
      $region29: #{forward_batched.1} parent=11 // pred_check
        %p377 = pneg %p177
      $region30: #{forward_batched.1} parent=11 // pred_check_branch
        %379 = sbr.rel (%p377) target = $region32
      $region31: #{forward_batched.1} parent=11 // pred_region
        _
      $region32: #{forward_batched.1} parent=11 // pred_fallthru
        _
      // Predicated region
      $region33: #{forward_batched.1} parent=11 // pred_check
        %p380 = pneg %p198
      $region34: #{forward_batched.1} parent=11 // pred_check_branch
        %382 = sbr.rel (%p380) target = $region36
      $region35: #{forward_batched.1} parent=11 // pred_region
        _
      $region36: #{forward_batched.1} parent=11 // pred_fallthru
        _
      // Predicated region
      $region37: #{forward_batched.1} parent=11 // pred_check
        %p383 = pneg %p219
      $region38: #{forward_batched.1} parent=11 // pred_check_branch
        %385 = sbr.rel (%p383) target = $region40
      $region39: #{forward_batched.1} parent=11 // pred_region
        _
      $region40: #{forward_batched.1} parent=11 // pred_fallthru
        _
      // Predicated region
      $region41: #{forward_batched.1} parent=11 // pred_check
        %p386 = pneg %p240
      $region42: #{forward_batched.1} parent=11 // pred_check_branch
        %388 = sbr.rel (%p386) target = $region44
      $region43: #{forward_batched.1} parent=11 // pred_region
        _
      $region44: #{forward_batched.1} parent=11 // pred_fallthru
        _
      // Predicated region
      $region45: #{forward_batched.1} parent=11 // pred_check
        %p389 = pneg %p261
      $region46: #{forward_batched.1} parent=11 // pred_check_branch
        %391 = sbr.rel (%p389) target = $region48
      $region47: #{forward_batched.1} parent=11 // pred_region
        _
      $region48: #{forward_batched.1} parent=11 // pred_fallthru
        _
      // Predicated region
      $region49: #{forward_batched.1} parent=11 // pred_check
        %p392 = pneg %p282
      $region50: #{forward_batched.1} parent=11 // pred_check_branch
        %394 = sbr.rel (%p392) target = $region52
      $region51: #{forward_batched.1} parent=11 // pred_region
        _
      $region52: #{forward_batched.1} parent=11 // pred_fallthru
        _
      // Predicated region
      $region53: #{forward_batched.1} parent=11 // pred_check
        %p395 = pneg %p303
      $region54: #{forward_batched.1} parent=11 // pred_check_branch
        %397 = sbr.rel (%p395) target = $region56
      $region55: #{forward_batched.1} parent=11 // pred_region
        _
      $region56: #{forward_batched.1} parent=11 // pred_fallthru
        _
      // Predicated region
      $region57: #{forward_batched.1} parent=11 // pred_check
        %p398 = pneg %p324
      $region58: #{forward_batched.1} parent=11 // pred_check_branch
        %400 = sbr.rel (%p398) target = $region60
      $region59: #{forward_batched.1} parent=11 // pred_region
        _
      $region60: #{forward_batched.1} parent=11 // pred_fallthru
        _
    $region12: #{forward_batched.1} parent=5 // pred_fallthru
      _
    %p401 = scmp.lt.s32.totalorder %s20, 2
    // Predicated region
    $region61: #{forward_batched.1} parent=5 // pred_check
      %p402 = pneg %p401
    $region62: #{forward_batched.1} parent=5 // pred_check_branch
      %404 = sbr.rel (%p402) target = $region64
    $region63: #{forward_batched.1} parent=5 // pred_region
      // Predicated region
      $region65: #{forward_batched.1} parent=63 // pred_check
        %p405 = pneg %p40
      $region66: #{forward_batched.1} parent=63 // pred_check_branch
        %407 = sbr.rel (%p405) target = $region68
      $region67: #{forward_batched.1} parent=63 // pred_region
        %s408 = smul.u32 16, %s20
        %p409 = scmp.lt.s32.totalorder %s408, 31
        %s410 = scalar_select %p409, %s408, 31
        %s411 = smul.addr %s410, 4
        %s412 = smul.addr %s411, 4
        %s413 = scalar_lea.vmem %s0, %s412
        %s414 = smul.u32 16, %s20
      $region68: #{forward_batched.1} parent=63 // pred_fallthru
        _
      // Predicated region
      $region69: #{forward_batched.1} parent=63 // pred_check
        %p415 = pneg %p66
      $region70: #{forward_batched.1} parent=63 // pred_check_branch
        %417 = sbr.rel (%p415) target = $region72
      $region71: #{forward_batched.1} parent=63 // pred_region
        %s418 = smul.u32 16, %s20
        %p419 = scmp.lt.s32.totalorder %s418, 31
        %s420 = scalar_select %p419, %s418, 31
        %s421 = smul.addr %s420, 8
        %s422 = scalar_lea.vmem %s1, %s421
        %s423 = smul.u32 16, %s20
      $region72: #{forward_batched.1} parent=63 // pred_fallthru
        _
    $region64: #{forward_batched.1} parent=5 // pred_fallthru
      _
    %p424 = scmp.le.s32.totalorder 1, %s20
    %p425 = scmp.lt.s32.totalorder %s20, 3
    %p426 = pnand %p424, %p425
    %p427 = pneg %p426
    // Predicated region
    $region73: #{forward_batched.1} parent=5 // pred_check
      _
    $region74: #{forward_batched.1} parent=5 // pred_check_branch
      %429 = sbr.rel (%p426) target = $region76
    $region75: #{forward_batched.1} parent=5 // pred_region
      %s430 = ssub.s32 %s20, 1
      %s431 = smul.u32 16, %s25
      %p432 = scmp.lt.s32.totalorder %s431, 31
      %s433 = scalar_select %p432, %s431, 31
      %s434 = smul.addr %s433, 4
      %s435 = smul.addr %s434, 4
      %s436 = scalar_lea.vmem %s0, %s435
      %p437 = pneg %p46
      %p438 = pneg %p43
      %s439 = smul.u32 16, %s25
      %p440 = scmp.lt.s32.totalorder %s439, 31
      %s441 = scalar_select %p440, %s439, 31
      %s442 = smul.addr %s441, 8
      %s443 = scalar_lea.vmem %s1, %s442
      %p444 = pneg %p72
      %p445 = pneg %p69
      %p446 = pneg %p93
      %p447 = pneg %p90
      %p448 = pneg %p114
      %p449 = pneg %p111
      %p450 = pneg %p135
      %p451 = pneg %p132
      %p452 = pneg %p156
      %p453 = pneg %p153
      %p454 = pneg %p177
      %p455 = pneg %p174
      %p456 = pneg %p198
      %p457 = pneg %p195
      %p458 = pneg %p219
      %p459 = pneg %p216
      %p460 = pneg %p240
      %p461 = pneg %p237
      %p462 = pneg %p261
      %p463 = pneg %p258
      %p464 = pneg %p282
      %p465 = pneg %p279
      %p466 = pneg %p303
      %p467 = pneg %p300
      %p468 = pneg %p324
      %p469 = pneg %p321
      %p470 = pneg %p350
      %p471 = pneg %p347
      %s472 = smul.u32 16, %s25
      %p473 = scmp.lt.s32.totalorder %s472, 31
      %s474 = scalar_select %p473, %s472, 31
      %s475 = smul.addr %s474, 8
      %s476 = scalar_lea.vmem %s14, %s475
      %s477 = smul.u32 16, %s25
      %p478 = scmp.lt.s32.totalorder %s477, 31
      %s479 = scalar_select %p478, %s477, 31
      %s480 = smul.addr %s479, 4
      %s481 = smul.addr %s480, 4
      %s482 = scalar_lea.vmem %s0, %s481
      %s483 = smul.u32 16, %s25
      %s484 = smul.u32 16, %s25
      %p485 = scmp.lt.s32.totalorder %s484, 31
      %s486 = scalar_select %p485, %s484, 31
      %s487 = smul.addr %s486, 8
      %s488 = scalar_lea.vmem %s1, %s487
      %s489 = smul.u32 16, %s25
      %s490 = smul.u32 16, %s25
      %p491 = scmp.lt.s32.totalorder %s490, 31
      %s492 = scalar_select %p491, %s490, 31
      %s493 = smul.addr %s492, 8
      %s494 = scalar_lea.vmem %s14, %s493
      %s495 = smul.u32 16, %s25
      %v497 = vld [vmem:[%s482] sm:$0xff]
      %v498 = vld [vmem:[%s482 + $0x8] sm:$0xff]
      %v499 = vld [vmem:[%s482 + $0x10] sm:$0xff]
      %v500 = vld [vmem:[%s482 + $0x18] sm:$0xff]
      %v501 = vld [vmem:[%s482 + $0x20] sm:$0xff]
      %v502 = vld [vmem:[%s482 + $0x28] sm:$0xff]
      %v503 = vld [vmem:[%s482 + $0x30] sm:$0xff]
      %v504 = vld [vmem:[%s482 + $0x38] sm:$0xff]
      %v505 = vld [vmem:[%s482 + $0x40] sm:$0xff]
      %v506 = vld [vmem:[%s482 + $0x48] sm:$0xff]
      %v507 = vld [vmem:[%s482 + $0x50] sm:$0xff]
      %v508 = vld [vmem:[%s482 + $0x58] sm:$0xff]
      %v509 = vld [vmem:[%s482 + $0x60] sm:$0xff]
      %v510 = vld [vmem:[%s482 + $0x68] sm:$0xff]
      %v511 = vld [vmem:[%s482 + $0x70] sm:$0xff]
      %v512 = vld [vmem:[%s482 + $0x78] sm:$0xff]
      %v513 = vld [vmem:[%s482 + $0x80] sm:$0xff]
      %v514 = vld [vmem:[%s482 + $0x88] sm:$0xff]
      %v515 = vld [vmem:[%s482 + $0x90] sm:$0xff]
      %v516 = vld [vmem:[%s482 + $0x98] sm:$0xff]
      %v517 = vld [vmem:[%s482 + $0xa0] sm:$0xff]
      %v518 = vld [vmem:[%s482 + $0xa8] sm:$0xff]
      %v519 = vld [vmem:[%s482 + $0xb0] sm:$0xff]
      %v520 = vld [vmem:[%s482 + $0xb8] sm:$0xff]
      %v521 = vld [vmem:[%s482 + $0xc0] sm:$0xff]
      %v522 = vld [vmem:[%s482 + $0xc8] sm:$0xff]
      %v523 = vld [vmem:[%s482 + $0xd0] sm:$0xff]
      %v524 = vld [vmem:[%s482 + $0xd8] sm:$0xff]
      %v525 = vld [vmem:[%s482 + $0xe0] sm:$0xff]
      %v526 = vld [vmem:[%s482 + $0xe8] sm:$0xff]
      %v527 = vld [vmem:[%s482 + $0xf0] sm:$0xff]
      %v528 = vld [vmem:[%s482 + $0xf8] sm:$0xff]
      %v529 = vld [vmem:[%s488] sm:$0xff]
      %v530 = vld [vmem:[%s488 + $0x8] sm:$0xff]
      %v531 = vld [vmem:[%s488 + $0x10] sm:$0xff]
      %v532 = vld [vmem:[%s488 + $0x18] sm:$0xff]
      %v533 = vld [vmem:[%s488 + $0x20] sm:$0xff]
      %v534 = vld [vmem:[%s488 + $0x28] sm:$0xff]
      %v535 = vld [vmem:[%s488 + $0x30] sm:$0xff]
      %v536 = vld [vmem:[%s488 + $0x38] sm:$0xff]
      %v537 = vld [vmem:[%s488 + $0x40] sm:$0xff]
      %v538 = vld [vmem:[%s488 + $0x48] sm:$0xff]
      %v539 = vld [vmem:[%s488 + $0x50] sm:$0xff]
      %v540 = vld [vmem:[%s488 + $0x58] sm:$0xff]
      %v541 = vld [vmem:[%s488 + $0x60] sm:$0xff]
      %v542 = vld [vmem:[%s488 + $0x68] sm:$0xff]
      %v543 = vld [vmem:[%s488 + $0x70] sm:$0xff]
      %v544 = vld [vmem:[%s488 + $0x78] sm:$0xff]
      %v545 = vld [vmem:[%s2] sm:$0xff]
      %v546 = vld [vmem:[%s2 + $0x8] sm:$0xff]
      %v547 = vld [vmem:[%s2 + $0x10] sm:$0xff]
      %v548 = vld [vmem:[%s2 + $0x18] sm:$0xff]
      %v549 = vld [vmem:[%s2 + $0x20] sm:$0xff]
      %v550 = vld [vmem:[%s2 + $0x28] sm:$0xff]
      %v551 = vld [vmem:[%s2 + $0x30] sm:$0xff]
      %v552 = vld [vmem:[%s2 + $0x38] sm:$0xff]
      %v553 = vld [vmem:[%s2 + $0x40] sm:$0xff]
      %v554 = vld [vmem:[%s2 + $0x48] sm:$0xff]
      %v555 = vld [vmem:[%s2 + $0x50] sm:$0xff]
      %v556 = vld [vmem:[%s2 + $0x58] sm:$0xff]
      %v557 = vld [vmem:[%s2 + $0x60] sm:$0xff]
      %v558 = vld [vmem:[%s2 + $0x68] sm:$0xff]
      %v559 = vld [vmem:[%s2 + $0x70] sm:$0xff]
      %v560 = vld [vmem:[%s2 + $0x78] sm:$0xff]
      %v561 = vld [vmem:[%s2 + $0x80] sm:$0xff]
      %v562 = vld [vmem:[%s2 + $0x88] sm:$0xff]
      %v563 = vld [vmem:[%s2 + $0x90] sm:$0xff]
      %v564 = vld [vmem:[%s2 + $0x98] sm:$0xff]
      %v565 = vld [vmem:[%s2 + $0xa0] sm:$0xff]
      %v566 = vld [vmem:[%s2 + $0xa8] sm:$0xff]
      %v567 = vld [vmem:[%s2 + $0xb0] sm:$0xff]
      %v568 = vld [vmem:[%s2 + $0xb8] sm:$0xff]
      %v569 = vld [vmem:[%s2 + $0xc0] sm:$0xff]
      %v570 = vld [vmem:[%s2 + $0xc8] sm:$0xff]
      %v571 = vld [vmem:[%s2 + $0xd0] sm:$0xff]
      %v572 = vld [vmem:[%s2 + $0xd8] sm:$0xff]
      %v573 = vld [vmem:[%s2 + $0xe0] sm:$0xff]
      %v574 = vld [vmem:[%s2 + $0xe8] sm:$0xff]
      %v575 = vld [vmem:[%s2 + $0xf0] sm:$0xff]
      %v576 = vld [vmem:[%s2 + $0xf8] sm:$0xff]
      %v577 = vld [vmem:[%s2 + $0x100] sm:$0xff]
      %v578 = vld [vmem:[%s2 + $0x108] sm:$0xff]
      %v579 = vld [vmem:[%s2 + $0x110] sm:$0xff]
      %v580 = vld [vmem:[%s2 + $0x118] sm:$0xff]
      %v581 = vld [vmem:[%s2 + $0x120] sm:$0xff]
      %v582 = vld [vmem:[%s2 + $0x128] sm:$0xff]
      %v583 = vld [vmem:[%s2 + $0x130] sm:$0xff]
      %v584 = vld [vmem:[%s2 + $0x138] sm:$0xff]
      %v585 = vld [vmem:[%s2 + $0x140] sm:$0xff]
      %v586 = vld [vmem:[%s2 + $0x148] sm:$0xff]
      %v587 = vld [vmem:[%s2 + $0x150] sm:$0xff]
      %v588 = vld [vmem:[%s2 + $0x158] sm:$0xff]
      %v589 = vld [vmem:[%s2 + $0x160] sm:$0xff]
      %v590 = vld [vmem:[%s2 + $0x168] sm:$0xff]
      %v591 = vld [vmem:[%s2 + $0x170] sm:$0xff]
      %v592 = vld [vmem:[%s2 + $0x178] sm:$0xff]
      %v593 = vld [vmem:[%s2 + $0x180] sm:$0xff]
      %v594 = vld [vmem:[%s2 + $0x188] sm:$0xff]
      %v595 = vld [vmem:[%s2 + $0x190] sm:$0xff]
      %v596 = vld [vmem:[%s2 + $0x198] sm:$0xff]
      %v597 = vld [vmem:[%s2 + $0x1a0] sm:$0xff]
      %v598 = vld [vmem:[%s2 + $0x1a8] sm:$0xff]
      %v599 = vld [vmem:[%s2 + $0x1b0] sm:$0xff]
      %v600 = vld [vmem:[%s2 + $0x1b8] sm:$0xff]
      %v601 = vld [vmem:[%s2 + $0x1c0] sm:$0xff]
      %v602 = vld [vmem:[%s2 + $0x1c8] sm:$0xff]
      %v603 = vld [vmem:[%s2 + $0x1d0] sm:$0xff]
      %v604 = vld [vmem:[%s2 + $0x1d8] sm:$0xff]
      %v605 = vld [vmem:[%s2 + $0x1e0] sm:$0xff]
      %v606 = vld [vmem:[%s2 + $0x1e8] sm:$0xff]
      %v607 = vld [vmem:[%s2 + $0x1f0] sm:$0xff]
      %v608 = vld [vmem:[%s2 + $0x1f8] sm:$0xff]
      %v609 = vld [vmem:[%s2 + $0x200] sm:$0xff]
      %v610 = vld [vmem:[%s2 + $0x208] sm:$0xff]
      %v611 = vld [vmem:[%s2 + $0x210] sm:$0xff]
      %v612 = vld [vmem:[%s2 + $0x218] sm:$0xff]
      %v613 = vld [vmem:[%s2 + $0x220] sm:$0xff]
      %v614 = vld [vmem:[%s2 + $0x228] sm:$0xff]
      %v615 = vld [vmem:[%s2 + $0x230] sm:$0xff]
      %v616 = vld [vmem:[%s2 + $0x238] sm:$0xff]
      %v617 = vld [vmem:[%s2 + $0x240] sm:$0xff]
      %v618 = vld [vmem:[%s2 + $0x248] sm:$0xff]
      %v619 = vld [vmem:[%s2 + $0x250] sm:$0xff]
      %v620 = vld [vmem:[%s2 + $0x258] sm:$0xff]
      %v621 = vld [vmem:[%s2 + $0x260] sm:$0xff]
      %v622 = vld [vmem:[%s2 + $0x268] sm:$0xff]
      %v623 = vld [vmem:[%s2 + $0x270] sm:$0xff]
      %v624 = vld [vmem:[%s2 + $0x278] sm:$0xff]
      %v625 = vld [vmem:[%s2 + $0x280] sm:$0xff]
      %v626 = vld [vmem:[%s2 + $0x288] sm:$0xff]
      %v627 = vld [vmem:[%s2 + $0x290] sm:$0xff]
      %v628 = vld [vmem:[%s2 + $0x298] sm:$0xff]
      %v629 = vld [vmem:[%s2 + $0x2a0] sm:$0xff]
      %v630 = vld [vmem:[%s2 + $0x2a8] sm:$0xff]
      %v631 = vld [vmem:[%s2 + $0x2b0] sm:$0xff]
      %v632 = vld [vmem:[%s2 + $0x2b8] sm:$0xff]
      %v633 = vld [vmem:[%s2 + $0x2c0] sm:$0xff]
      %v634 = vld [vmem:[%s2 + $0x2c8] sm:$0xff]
      %v635 = vld [vmem:[%s2 + $0x2d0] sm:$0xff]
      %v636 = vld [vmem:[%s2 + $0x2d8] sm:$0xff]
      %v637 = vld [vmem:[%s2 + $0x2e0] sm:$0xff]
      %v638 = vld [vmem:[%s2 + $0x2e8] sm:$0xff]
      %v639 = vld [vmem:[%s2 + $0x2f0] sm:$0xff]
      %v640 = vld [vmem:[%s2 + $0x2f8] sm:$0xff]
      %v641 = vld [vmem:[%s2 + $0x300] sm:$0xff]
      %v642 = vld [vmem:[%s2 + $0x308] sm:$0xff]
      %v643 = vld [vmem:[%s2 + $0x310] sm:$0xff]
      %v644 = vld [vmem:[%s2 + $0x318] sm:$0xff]
      %v645 = vld [vmem:[%s2 + $0x320] sm:$0xff]
      %v646 = vld [vmem:[%s2 + $0x328] sm:$0xff]
      %v647 = vld [vmem:[%s2 + $0x330] sm:$0xff]
      %v648 = vld [vmem:[%s2 + $0x338] sm:$0xff]
      %v649 = vld [vmem:[%s2 + $0x340] sm:$0xff]
      %v650 = vld [vmem:[%s2 + $0x348] sm:$0xff]
      %v651 = vld [vmem:[%s2 + $0x350] sm:$0xff]
      %v652 = vld [vmem:[%s2 + $0x358] sm:$0xff]
      %v653 = vld [vmem:[%s2 + $0x360] sm:$0xff]
      %v654 = vld [vmem:[%s2 + $0x368] sm:$0xff]
      %v655 = vld [vmem:[%s2 + $0x370] sm:$0xff]
      %v656 = vld [vmem:[%s2 + $0x378] sm:$0xff]
      %v657 = vld [vmem:[%s2 + $0x380] sm:$0xff]
      %v658 = vld [vmem:[%s2 + $0x388] sm:$0xff]
      %v659 = vld [vmem:[%s2 + $0x390] sm:$0xff]
      %v660 = vld [vmem:[%s2 + $0x398] sm:$0xff]
      %v661 = vld [vmem:[%s2 + $0x3a0] sm:$0xff]
      %v662 = vld [vmem:[%s2 + $0x3a8] sm:$0xff]
      %v663 = vld [vmem:[%s2 + $0x3b0] sm:$0xff]
      %v664 = vld [vmem:[%s2 + $0x3b8] sm:$0xff]
      %v665 = vld [vmem:[%s2 + $0x3c0] sm:$0xff]
      %v666 = vld [vmem:[%s2 + $0x3c8] sm:$0xff]
      %v667 = vld [vmem:[%s2 + $0x3d0] sm:$0xff]
      %v668 = vld [vmem:[%s2 + $0x3d8] sm:$0xff]
      %v669 = vld [vmem:[%s2 + $0x3e0] sm:$0xff]
      %v670 = vld [vmem:[%s2 + $0x3e8] sm:$0xff]
      %v671 = vld [vmem:[%s2 + $0x3f0] sm:$0xff]
      %v672 = vld [vmem:[%s2 + $0x3f8] sm:$0xff]
      %v705 = vunpack.c.l.b16 %v497
      %v706 = vunpack.c.h.b16 %v497
      %v707 = vunpack.c.l.b16 %v498
      %v708 = vunpack.c.h.b16 %v498
      %v709 = vunpack.c.l.b16 %v499
      %v710 = vunpack.c.h.b16 %v499
      %v711 = vunpack.c.l.b16 %v500
      %v712 = vunpack.c.h.b16 %v500
      %v713 = vunpack.c.l.b16 %v501
      %v714 = vunpack.c.h.b16 %v501
      %v715 = vunpack.c.l.b16 %v502
      %v716 = vunpack.c.h.b16 %v502
      %v717 = vunpack.c.l.b16 %v503
      %v718 = vunpack.c.h.b16 %v503
      %v719 = vunpack.c.l.b16 %v504
      %v720 = vunpack.c.h.b16 %v504
      %v721 = vunpack.c.l.b16 %v505
      %v722 = vunpack.c.h.b16 %v505
      %v723 = vunpack.c.l.b16 %v506
      %v724 = vunpack.c.h.b16 %v506
      %v725 = vunpack.c.l.b16 %v507
      %v726 = vunpack.c.h.b16 %v507
      %v727 = vunpack.c.l.b16 %v508
      %v728 = vunpack.c.h.b16 %v508
      %v729 = vunpack.c.l.b16 %v509
      %v730 = vunpack.c.h.b16 %v509
      %v731 = vunpack.c.l.b16 %v510
      %v732 = vunpack.c.h.b16 %v510
      %v733 = vunpack.c.l.b16 %v511
      %v734 = vunpack.c.h.b16 %v511
      %v735 = vunpack.c.l.b16 %v512
      %v736 = vunpack.c.h.b16 %v512
      %v737 = vunpack.c.l.b16 %v513
      %v738 = vunpack.c.h.b16 %v513
      %v739 = vunpack.c.l.b16 %v514
      %v740 = vunpack.c.h.b16 %v514
      %v741 = vunpack.c.l.b16 %v515
      %v742 = vunpack.c.h.b16 %v515
      %v743 = vunpack.c.l.b16 %v516
      %v744 = vunpack.c.h.b16 %v516
      %v745 = vunpack.c.l.b16 %v517
      %v746 = vunpack.c.h.b16 %v517
      %v747 = vunpack.c.l.b16 %v518
      %v748 = vunpack.c.h.b16 %v518
      %v749 = vunpack.c.l.b16 %v519
      %v750 = vunpack.c.h.b16 %v519
      %v751 = vunpack.c.l.b16 %v520
      %v752 = vunpack.c.h.b16 %v520
      %v753 = vunpack.c.l.b16 %v521
      %v754 = vunpack.c.h.b16 %v521
      %v755 = vunpack.c.l.b16 %v522
      %v756 = vunpack.c.h.b16 %v522
      %v757 = vunpack.c.l.b16 %v523
      %v758 = vunpack.c.h.b16 %v523
      %v759 = vunpack.c.l.b16 %v524
      %v760 = vunpack.c.h.b16 %v524
      %v761 = vunpack.c.l.b16 %v525
      %v762 = vunpack.c.h.b16 %v525
      %v763 = vunpack.c.l.b16 %v526
      %v764 = vunpack.c.h.b16 %v526
      %v765 = vunpack.c.l.b16 %v527
      %v766 = vunpack.c.h.b16 %v527
      %v767 = vunpack.c.l.b16 %v528
      %v768 = vunpack.c.h.b16 %v528
      %v769 = vpack.c.b16 %v709, %v705
      %v770 = vpack.c.b16 %v710, %v706
      %v771 = vpack.c.b16 %v711, %v707
      %v772 = vpack.c.b16 %v712, %v708
      %v773 = vpack.c.b16 %v717, %v713
      %v774 = vpack.c.b16 %v718, %v714
      %v775 = vpack.c.b16 %v719, %v715
      %v776 = vpack.c.b16 %v720, %v716
      %v777 = vpack.c.b16 %v725, %v721
      %v778 = vpack.c.b16 %v726, %v722
      %v779 = vpack.c.b16 %v727, %v723
      %v780 = vpack.c.b16 %v728, %v724
      %v781 = vpack.c.b16 %v733, %v729
      %v782 = vpack.c.b16 %v734, %v730
      %v783 = vpack.c.b16 %v735, %v731
      %v784 = vpack.c.b16 %v736, %v732
      %v785 = vpack.c.b16 %v741, %v737
      %v786 = vpack.c.b16 %v742, %v738
      %v787 = vpack.c.b16 %v743, %v739
      %v788 = vpack.c.b16 %v744, %v740
      %v789 = vpack.c.b16 %v749, %v745
      %v790 = vpack.c.b16 %v750, %v746
      %v791 = vpack.c.b16 %v751, %v747
      %v792 = vpack.c.b16 %v752, %v748
      %v793 = vpack.c.b16 %v757, %v753
      %v794 = vpack.c.b16 %v758, %v754
      %v795 = vpack.c.b16 %v759, %v755
      %v796 = vpack.c.b16 %v760, %v756
      %v797 = vpack.c.b16 %v765, %v761
      %v798 = vpack.c.b16 %v766, %v762
      %v799 = vpack.c.b16 %v767, %v763
      %v800 = vpack.c.b16 %v768, %v764
      %v961 = vunpack.c.l.b16 %v545
      %v962 = vunpack.c.h.b16 %v545
      %v963 = vunpack.c.l.b16 %v546
      %v964 = vunpack.c.h.b16 %v546
      %v965 = vunpack.c.l.b16 %v547
      %v966 = vunpack.c.h.b16 %v547
      %v967 = vunpack.c.l.b16 %v548
      %v968 = vunpack.c.h.b16 %v548
      %v969 = vunpack.c.l.b16 %v549
      %v970 = vunpack.c.h.b16 %v549
      %v971 = vunpack.c.l.b16 %v550
      %v972 = vunpack.c.h.b16 %v550
      %v973 = vunpack.c.l.b16 %v551
      %v974 = vunpack.c.h.b16 %v551
      %v975 = vunpack.c.l.b16 %v552
      %v976 = vunpack.c.h.b16 %v552
      %v977 = vunpack.c.l.b16 %v553
      %v978 = vunpack.c.h.b16 %v553
      %v979 = vunpack.c.l.b16 %v554
      %v980 = vunpack.c.h.b16 %v554
      %v981 = vunpack.c.l.b16 %v555
      %v982 = vunpack.c.h.b16 %v555
      %v983 = vunpack.c.l.b16 %v556
      %v984 = vunpack.c.h.b16 %v556
      %v985 = vunpack.c.l.b16 %v557
      %v986 = vunpack.c.h.b16 %v557
      %v987 = vunpack.c.l.b16 %v558
      %v988 = vunpack.c.h.b16 %v558
      %v989 = vunpack.c.l.b16 %v559
      %v990 = vunpack.c.h.b16 %v559
      %v991 = vunpack.c.l.b16 %v560
      %v992 = vunpack.c.h.b16 %v560
      %v993 = vunpack.c.l.b16 %v561
      %v994 = vunpack.c.h.b16 %v561
      %v995 = vunpack.c.l.b16 %v562
      %v996 = vunpack.c.h.b16 %v562
      %v997 = vunpack.c.l.b16 %v563
      %v998 = vunpack.c.h.b16 %v563
      %v999 = vunpack.c.l.b16 %v564
      %v1000 = vunpack.c.h.b16 %v564
      %v1001 = vunpack.c.l.b16 %v565
      %v1002 = vunpack.c.h.b16 %v565
      %v1003 = vunpack.c.l.b16 %v566
      %v1004 = vunpack.c.h.b16 %v566
      %v1005 = vunpack.c.l.b16 %v567
      %v1006 = vunpack.c.h.b16 %v567
      %v1007 = vunpack.c.l.b16 %v568
      %v1008 = vunpack.c.h.b16 %v568
      %v1009 = vunpack.c.l.b16 %v569
      %v1010 = vunpack.c.h.b16 %v569
      %v1011 = vunpack.c.l.b16 %v570
      %v1012 = vunpack.c.h.b16 %v570
      %v1013 = vunpack.c.l.b16 %v571
      %v1014 = vunpack.c.h.b16 %v571
      %v1015 = vunpack.c.l.b16 %v572
      %v1016 = vunpack.c.h.b16 %v572
      %v1017 = vunpack.c.l.b16 %v573
      %v1018 = vunpack.c.h.b16 %v573
      %v1019 = vunpack.c.l.b16 %v574
      %v1020 = vunpack.c.h.b16 %v574
      %v1021 = vunpack.c.l.b16 %v575
      %v1022 = vunpack.c.h.b16 %v575
      %v1023 = vunpack.c.l.b16 %v576
      %v1024 = vunpack.c.h.b16 %v576
      %v1025 = vunpack.c.l.b16 %v577
      %v1026 = vunpack.c.h.b16 %v577
      %v1027 = vunpack.c.l.b16 %v578
      %v1028 = vunpack.c.h.b16 %v578
      %v1029 = vunpack.c.l.b16 %v579
      %v1030 = vunpack.c.h.b16 %v579
      %v1031 = vunpack.c.l.b16 %v580
      %v1032 = vunpack.c.h.b16 %v580
      %v1033 = vunpack.c.l.b16 %v581
      %v1034 = vunpack.c.h.b16 %v581
      %v1035 = vunpack.c.l.b16 %v582
      %v1036 = vunpack.c.h.b16 %v582
      %v1037 = vunpack.c.l.b16 %v583
      %v1038 = vunpack.c.h.b16 %v583
      %v1039 = vunpack.c.l.b16 %v584
      %v1040 = vunpack.c.h.b16 %v584
      %v1041 = vunpack.c.l.b16 %v585
      %v1042 = vunpack.c.h.b16 %v585
      %v1043 = vunpack.c.l.b16 %v586
      %v1044 = vunpack.c.h.b16 %v586
      %v1045 = vunpack.c.l.b16 %v587
      %v1046 = vunpack.c.h.b16 %v587
      %v1047 = vunpack.c.l.b16 %v588
      %v1048 = vunpack.c.h.b16 %v588
      %v1049 = vunpack.c.l.b16 %v589
      %v1050 = vunpack.c.h.b16 %v589
      %v1051 = vunpack.c.l.b16 %v590
      %v1052 = vunpack.c.h.b16 %v590
      %v1053 = vunpack.c.l.b16 %v591
      %v1054 = vunpack.c.h.b16 %v591
      %v1055 = vunpack.c.l.b16 %v592
      %v1056 = vunpack.c.h.b16 %v592
      %v1057 = vunpack.c.l.b16 %v593
      %v1058 = vunpack.c.h.b16 %v593
      %v1059 = vunpack.c.l.b16 %v594
      %v1060 = vunpack.c.h.b16 %v594
      %v1061 = vunpack.c.l.b16 %v595
      %v1062 = vunpack.c.h.b16 %v595
      %v1063 = vunpack.c.l.b16 %v596
      %v1064 = vunpack.c.h.b16 %v596
      %v1065 = vunpack.c.l.b16 %v597
      %v1066 = vunpack.c.h.b16 %v597
      %v1067 = vunpack.c.l.b16 %v598
      %v1068 = vunpack.c.h.b16 %v598
      %v1069 = vunpack.c.l.b16 %v599
      %v1070 = vunpack.c.h.b16 %v599
      %v1071 = vunpack.c.l.b16 %v600
      %v1072 = vunpack.c.h.b16 %v600
      %v1073 = vunpack.c.l.b16 %v601
      %v1074 = vunpack.c.h.b16 %v601
      %v1075 = vunpack.c.l.b16 %v602
      %v1076 = vunpack.c.h.b16 %v602
      %v1077 = vunpack.c.l.b16 %v603
      %v1078 = vunpack.c.h.b16 %v603
      %v1079 = vunpack.c.l.b16 %v604
      %v1080 = vunpack.c.h.b16 %v604
      %v1081 = vunpack.c.l.b16 %v605
      %v1082 = vunpack.c.h.b16 %v605
      %v1083 = vunpack.c.l.b16 %v606
      %v1084 = vunpack.c.h.b16 %v606
      %v1085 = vunpack.c.l.b16 %v607
      %v1086 = vunpack.c.h.b16 %v607
      %v1087 = vunpack.c.l.b16 %v608
      %v1088 = vunpack.c.h.b16 %v608
      %v1089 = vunpack.c.l.b16 %v609
      %v1090 = vunpack.c.h.b16 %v609
      %v1091 = vunpack.c.l.b16 %v610
      %v1092 = vunpack.c.h.b16 %v610
      %v1093 = vunpack.c.l.b16 %v611
      %v1094 = vunpack.c.h.b16 %v611
      %v1095 = vunpack.c.l.b16 %v612
      %v1096 = vunpack.c.h.b16 %v612
      %v1097 = vunpack.c.l.b16 %v613
      %v1098 = vunpack.c.h.b16 %v613
      %v1099 = vunpack.c.l.b16 %v614
      %v1100 = vunpack.c.h.b16 %v614
      %v1101 = vunpack.c.l.b16 %v615
      %v1102 = vunpack.c.h.b16 %v615
      %v1103 = vunpack.c.l.b16 %v616
      %v1104 = vunpack.c.h.b16 %v616
      %v1105 = vunpack.c.l.b16 %v617
      %v1106 = vunpack.c.h.b16 %v617
      %v1107 = vunpack.c.l.b16 %v618
      %v1108 = vunpack.c.h.b16 %v618
      %v1109 = vunpack.c.l.b16 %v619
      %v1110 = vunpack.c.h.b16 %v619
      %v1111 = vunpack.c.l.b16 %v620
      %v1112 = vunpack.c.h.b16 %v620
      %v1113 = vunpack.c.l.b16 %v621
      %v1114 = vunpack.c.h.b16 %v621
      %v1115 = vunpack.c.l.b16 %v622
      %v1116 = vunpack.c.h.b16 %v622
      %v1117 = vunpack.c.l.b16 %v623
      %v1118 = vunpack.c.h.b16 %v623
      %v1119 = vunpack.c.l.b16 %v624
      %v1120 = vunpack.c.h.b16 %v624
      %v1121 = vunpack.c.l.b16 %v625
      %v1122 = vunpack.c.h.b16 %v625
      %v1123 = vunpack.c.l.b16 %v626
      %v1124 = vunpack.c.h.b16 %v626
      %v1125 = vunpack.c.l.b16 %v627
      %v1126 = vunpack.c.h.b16 %v627
      %v1127 = vunpack.c.l.b16 %v628
      %v1128 = vunpack.c.h.b16 %v628
      %v1129 = vunpack.c.l.b16 %v629
      %v1130 = vunpack.c.h.b16 %v629
      %v1131 = vunpack.c.l.b16 %v630
      %v1132 = vunpack.c.h.b16 %v630
      %v1133 = vunpack.c.l.b16 %v631
      %v1134 = vunpack.c.h.b16 %v631
      %v1135 = vunpack.c.l.b16 %v632
      %v1136 = vunpack.c.h.b16 %v632
      %v1137 = vunpack.c.l.b16 %v633
      %v1138 = vunpack.c.h.b16 %v633
      %v1139 = vunpack.c.l.b16 %v634
      %v1140 = vunpack.c.h.b16 %v634
      %v1141 = vunpack.c.l.b16 %v635
      %v1142 = vunpack.c.h.b16 %v635
      %v1143 = vunpack.c.l.b16 %v636
      %v1144 = vunpack.c.h.b16 %v636
      %v1145 = vunpack.c.l.b16 %v637
      %v1146 = vunpack.c.h.b16 %v637
      %v1147 = vunpack.c.l.b16 %v638
      %v1148 = vunpack.c.h.b16 %v638
      %v1149 = vunpack.c.l.b16 %v639
      %v1150 = vunpack.c.h.b16 %v639
      %v1151 = vunpack.c.l.b16 %v640
      %v1152 = vunpack.c.h.b16 %v640
      %v1153 = vunpack.c.l.b16 %v641
      %v1154 = vunpack.c.h.b16 %v641
      %v1155 = vunpack.c.l.b16 %v642
      %v1156 = vunpack.c.h.b16 %v642
      %v1157 = vunpack.c.l.b16 %v643
      %v1158 = vunpack.c.h.b16 %v643
      %v1159 = vunpack.c.l.b16 %v644
      %v1160 = vunpack.c.h.b16 %v644
      %v1161 = vunpack.c.l.b16 %v645
      %v1162 = vunpack.c.h.b16 %v645
      %v1163 = vunpack.c.l.b16 %v646
      %v1164 = vunpack.c.h.b16 %v646
      %v1165 = vunpack.c.l.b16 %v647
      %v1166 = vunpack.c.h.b16 %v647
      %v1167 = vunpack.c.l.b16 %v648
      %v1168 = vunpack.c.h.b16 %v648
      %v1169 = vunpack.c.l.b16 %v649
      %v1170 = vunpack.c.h.b16 %v649
      %v1171 = vunpack.c.l.b16 %v650
      %v1172 = vunpack.c.h.b16 %v650
      %v1173 = vunpack.c.l.b16 %v651
      %v1174 = vunpack.c.h.b16 %v651
      %v1175 = vunpack.c.l.b16 %v652
      %v1176 = vunpack.c.h.b16 %v652
      %v1177 = vunpack.c.l.b16 %v653
      %v1178 = vunpack.c.h.b16 %v653
      %v1179 = vunpack.c.l.b16 %v654
      %v1180 = vunpack.c.h.b16 %v654
      %v1181 = vunpack.c.l.b16 %v655
      %v1182 = vunpack.c.h.b16 %v655
      %v1183 = vunpack.c.l.b16 %v656
      %v1184 = vunpack.c.h.b16 %v656
      %v1185 = vunpack.c.l.b16 %v657
      %v1186 = vunpack.c.h.b16 %v657
      %v1187 = vunpack.c.l.b16 %v658
      %v1188 = vunpack.c.h.b16 %v658
      %v1189 = vunpack.c.l.b16 %v659
      %v1190 = vunpack.c.h.b16 %v659
      %v1191 = vunpack.c.l.b16 %v660
      %v1192 = vunpack.c.h.b16 %v660
      %v1193 = vunpack.c.l.b16 %v661
      %v1194 = vunpack.c.h.b16 %v661
      %v1195 = vunpack.c.l.b16 %v662
      %v1196 = vunpack.c.h.b16 %v662
      %v1197 = vunpack.c.l.b16 %v663
      %v1198 = vunpack.c.h.b16 %v663
      %v1199 = vunpack.c.l.b16 %v664
      %v1200 = vunpack.c.h.b16 %v664
      %v1201 = vunpack.c.l.b16 %v665
      %v1202 = vunpack.c.h.b16 %v665
      %v1203 = vunpack.c.l.b16 %v666
      %v1204 = vunpack.c.h.b16 %v666
      %v1205 = vunpack.c.l.b16 %v667
      %v1206 = vunpack.c.h.b16 %v667
      %v1207 = vunpack.c.l.b16 %v668
      %v1208 = vunpack.c.h.b16 %v668
      %v1209 = vunpack.c.l.b16 %v669
      %v1210 = vunpack.c.h.b16 %v669
      %v1211 = vunpack.c.l.b16 %v670
      %v1212 = vunpack.c.h.b16 %v670
      %v1213 = vunpack.c.l.b16 %v671
      %v1214 = vunpack.c.h.b16 %v671
      %v1215 = vunpack.c.l.b16 %v672
      %v1216 = vunpack.c.h.b16 %v672
      %v1217 = vpack.c.b16 %v965, %v961
      %v1218 = vpack.c.b16 %v966, %v962
      %v1219 = vpack.c.b16 %v967, %v963
      %v1220 = vpack.c.b16 %v968, %v964
      %v1221 = vpack.c.b16 %v973, %v969
      %v1222 = vpack.c.b16 %v974, %v970
      %v1223 = vpack.c.b16 %v975, %v971
      %v1224 = vpack.c.b16 %v976, %v972
      %v1225 = vpack.c.b16 %v981, %v977
      %v1226 = vpack.c.b16 %v982, %v978
      %v1227 = vpack.c.b16 %v983, %v979
      %v1228 = vpack.c.b16 %v984, %v980
      %v1229 = vpack.c.b16 %v989, %v985
      %v1230 = vpack.c.b16 %v990, %v986
      %v1231 = vpack.c.b16 %v991, %v987
      %v1232 = vpack.c.b16 %v992, %v988
      %v1233 = vpack.c.b16 %v997, %v993
      %v1234 = vpack.c.b16 %v998, %v994
      %v1235 = vpack.c.b16 %v999, %v995
      %v1236 = vpack.c.b16 %v1000, %v996
      %v1237 = vpack.c.b16 %v1005, %v1001
      %v1238 = vpack.c.b16 %v1006, %v1002
      %v1239 = vpack.c.b16 %v1007, %v1003
      %v1240 = vpack.c.b16 %v1008, %v1004
      %v1241 = vpack.c.b16 %v1013, %v1009
      %v1242 = vpack.c.b16 %v1014, %v1010
      %v1243 = vpack.c.b16 %v1015, %v1011
      %v1244 = vpack.c.b16 %v1016, %v1012
      %v1245 = vpack.c.b16 %v1021, %v1017
      %v1246 = vpack.c.b16 %v1022, %v1018
      %v1247 = vpack.c.b16 %v1023, %v1019
      %v1248 = vpack.c.b16 %v1024, %v1020
      %v1249 = vpack.c.b16 %v1029, %v1025
      %v1250 = vpack.c.b16 %v1030, %v1026
      %v1251 = vpack.c.b16 %v1031, %v1027
      %v1252 = vpack.c.b16 %v1032, %v1028
      %v1253 = vpack.c.b16 %v1037, %v1033
      %v1254 = vpack.c.b16 %v1038, %v1034
      %v1255 = vpack.c.b16 %v1039, %v1035
      %v1256 = vpack.c.b16 %v1040, %v1036
      %v1257 = vpack.c.b16 %v1045, %v1041
      %v1258 = vpack.c.b16 %v1046, %v1042
      %v1259 = vpack.c.b16 %v1047, %v1043
      %v1260 = vpack.c.b16 %v1048, %v1044
      %v1261 = vpack.c.b16 %v1053, %v1049
      %v1262 = vpack.c.b16 %v1054, %v1050
      %v1263 = vpack.c.b16 %v1055, %v1051
      %v1264 = vpack.c.b16 %v1056, %v1052
      %v1265 = vpack.c.b16 %v1061, %v1057
      %v1266 = vpack.c.b16 %v1062, %v1058
      %v1267 = vpack.c.b16 %v1063, %v1059
      %v1268 = vpack.c.b16 %v1064, %v1060
      %v1269 = vpack.c.b16 %v1069, %v1065
      %v1270 = vpack.c.b16 %v1070, %v1066
      %v1271 = vpack.c.b16 %v1071, %v1067
      %v1272 = vpack.c.b16 %v1072, %v1068
      %v1273 = vpack.c.b16 %v1077, %v1073
      %v1274 = vpack.c.b16 %v1078, %v1074
      %v1275 = vpack.c.b16 %v1079, %v1075
      %v1276 = vpack.c.b16 %v1080, %v1076
      %v1277 = vpack.c.b16 %v1085, %v1081
      %v1278 = vpack.c.b16 %v1086, %v1082
      %v1279 = vpack.c.b16 %v1087, %v1083
      %v1280 = vpack.c.b16 %v1088, %v1084
      %v1281 = vpack.c.b16 %v1093, %v1089
      %v1282 = vpack.c.b16 %v1094, %v1090
      %v1283 = vpack.c.b16 %v1095, %v1091
      %v1284 = vpack.c.b16 %v1096, %v1092
      %v1285 = vpack.c.b16 %v1101, %v1097
      %v1286 = vpack.c.b16 %v1102, %v1098
      %v1287 = vpack.c.b16 %v1103, %v1099
      %v1288 = vpack.c.b16 %v1104, %v1100
      %v1289 = vpack.c.b16 %v1109, %v1105
      %v1290 = vpack.c.b16 %v1110, %v1106
      %v1291 = vpack.c.b16 %v1111, %v1107
      %v1292 = vpack.c.b16 %v1112, %v1108
      %v1293 = vpack.c.b16 %v1117, %v1113
      %v1294 = vpack.c.b16 %v1118, %v1114
      %v1295 = vpack.c.b16 %v1119, %v1115
      %v1296 = vpack.c.b16 %v1120, %v1116
      %v1297 = vpack.c.b16 %v1125, %v1121
      %v1298 = vpack.c.b16 %v1126, %v1122
      %v1299 = vpack.c.b16 %v1127, %v1123
      %v1300 = vpack.c.b16 %v1128, %v1124
      %v1301 = vpack.c.b16 %v1133, %v1129
      %v1302 = vpack.c.b16 %v1134, %v1130
      %v1303 = vpack.c.b16 %v1135, %v1131
      %v1304 = vpack.c.b16 %v1136, %v1132
      %v1305 = vpack.c.b16 %v1141, %v1137
      %v1306 = vpack.c.b16 %v1142, %v1138
      %v1307 = vpack.c.b16 %v1143, %v1139
      %v1308 = vpack.c.b16 %v1144, %v1140
      %v1309 = vpack.c.b16 %v1149, %v1145
      %v1310 = vpack.c.b16 %v1150, %v1146
      %v1311 = vpack.c.b16 %v1151, %v1147
      %v1312 = vpack.c.b16 %v1152, %v1148
      %v1313 = vpack.c.b16 %v1157, %v1153
      %v1314 = vpack.c.b16 %v1158, %v1154
      %v1315 = vpack.c.b16 %v1159, %v1155
      %v1316 = vpack.c.b16 %v1160, %v1156
      %v1317 = vpack.c.b16 %v1165, %v1161
      %v1318 = vpack.c.b16 %v1166, %v1162
      %v1319 = vpack.c.b16 %v1167, %v1163
      %v1320 = vpack.c.b16 %v1168, %v1164
      %v1321 = vpack.c.b16 %v1173, %v1169
      %v1322 = vpack.c.b16 %v1174, %v1170
      %v1323 = vpack.c.b16 %v1175, %v1171
      %v1324 = vpack.c.b16 %v1176, %v1172
      %v1325 = vpack.c.b16 %v1181, %v1177
      %v1326 = vpack.c.b16 %v1182, %v1178
      %v1327 = vpack.c.b16 %v1183, %v1179
      %v1328 = vpack.c.b16 %v1184, %v1180
      %v1329 = vpack.c.b16 %v1189, %v1185
      %v1330 = vpack.c.b16 %v1190, %v1186
      %v1331 = vpack.c.b16 %v1191, %v1187
      %v1332 = vpack.c.b16 %v1192, %v1188
      %v1333 = vpack.c.b16 %v1197, %v1193
      %v1334 = vpack.c.b16 %v1198, %v1194
      %v1335 = vpack.c.b16 %v1199, %v1195
      %v1336 = vpack.c.b16 %v1200, %v1196
      %v1337 = vpack.c.b16 %v1205, %v1201
      %v1338 = vpack.c.b16 %v1206, %v1202
      %v1339 = vpack.c.b16 %v1207, %v1203
      %v1340 = vpack.c.b16 %v1208, %v1204
      %v1341 = vpack.c.b16 %v1213, %v1209
      %v1342 = vpack.c.b16 %v1214, %v1210
      %v1343 = vpack.c.b16 %v1215, %v1211
      %v1344 = vpack.c.b16 %v1216, %v1212
      %1473 = vmatpush.bf16.msra.mxu0 %v1245
      %1474 = vmatpush.bf16.msra.mxu0 %v1241
      %1475 = vmatpush.bf16.msra.mxu0 %v1237
      %1476 = vmatpush.bf16.msra.mxu0 %v1233
      %1477 = vmatpush.bf16.msra.mxu0 %v1229
      %1478 = vmatpush.bf16.msra.mxu0 %v1225
      %1479 = vmatpush.bf16.msra.mxu0 %v1221
      %1480 = vmatpush.bf16.msra.mxu0 %v1217
      %1481 = vmatmul.bf16.gmra.mxu0 %v769
      %v1482 = vpop.f32.mrf.mxu0
      %v1483 = vadd.f32 0.0, %v1482
      %v1484 = vpop.f32.mrf.mxu0
      %v1485 = vadd.f32 0.0, %v1484
      %1486 = vmatmul.bf16.gmra.mxu0 %v773
      %v1487 = vpop.f32.mrf.mxu0
      %v1488 = vadd.f32 0.0, %v1487
      %v1489 = vpop.f32.mrf.mxu0
      %v1490 = vadd.f32 0.0, %v1489
      %1491 = vmatmul.bf16.gmra.mxu0 %v777
      %v1492 = vpop.f32.mrf.mxu0
      %v1493 = vadd.f32 0.0, %v1492
      %v1494 = vpop.f32.mrf.mxu0
      %v1495 = vadd.f32 0.0, %v1494
      %1496 = vmatmul.bf16.gmra.mxu0 %v781
      %v1497 = vpop.f32.mrf.mxu0
      %v1498 = vadd.f32 0.0, %v1497
      %v1499 = vpop.f32.mrf.mxu0
      %v1500 = vadd.f32 0.0, %v1499
      %1501 = vmatmul.bf16.gmra.mxu0 %v785
      %v1502 = vpop.f32.mrf.mxu0
      %v1503 = vadd.f32 0.0, %v1502
      %v1504 = vpop.f32.mrf.mxu0
      %v1505 = vadd.f32 0.0, %v1504
      %1506 = vmatmul.bf16.gmra.mxu0 %v789
      %v1507 = vpop.f32.mrf.mxu0
      %v1508 = vadd.f32 0.0, %v1507
      %v1509 = vpop.f32.mrf.mxu0
      %v1510 = vadd.f32 0.0, %v1509
      %1511 = vmatmul.bf16.gmra.mxu0 %v793
      %v1512 = vpop.f32.mrf.mxu0
      %v1513 = vadd.f32 0.0, %v1512
      %v1514 = vpop.f32.mrf.mxu0
      %v1515 = vadd.f32 0.0, %v1514
      %1516 = vmatmul.bf16.gmra.mxu0 %v797
      %v1517 = vpop.f32.mrf.mxu0
      %v1518 = vadd.f32 0.0, %v1517
      %v1519 = vpop.f32.mrf.mxu0
      %v1520 = vadd.f32 0.0, %v1519
      %1521 = vdwg.mxu0
      %1522 = vmatpush.bf16.msra.mxu0 %v1277
      %1523 = vmatpush.bf16.msra.mxu0 %v1273
      %1524 = vmatpush.bf16.msra.mxu0 %v1269
      %1525 = vmatpush.bf16.msra.mxu0 %v1265
      %1526 = vmatpush.bf16.msra.mxu0 %v1261
      %1527 = vmatpush.bf16.msra.mxu0 %v1257
      %1528 = vmatpush.bf16.msra.mxu0 %v1253
      %1529 = vmatpush.bf16.msra.mxu0 %v1249
      %1530 = vmatmul.bf16.gmra.mxu0 %v770
      %v1531 = vpop.f32.mrf.mxu0
      %v1532 = vadd.f32 %v1483, %v1531
      %v1533 = vpop.f32.mrf.mxu0
      %v1534 = vadd.f32 %v1485, %v1533
      %1535 = vmatmul.bf16.gmra.mxu0 %v774
      %v1536 = vpop.f32.mrf.mxu0
      %v1537 = vadd.f32 %v1488, %v1536
      %v1538 = vpop.f32.mrf.mxu0
      %v1539 = vadd.f32 %v1490, %v1538
      %1540 = vmatmul.bf16.gmra.mxu0 %v778
      %v1541 = vpop.f32.mrf.mxu0
      %v1542 = vadd.f32 %v1493, %v1541
      %v1543 = vpop.f32.mrf.mxu0
      %v1544 = vadd.f32 %v1495, %v1543
      %1545 = vmatmul.bf16.gmra.mxu0 %v782
      %v1546 = vpop.f32.mrf.mxu0
      %v1547 = vadd.f32 %v1498, %v1546
      %v1548 = vpop.f32.mrf.mxu0
      %v1549 = vadd.f32 %v1500, %v1548
      %1550 = vmatmul.bf16.gmra.mxu0 %v786
      %v1551 = vpop.f32.mrf.mxu0
      %v1552 = vadd.f32 %v1503, %v1551
      %v1553 = vpop.f32.mrf.mxu0
      %v1554 = vadd.f32 %v1505, %v1553
      %1555 = vmatmul.bf16.gmra.mxu0 %v790
      %v1556 = vpop.f32.mrf.mxu0
      %v1557 = vadd.f32 %v1508, %v1556
      %v1558 = vpop.f32.mrf.mxu0
      %v1559 = vadd.f32 %v1510, %v1558
      %1560 = vmatmul.bf16.gmra.mxu0 %v794
      %v1561 = vpop.f32.mrf.mxu0
      %v1562 = vadd.f32 %v1513, %v1561
      %v1563 = vpop.f32.mrf.mxu0
      %v1564 = vadd.f32 %v1515, %v1563
      %1565 = vmatmul.bf16.gmra.mxu0 %v798
      %v1566 = vpop.f32.mrf.mxu0
      %v1567 = vadd.f32 %v1518, %v1566
      %v1568 = vpop.f32.mrf.mxu0
      %v1569 = vadd.f32 %v1520, %v1568
      %1570 = vdwg.mxu0
      %1571 = vmatpush.bf16.msra.mxu0 %v1309
      %1572 = vmatpush.bf16.msra.mxu0 %v1305
      %1573 = vmatpush.bf16.msra.mxu0 %v1301
      %1574 = vmatpush.bf16.msra.mxu0 %v1297
      %1575 = vmatpush.bf16.msra.mxu0 %v1293
      %1576 = vmatpush.bf16.msra.mxu0 %v1289
      %1577 = vmatpush.bf16.msra.mxu0 %v1285
      %1578 = vmatpush.bf16.msra.mxu0 %v1281
      %1579 = vmatmul.bf16.gmra.mxu0 %v771
      %v1580 = vpop.f32.mrf.mxu0
      %v1581 = vadd.f32 %v1532, %v1580
      %v1582 = vpop.f32.mrf.mxu0
      %v1583 = vadd.f32 %v1534, %v1582
      %1584 = vmatmul.bf16.gmra.mxu0 %v775
      %v1585 = vpop.f32.mrf.mxu0
      %v1586 = vadd.f32 %v1537, %v1585
      %v1587 = vpop.f32.mrf.mxu0
      %v1588 = vadd.f32 %v1539, %v1587
      %1589 = vmatmul.bf16.gmra.mxu0 %v779
      %v1590 = vpop.f32.mrf.mxu0
      %v1591 = vadd.f32 %v1542, %v1590
      %v1592 = vpop.f32.mrf.mxu0
      %v1593 = vadd.f32 %v1544, %v1592
      %1594 = vmatmul.bf16.gmra.mxu0 %v783
      %v1595 = vpop.f32.mrf.mxu0
      %v1596 = vadd.f32 %v1547, %v1595
      %v1597 = vpop.f32.mrf.mxu0
      %v1598 = vadd.f32 %v1549, %v1597
      %1599 = vmatmul.bf16.gmra.mxu0 %v787
      %v1600 = vpop.f32.mrf.mxu0
      %v1601 = vadd.f32 %v1552, %v1600
      %v1602 = vpop.f32.mrf.mxu0
      %v1603 = vadd.f32 %v1554, %v1602
      %1604 = vmatmul.bf16.gmra.mxu0 %v791
      %v1605 = vpop.f32.mrf.mxu0
      %v1606 = vadd.f32 %v1557, %v1605
      %v1607 = vpop.f32.mrf.mxu0
      %v1608 = vadd.f32 %v1559, %v1607
      %1609 = vmatmul.bf16.gmra.mxu0 %v795
      %v1610 = vpop.f32.mrf.mxu0
      %v1611 = vadd.f32 %v1562, %v1610
      %v1612 = vpop.f32.mrf.mxu0
      %v1613 = vadd.f32 %v1564, %v1612
      %1614 = vmatmul.bf16.gmra.mxu0 %v799
      %v1615 = vpop.f32.mrf.mxu0
      %v1616 = vadd.f32 %v1567, %v1615
      %v1617 = vpop.f32.mrf.mxu0
      %v1618 = vadd.f32 %v1569, %v1617
      %1619 = vdwg.mxu0
      %1620 = vmatpush.bf16.msra.mxu0 %v1341
      %1621 = vmatpush.bf16.msra.mxu0 %v1337
      %1622 = vmatpush.bf16.msra.mxu0 %v1333
      %1623 = vmatpush.bf16.msra.mxu0 %v1329
      %1624 = vmatpush.bf16.msra.mxu0 %v1325
      %1625 = vmatpush.bf16.msra.mxu0 %v1321
      %1626 = vmatpush.bf16.msra.mxu0 %v1317
      %1627 = vmatpush.bf16.msra.mxu0 %v1313
      %1628 = vmatmul.bf16.gmra.mxu0 %v772
      %v1629 = vpop.f32.mrf.mxu0
      %v1630 = vadd.f32 %v1581, %v1629
      %v1631 = vpop.f32.mrf.mxu0
      %v1632 = vadd.f32 %v1583, %v1631
      %1633 = vmatmul.bf16.gmra.mxu0 %v776
      %v1634 = vpop.f32.mrf.mxu0
      %v1635 = vadd.f32 %v1586, %v1634
      %v1636 = vpop.f32.mrf.mxu0
      %v1637 = vadd.f32 %v1588, %v1636
      %1638 = vmatmul.bf16.gmra.mxu0 %v780
      %v1639 = vpop.f32.mrf.mxu0
      %v1640 = vadd.f32 %v1591, %v1639
      %v1641 = vpop.f32.mrf.mxu0
      %v1642 = vadd.f32 %v1593, %v1641
      %1643 = vmatmul.bf16.gmra.mxu0 %v784
      %v1644 = vpop.f32.mrf.mxu0
      %v1645 = vadd.f32 %v1596, %v1644
      %v1646 = vpop.f32.mrf.mxu0
      %v1647 = vadd.f32 %v1598, %v1646
      %1648 = vmatmul.bf16.gmra.mxu0 %v788
      %v1649 = vpop.f32.mrf.mxu0
      %v1650 = vadd.f32 %v1601, %v1649
      %v1651 = vpop.f32.mrf.mxu0
      %v1652 = vadd.f32 %v1603, %v1651
      %1653 = vmatmul.bf16.gmra.mxu0 %v792
      %v1654 = vpop.f32.mrf.mxu0
      %v1655 = vadd.f32 %v1606, %v1654
      %v1656 = vpop.f32.mrf.mxu0
      %v1657 = vadd.f32 %v1608, %v1656
      %1658 = vmatmul.bf16.gmra.mxu0 %v796
      %v1659 = vpop.f32.mrf.mxu0
      %v1660 = vadd.f32 %v1611, %v1659
      %v1661 = vpop.f32.mrf.mxu0
      %v1662 = vadd.f32 %v1613, %v1661
      %1663 = vmatmul.bf16.gmra.mxu0 %v800
      %v1664 = vpop.f32.mrf.mxu0
      %v1665 = vadd.f32 %v1616, %v1664
      %v1666 = vpop.f32.mrf.mxu0
      %v1667 = vadd.f32 %v1618, %v1666
      %1668 = vdwg.mxu0
      %1669 = vmatpush.bf16.msra.mxu0 %v1246
      %1670 = vmatpush.bf16.msra.mxu0 %v1242
      %1671 = vmatpush.bf16.msra.mxu0 %v1238
      %1672 = vmatpush.bf16.msra.mxu0 %v1234
      %1673 = vmatpush.bf16.msra.mxu0 %v1230
      %1674 = vmatpush.bf16.msra.mxu0 %v1226
      %1675 = vmatpush.bf16.msra.mxu0 %v1222
      %1676 = vmatpush.bf16.msra.mxu0 %v1218
      %1677 = vmatmul.bf16.gmra.mxu0 %v769
      %v1678 = vpop.f32.mrf.mxu0
      %v1679 = vadd.f32 0.0, %v1678
      %v1680 = vpop.f32.mrf.mxu0
      %v1681 = vadd.f32 0.0, %v1680
      %1682 = vmatmul.bf16.gmra.mxu0 %v773
      %v1683 = vpop.f32.mrf.mxu0
      %v1684 = vadd.f32 0.0, %v1683
      %v1685 = vpop.f32.mrf.mxu0
      %v1686 = vadd.f32 0.0, %v1685
      %1687 = vmatmul.bf16.gmra.mxu0 %v777
      %v1688 = vpop.f32.mrf.mxu0
      %v1689 = vadd.f32 0.0, %v1688
      %v1690 = vpop.f32.mrf.mxu0
      %v1691 = vadd.f32 0.0, %v1690
      %1692 = vmatmul.bf16.gmra.mxu0 %v781
      %v1693 = vpop.f32.mrf.mxu0
      %v1694 = vadd.f32 0.0, %v1693
      %v1695 = vpop.f32.mrf.mxu0
      %v1696 = vadd.f32 0.0, %v1695
      %1697 = vmatmul.bf16.gmra.mxu0 %v785
      %v1698 = vpop.f32.mrf.mxu0
      %v1699 = vadd.f32 0.0, %v1698
      %v1700 = vpop.f32.mrf.mxu0
      %v1701 = vadd.f32 0.0, %v1700
      %1702 = vmatmul.bf16.gmra.mxu0 %v789
      %v1703 = vpop.f32.mrf.mxu0
      %v1704 = vadd.f32 0.0, %v1703
      %v1705 = vpop.f32.mrf.mxu0
      %v1706 = vadd.f32 0.0, %v1705
      %1707 = vmatmul.bf16.gmra.mxu0 %v793
      %v1708 = vpop.f32.mrf.mxu0
      %v1709 = vadd.f32 0.0, %v1708
      %v1710 = vpop.f32.mrf.mxu0
      %v1711 = vadd.f32 0.0, %v1710
      %1712 = vmatmul.bf16.gmra.mxu0 %v797
      %v1713 = vpop.f32.mrf.mxu0
      %v1714 = vadd.f32 0.0, %v1713
      %v1715 = vpop.f32.mrf.mxu0
      %v1716 = vadd.f32 0.0, %v1715
      %1717 = vdwg.mxu0
      %1718 = vmatpush.bf16.msra.mxu0 %v1278
      %1719 = vmatpush.bf16.msra.mxu0 %v1274
      %1720 = vmatpush.bf16.msra.mxu0 %v1270
      %1721 = vmatpush.bf16.msra.mxu0 %v1266
      %1722 = vmatpush.bf16.msra.mxu0 %v1262
      %1723 = vmatpush.bf16.msra.mxu0 %v1258
      %1724 = vmatpush.bf16.msra.mxu0 %v1254
      %1725 = vmatpush.bf16.msra.mxu0 %v1250
      %1726 = vmatmul.bf16.gmra.mxu0 %v770
      %v1727 = vpop.f32.mrf.mxu0
      %v1728 = vadd.f32 %v1679, %v1727
      %v1729 = vpop.f32.mrf.mxu0
      %v1730 = vadd.f32 %v1681, %v1729
      %1731 = vmatmul.bf16.gmra.mxu0 %v774
      %v1732 = vpop.f32.mrf.mxu0
      %v1733 = vadd.f32 %v1684, %v1732
      %v1734 = vpop.f32.mrf.mxu0
      %v1735 = vadd.f32 %v1686, %v1734
      %1736 = vmatmul.bf16.gmra.mxu0 %v778
      %v1737 = vpop.f32.mrf.mxu0
      %v1738 = vadd.f32 %v1689, %v1737
      %v1739 = vpop.f32.mrf.mxu0
      %v1740 = vadd.f32 %v1691, %v1739
      %1741 = vmatmul.bf16.gmra.mxu0 %v782
      %v1742 = vpop.f32.mrf.mxu0
      %v1743 = vadd.f32 %v1694, %v1742
      %v1744 = vpop.f32.mrf.mxu0
      %v1745 = vadd.f32 %v1696, %v1744
      %1746 = vmatmul.bf16.gmra.mxu0 %v786
      %v1747 = vpop.f32.mrf.mxu0
      %v1748 = vadd.f32 %v1699, %v1747
      %v1749 = vpop.f32.mrf.mxu0
      %v1750 = vadd.f32 %v1701, %v1749
      %1751 = vmatmul.bf16.gmra.mxu0 %v790
      %v1752 = vpop.f32.mrf.mxu0
      %v1753 = vadd.f32 %v1704, %v1752
      %v1754 = vpop.f32.mrf.mxu0
      %v1755 = vadd.f32 %v1706, %v1754
      %1756 = vmatmul.bf16.gmra.mxu0 %v794
      %v1757 = vpop.f32.mrf.mxu0
      %v1758 = vadd.f32 %v1709, %v1757
      %v1759 = vpop.f32.mrf.mxu0
      %v1760 = vadd.f32 %v1711, %v1759
      %1761 = vmatmul.bf16.gmra.mxu0 %v798
      %v1762 = vpop.f32.mrf.mxu0
      %v1763 = vadd.f32 %v1714, %v1762
      %v1764 = vpop.f32.mrf.mxu0
      %v1765 = vadd.f32 %v1716, %v1764
      %1766 = vdwg.mxu0
      %1767 = vmatpush.bf16.msra.mxu0 %v1310
      %1768 = vmatpush.bf16.msra.mxu0 %v1306
      %1769 = vmatpush.bf16.msra.mxu0 %v1302
      %1770 = vmatpush.bf16.msra.mxu0 %v1298
      %1771 = vmatpush.bf16.msra.mxu0 %v1294
      %1772 = vmatpush.bf16.msra.mxu0 %v1290
      %1773 = vmatpush.bf16.msra.mxu0 %v1286
      %1774 = vmatpush.bf16.msra.mxu0 %v1282
      %1775 = vmatmul.bf16.gmra.mxu0 %v771
      %v1776 = vpop.f32.mrf.mxu0
      %v1777 = vadd.f32 %v1728, %v1776
      %v1778 = vpop.f32.mrf.mxu0
      %v1779 = vadd.f32 %v1730, %v1778
      %1780 = vmatmul.bf16.gmra.mxu0 %v775
      %v1781 = vpop.f32.mrf.mxu0
      %v1782 = vadd.f32 %v1733, %v1781
      %v1783 = vpop.f32.mrf.mxu0
      %v1784 = vadd.f32 %v1735, %v1783
      %1785 = vmatmul.bf16.gmra.mxu0 %v779
      %v1786 = vpop.f32.mrf.mxu0
      %v1787 = vadd.f32 %v1738, %v1786
      %v1788 = vpop.f32.mrf.mxu0
      %v1789 = vadd.f32 %v1740, %v1788
      %1790 = vmatmul.bf16.gmra.mxu0 %v783
      %v1791 = vpop.f32.mrf.mxu0
      %v1792 = vadd.f32 %v1743, %v1791
      %v1793 = vpop.f32.mrf.mxu0
      %v1794 = vadd.f32 %v1745, %v1793
      %1795 = vmatmul.bf16.gmra.mxu0 %v787
      %v1796 = vpop.f32.mrf.mxu0
      %v1797 = vadd.f32 %v1748, %v1796
      %v1798 = vpop.f32.mrf.mxu0
      %v1799 = vadd.f32 %v1750, %v1798
      %1800 = vmatmul.bf16.gmra.mxu0 %v791
      %v1801 = vpop.f32.mrf.mxu0
      %v1802 = vadd.f32 %v1753, %v1801
      %v1803 = vpop.f32.mrf.mxu0
      %v1804 = vadd.f32 %v1755, %v1803
      %1805 = vmatmul.bf16.gmra.mxu0 %v795
      %v1806 = vpop.f32.mrf.mxu0
      %v1807 = vadd.f32 %v1758, %v1806
      %v1808 = vpop.f32.mrf.mxu0
      %v1809 = vadd.f32 %v1760, %v1808
      %1810 = vmatmul.bf16.gmra.mxu0 %v799
      %v1811 = vpop.f32.mrf.mxu0
      %v1812 = vadd.f32 %v1763, %v1811
      %v1813 = vpop.f32.mrf.mxu0
      %v1814 = vadd.f32 %v1765, %v1813
      %1815 = vdwg.mxu0
      %1816 = vmatpush.bf16.msra.mxu0 %v1342
      %1817 = vmatpush.bf16.msra.mxu0 %v1338
      %1818 = vmatpush.bf16.msra.mxu0 %v1334
      %1819 = vmatpush.bf16.msra.mxu0 %v1330
      %1820 = vmatpush.bf16.msra.mxu0 %v1326
      %1821 = vmatpush.bf16.msra.mxu0 %v1322
      %1822 = vmatpush.bf16.msra.mxu0 %v1318
      %1823 = vmatpush.bf16.msra.mxu0 %v1314
      %1824 = vmatmul.bf16.gmra.mxu0 %v772
      %v1825 = vpop.f32.mrf.mxu0
      %v1826 = vadd.f32 %v1777, %v1825
      %v1827 = vpop.f32.mrf.mxu0
      %v1828 = vadd.f32 %v1779, %v1827
      %1829 = vmatmul.bf16.gmra.mxu0 %v776
      %v1830 = vpop.f32.mrf.mxu0
      %v1831 = vadd.f32 %v1782, %v1830
      %v1832 = vpop.f32.mrf.mxu0
      %v1833 = vadd.f32 %v1784, %v1832
      %1834 = vmatmul.bf16.gmra.mxu0 %v780
      %v1835 = vpop.f32.mrf.mxu0
      %v1836 = vadd.f32 %v1787, %v1835
      %v1837 = vpop.f32.mrf.mxu0
      %v1838 = vadd.f32 %v1789, %v1837
      %1839 = vmatmul.bf16.gmra.mxu0 %v784
      %v1840 = vpop.f32.mrf.mxu0
      %v1841 = vadd.f32 %v1792, %v1840
      %v1842 = vpop.f32.mrf.mxu0
      %v1843 = vadd.f32 %v1794, %v1842
      %1844 = vmatmul.bf16.gmra.mxu0 %v788
      %v1845 = vpop.f32.mrf.mxu0
      %v1846 = vadd.f32 %v1797, %v1845
      %v1847 = vpop.f32.mrf.mxu0
      %v1848 = vadd.f32 %v1799, %v1847
      %1849 = vmatmul.bf16.gmra.mxu0 %v792
      %v1850 = vpop.f32.mrf.mxu0
      %v1851 = vadd.f32 %v1802, %v1850
      %v1852 = vpop.f32.mrf.mxu0
      %v1853 = vadd.f32 %v1804, %v1852
      %1854 = vmatmul.bf16.gmra.mxu0 %v796
      %v1855 = vpop.f32.mrf.mxu0
      %v1856 = vadd.f32 %v1807, %v1855
      %v1857 = vpop.f32.mrf.mxu0
      %v1858 = vadd.f32 %v1809, %v1857
      %1859 = vmatmul.bf16.gmra.mxu0 %v800
      %v1860 = vpop.f32.mrf.mxu0
      %v1861 = vadd.f32 %v1812, %v1860
      %v1862 = vpop.f32.mrf.mxu0
      %v1863 = vadd.f32 %v1814, %v1862
      %1864 = vdwg.mxu0
      %1865 = vmatpush.bf16.msra.mxu0 %v1247
      %1866 = vmatpush.bf16.msra.mxu0 %v1243
      %1867 = vmatpush.bf16.msra.mxu0 %v1239
      %1868 = vmatpush.bf16.msra.mxu0 %v1235
      %1869 = vmatpush.bf16.msra.mxu0 %v1231
      %1870 = vmatpush.bf16.msra.mxu0 %v1227
      %1871 = vmatpush.bf16.msra.mxu0 %v1223
      %1872 = vmatpush.bf16.msra.mxu0 %v1219
      %1873 = vmatmul.bf16.gmra.mxu0 %v769
      %v1874 = vpop.f32.mrf.mxu0
      %v1875 = vadd.f32 0.0, %v1874
      %v1876 = vpop.f32.mrf.mxu0
      %v1877 = vadd.f32 0.0, %v1876
      %1878 = vmatmul.bf16.gmra.mxu0 %v773
      %v1879 = vpop.f32.mrf.mxu0
      %v1880 = vadd.f32 0.0, %v1879
      %v1881 = vpop.f32.mrf.mxu0
      %v1882 = vadd.f32 0.0, %v1881
      %1883 = vmatmul.bf16.gmra.mxu0 %v777
      %v1884 = vpop.f32.mrf.mxu0
      %v1885 = vadd.f32 0.0, %v1884
      %v1886 = vpop.f32.mrf.mxu0
      %v1887 = vadd.f32 0.0, %v1886
      %1888 = vmatmul.bf16.gmra.mxu0 %v781
      %v1889 = vpop.f32.mrf.mxu0
      %v1890 = vadd.f32 0.0, %v1889
      %v1891 = vpop.f32.mrf.mxu0
      %v1892 = vadd.f32 0.0, %v1891
      %1893 = vmatmul.bf16.gmra.mxu0 %v785
      %v1894 = vpop.f32.mrf.mxu0
      %v1895 = vadd.f32 0.0, %v1894
      %v1896 = vpop.f32.mrf.mxu0
      %v1897 = vadd.f32 0.0, %v1896
      %1898 = vmatmul.bf16.gmra.mxu0 %v789
      %v1899 = vpop.f32.mrf.mxu0
      %v1900 = vadd.f32 0.0, %v1899
      %v1901 = vpop.f32.mrf.mxu0
      %v1902 = vadd.f32 0.0, %v1901
      %1903 = vmatmul.bf16.gmra.mxu0 %v793
      %v1904 = vpop.f32.mrf.mxu0
      %v1905 = vadd.f32 0.0, %v1904
      %v1906 = vpop.f32.mrf.mxu0
      %v1907 = vadd.f32 0.0, %v1906
      %1908 = vmatmul.bf16.gmra.mxu0 %v797
      %v1909 = vpop.f32.mrf.mxu0
      %v1910 = vadd.f32 0.0, %v1909
      %v1911 = vpop.f32.mrf.mxu0
      %v1912 = vadd.f32 0.0, %v1911
      %1913 = vdwg.mxu0
      %1914 = vmatpush.bf16.msra.mxu0 %v1279
      %1915 = vmatpush.bf16.msra.mxu0 %v1275
      %1916 = vmatpush.bf16.msra.mxu0 %v1271
      %1917 = vmatpush.bf16.msra.mxu0 %v1267
      %1918 = vmatpush.bf16.msra.mxu0 %v1263
      %1919 = vmatpush.bf16.msra.mxu0 %v1259
      %1920 = vmatpush.bf16.msra.mxu0 %v1255
      %1921 = vmatpush.bf16.msra.mxu0 %v1251
      %1922 = vmatmul.bf16.gmra.mxu0 %v770
      %v1923 = vpop.f32.mrf.mxu0
      %v1924 = vadd.f32 %v1875, %v1923
      %v1925 = vpop.f32.mrf.mxu0
      %v1926 = vadd.f32 %v1877, %v1925
      %1927 = vmatmul.bf16.gmra.mxu0 %v774
      %v1928 = vpop.f32.mrf.mxu0
      %v1929 = vadd.f32 %v1880, %v1928
      %v1930 = vpop.f32.mrf.mxu0
      %v1931 = vadd.f32 %v1882, %v1930
      %1932 = vmatmul.bf16.gmra.mxu0 %v778
      %v1933 = vpop.f32.mrf.mxu0
      %v1934 = vadd.f32 %v1885, %v1933
      %v1935 = vpop.f32.mrf.mxu0
      %v1936 = vadd.f32 %v1887, %v1935
      %1937 = vmatmul.bf16.gmra.mxu0 %v782
      %v1938 = vpop.f32.mrf.mxu0
      %v1939 = vadd.f32 %v1890, %v1938
      %v1940 = vpop.f32.mrf.mxu0
      %v1941 = vadd.f32 %v1892, %v1940
      %1942 = vmatmul.bf16.gmra.mxu0 %v786
      %v1943 = vpop.f32.mrf.mxu0
      %v1944 = vadd.f32 %v1895, %v1943
      %v1945 = vpop.f32.mrf.mxu0
      %v1946 = vadd.f32 %v1897, %v1945
      %1947 = vmatmul.bf16.gmra.mxu0 %v790
      %v1948 = vpop.f32.mrf.mxu0
      %v1949 = vadd.f32 %v1900, %v1948
      %v1950 = vpop.f32.mrf.mxu0
      %v1951 = vadd.f32 %v1902, %v1950
      %1952 = vmatmul.bf16.gmra.mxu0 %v794
      %v1953 = vpop.f32.mrf.mxu0
      %v1954 = vadd.f32 %v1905, %v1953
      %v1955 = vpop.f32.mrf.mxu0
      %v1956 = vadd.f32 %v1907, %v1955
      %1957 = vmatmul.bf16.gmra.mxu0 %v798
      %v1958 = vpop.f32.mrf.mxu0
      %v1959 = vadd.f32 %v1910, %v1958
      %v1960 = vpop.f32.mrf.mxu0
      %v1961 = vadd.f32 %v1912, %v1960
      %1962 = vdwg.mxu0
      %1963 = vmatpush.bf16.msra.mxu0 %v1311
      %1964 = vmatpush.bf16.msra.mxu0 %v1307
      %1965 = vmatpush.bf16.msra.mxu0 %v1303
      %1966 = vmatpush.bf16.msra.mxu0 %v1299
      %1967 = vmatpush.bf16.msra.mxu0 %v1295
      %1968 = vmatpush.bf16.msra.mxu0 %v1291
      %1969 = vmatpush.bf16.msra.mxu0 %v1287
      %1970 = vmatpush.bf16.msra.mxu0 %v1283
      %1971 = vmatmul.bf16.gmra.mxu0 %v771
      %v1972 = vpop.f32.mrf.mxu0
      %v1973 = vadd.f32 %v1924, %v1972
      %v1974 = vpop.f32.mrf.mxu0
      %v1975 = vadd.f32 %v1926, %v1974
      %1976 = vmatmul.bf16.gmra.mxu0 %v775
      %v1977 = vpop.f32.mrf.mxu0
      %v1978 = vadd.f32 %v1929, %v1977
      %v1979 = vpop.f32.mrf.mxu0
      %v1980 = vadd.f32 %v1931, %v1979
      %1981 = vmatmul.bf16.gmra.mxu0 %v779
      %v1982 = vpop.f32.mrf.mxu0
      %v1983 = vadd.f32 %v1934, %v1982
      %v1984 = vpop.f32.mrf.mxu0
      %v1985 = vadd.f32 %v1936, %v1984
      %1986 = vmatmul.bf16.gmra.mxu0 %v783
      %v1987 = vpop.f32.mrf.mxu0
      %v1988 = vadd.f32 %v1939, %v1987
      %v1989 = vpop.f32.mrf.mxu0
      %v1990 = vadd.f32 %v1941, %v1989
      %1991 = vmatmul.bf16.gmra.mxu0 %v787
      %v1992 = vpop.f32.mrf.mxu0
      %v1993 = vadd.f32 %v1944, %v1992
      %v1994 = vpop.f32.mrf.mxu0
      %v1995 = vadd.f32 %v1946, %v1994
      %1996 = vmatmul.bf16.gmra.mxu0 %v791
      %v1997 = vpop.f32.mrf.mxu0
      %v1998 = vadd.f32 %v1949, %v1997
      %v1999 = vpop.f32.mrf.mxu0
      %v2000 = vadd.f32 %v1951, %v1999
      %2001 = vmatmul.bf16.gmra.mxu0 %v795
      %v2002 = vpop.f32.mrf.mxu0
      %v2003 = vadd.f32 %v1954, %v2002
      %v2004 = vpop.f32.mrf.mxu0
      %v2005 = vadd.f32 %v1956, %v2004
      %2006 = vmatmul.bf16.gmra.mxu0 %v799
      %v2007 = vpop.f32.mrf.mxu0
      %v2008 = vadd.f32 %v1959, %v2007
      %v2009 = vpop.f32.mrf.mxu0
      %v2010 = vadd.f32 %v1961, %v2009
      %2011 = vdwg.mxu0
      %2012 = vmatpush.bf16.msra.mxu0 %v1343
      %2013 = vmatpush.bf16.msra.mxu0 %v1339
      %2014 = vmatpush.bf16.msra.mxu0 %v1335
      %2015 = vmatpush.bf16.msra.mxu0 %v1331
      %2016 = vmatpush.bf16.msra.mxu0 %v1327
      %2017 = vmatpush.bf16.msra.mxu0 %v1323
      %2018 = vmatpush.bf16.msra.mxu0 %v1319
      %2019 = vmatpush.bf16.msra.mxu0 %v1315
      %2020 = vmatmul.bf16.gmra.mxu0 %v772
      %v2021 = vpop.f32.mrf.mxu0
      %v2022 = vadd.f32 %v1973, %v2021
      %v2023 = vpop.f32.mrf.mxu0
      %v2024 = vadd.f32 %v1975, %v2023
      %2025 = vmatmul.bf16.gmra.mxu0 %v776
      %v2026 = vpop.f32.mrf.mxu0
      %v2027 = vadd.f32 %v1978, %v2026
      %v2028 = vpop.f32.mrf.mxu0
      %v2029 = vadd.f32 %v1980, %v2028
      %2030 = vmatmul.bf16.gmra.mxu0 %v780
      %v2031 = vpop.f32.mrf.mxu0
      %v2032 = vadd.f32 %v1983, %v2031
      %v2033 = vpop.f32.mrf.mxu0
      %v2034 = vadd.f32 %v1985, %v2033
      %2035 = vmatmul.bf16.gmra.mxu0 %v784
      %v2036 = vpop.f32.mrf.mxu0
      %v2037 = vadd.f32 %v1988, %v2036
      %v2038 = vpop.f32.mrf.mxu0
      %v2039 = vadd.f32 %v1990, %v2038
      %2040 = vmatmul.bf16.gmra.mxu0 %v788
      %v2041 = vpop.f32.mrf.mxu0
      %v2042 = vadd.f32 %v1993, %v2041
      %v2043 = vpop.f32.mrf.mxu0
      %v2044 = vadd.f32 %v1995, %v2043
      %2045 = vmatmul.bf16.gmra.mxu0 %v792
      %v2046 = vpop.f32.mrf.mxu0
      %v2047 = vadd.f32 %v1998, %v2046
      %v2048 = vpop.f32.mrf.mxu0
      %v2049 = vadd.f32 %v2000, %v2048
      %2050 = vmatmul.bf16.gmra.mxu0 %v796
      %v2051 = vpop.f32.mrf.mxu0
      %v2052 = vadd.f32 %v2003, %v2051
      %v2053 = vpop.f32.mrf.mxu0
      %v2054 = vadd.f32 %v2005, %v2053
      %2055 = vmatmul.bf16.gmra.mxu0 %v800
      %v2056 = vpop.f32.mrf.mxu0
      %v2057 = vadd.f32 %v2008, %v2056
      %v2058 = vpop.f32.mrf.mxu0
      %v2059 = vadd.f32 %v2010, %v2058
      %2060 = vdwg.mxu0
      %2061 = vmatpush.bf16.msra.mxu0 %v1248
      %2062 = vmatpush.bf16.msra.mxu0 %v1244
      %2063 = vmatpush.bf16.msra.mxu0 %v1240
      %2064 = vmatpush.bf16.msra.mxu0 %v1236
      %2065 = vmatpush.bf16.msra.mxu0 %v1232
      %2066 = vmatpush.bf16.msra.mxu0 %v1228
      %2067 = vmatpush.bf16.msra.mxu0 %v1224
      %2068 = vmatpush.bf16.msra.mxu0 %v1220
      %2069 = vmatmul.bf16.gmra.mxu0 %v769
      %v2070 = vpop.f32.mrf.mxu0
      %v2071 = vadd.f32 0.0, %v2070
      %v2072 = vpop.f32.mrf.mxu0
      %v2073 = vadd.f32 0.0, %v2072
      %2074 = vmatmul.bf16.gmra.mxu0 %v773
      %v2075 = vpop.f32.mrf.mxu0
      %v2076 = vadd.f32 0.0, %v2075
      %v2077 = vpop.f32.mrf.mxu0
      %v2078 = vadd.f32 0.0, %v2077
      %2079 = vmatmul.bf16.gmra.mxu0 %v777
      %v2080 = vpop.f32.mrf.mxu0
      %v2081 = vadd.f32 0.0, %v2080
      %v2082 = vpop.f32.mrf.mxu0
      %v2083 = vadd.f32 0.0, %v2082
      %2084 = vmatmul.bf16.gmra.mxu0 %v781
      %v2085 = vpop.f32.mrf.mxu0
      %v2086 = vadd.f32 0.0, %v2085
      %v2087 = vpop.f32.mrf.mxu0
      %v2088 = vadd.f32 0.0, %v2087
      %2089 = vmatmul.bf16.gmra.mxu0 %v785
      %v2090 = vpop.f32.mrf.mxu0
      %v2091 = vadd.f32 0.0, %v2090
      %v2092 = vpop.f32.mrf.mxu0
      %v2093 = vadd.f32 0.0, %v2092
      %2094 = vmatmul.bf16.gmra.mxu0 %v789
      %v2095 = vpop.f32.mrf.mxu0
      %v2096 = vadd.f32 0.0, %v2095
      %v2097 = vpop.f32.mrf.mxu0
      %v2098 = vadd.f32 0.0, %v2097
      %2099 = vmatmul.bf16.gmra.mxu0 %v793
      %v2100 = vpop.f32.mrf.mxu0
      %v2101 = vadd.f32 0.0, %v2100
      %v2102 = vpop.f32.mrf.mxu0
      %v2103 = vadd.f32 0.0, %v2102
      %2104 = vmatmul.bf16.gmra.mxu0 %v797
      %v2105 = vpop.f32.mrf.mxu0
      %v2106 = vadd.f32 0.0, %v2105
      %v2107 = vpop.f32.mrf.mxu0
      %v2108 = vadd.f32 0.0, %v2107
      %2109 = vdwg.mxu0
      %2110 = vmatpush.bf16.msra.mxu0 %v1280
      %2111 = vmatpush.bf16.msra.mxu0 %v1276
      %2112 = vmatpush.bf16.msra.mxu0 %v1272
      %2113 = vmatpush.bf16.msra.mxu0 %v1268
      %2114 = vmatpush.bf16.msra.mxu0 %v1264
      %2115 = vmatpush.bf16.msra.mxu0 %v1260
      %2116 = vmatpush.bf16.msra.mxu0 %v1256
      %2117 = vmatpush.bf16.msra.mxu0 %v1252
      %2118 = vmatmul.bf16.gmra.mxu0 %v770
      %v2119 = vpop.f32.mrf.mxu0
      %v2120 = vadd.f32 %v2071, %v2119
      %v2121 = vpop.f32.mrf.mxu0
      %v2122 = vadd.f32 %v2073, %v2121
      %2123 = vmatmul.bf16.gmra.mxu0 %v774
      %v2124 = vpop.f32.mrf.mxu0
      %v2125 = vadd.f32 %v2076, %v2124
      %v2126 = vpop.f32.mrf.mxu0
      %v2127 = vadd.f32 %v2078, %v2126
      %2128 = vmatmul.bf16.gmra.mxu0 %v778
      %v2129 = vpop.f32.mrf.mxu0
      %v2130 = vadd.f32 %v2081, %v2129
      %v2131 = vpop.f32.mrf.mxu0
      %v2132 = vadd.f32 %v2083, %v2131
      %2133 = vmatmul.bf16.gmra.mxu0 %v782
      %v2134 = vpop.f32.mrf.mxu0
      %v2135 = vadd.f32 %v2086, %v2134
      %v2136 = vpop.f32.mrf.mxu0
      %v2137 = vadd.f32 %v2088, %v2136
      %2138 = vmatmul.bf16.gmra.mxu0 %v786
      %v2139 = vpop.f32.mrf.mxu0
      %v2140 = vadd.f32 %v2091, %v2139
      %v2141 = vpop.f32.mrf.mxu0
      %v2142 = vadd.f32 %v2093, %v2141
      %2143 = vmatmul.bf16.gmra.mxu0 %v790
      %v2144 = vpop.f32.mrf.mxu0
      %v2145 = vadd.f32 %v2096, %v2144
      %v2146 = vpop.f32.mrf.mxu0
      %v2147 = vadd.f32 %v2098, %v2146
      %2148 = vmatmul.bf16.gmra.mxu0 %v794
      %v2149 = vpop.f32.mrf.mxu0
      %v2150 = vadd.f32 %v2101, %v2149
      %v2151 = vpop.f32.mrf.mxu0
      %v2152 = vadd.f32 %v2103, %v2151
      %2153 = vmatmul.bf16.gmra.mxu0 %v798
      %v2154 = vpop.f32.mrf.mxu0
      %v2155 = vadd.f32 %v2106, %v2154
      %v2156 = vpop.f32.mrf.mxu0
      %v2157 = vadd.f32 %v2108, %v2156
      %2158 = vdwg.mxu0
      %2159 = vmatpush.bf16.msra.mxu0 %v1312
      %2160 = vmatpush.bf16.msra.mxu0 %v1308
      %2161 = vmatpush.bf16.msra.mxu0 %v1304
      %2162 = vmatpush.bf16.msra.mxu0 %v1300
      %2163 = vmatpush.bf16.msra.mxu0 %v1296
      %2164 = vmatpush.bf16.msra.mxu0 %v1292
      %2165 = vmatpush.bf16.msra.mxu0 %v1288
      %2166 = vmatpush.bf16.msra.mxu0 %v1284
      %2167 = vmatmul.bf16.gmra.mxu0 %v771
      %v2168 = vpop.f32.mrf.mxu0
      %v2169 = vadd.f32 %v2120, %v2168
      %v2170 = vpop.f32.mrf.mxu0
      %v2171 = vadd.f32 %v2122, %v2170
      %2172 = vmatmul.bf16.gmra.mxu0 %v775
      %v2173 = vpop.f32.mrf.mxu0
      %v2174 = vadd.f32 %v2125, %v2173
      %v2175 = vpop.f32.mrf.mxu0
      %v2176 = vadd.f32 %v2127, %v2175
      %2177 = vmatmul.bf16.gmra.mxu0 %v779
      %v2178 = vpop.f32.mrf.mxu0
      %v2179 = vadd.f32 %v2130, %v2178
      %v2180 = vpop.f32.mrf.mxu0
      %v2181 = vadd.f32 %v2132, %v2180
      %2182 = vmatmul.bf16.gmra.mxu0 %v783
      %v2183 = vpop.f32.mrf.mxu0
      %v2184 = vadd.f32 %v2135, %v2183
      %v2185 = vpop.f32.mrf.mxu0
      %v2186 = vadd.f32 %v2137, %v2185
      %2187 = vmatmul.bf16.gmra.mxu0 %v787
      %v2188 = vpop.f32.mrf.mxu0
      %v2189 = vadd.f32 %v2140, %v2188
      %v2190 = vpop.f32.mrf.mxu0
      %v2191 = vadd.f32 %v2142, %v2190
      %2192 = vmatmul.bf16.gmra.mxu0 %v791
      %v2193 = vpop.f32.mrf.mxu0
      %v2194 = vadd.f32 %v2145, %v2193
      %v2195 = vpop.f32.mrf.mxu0
      %v2196 = vadd.f32 %v2147, %v2195
      %2197 = vmatmul.bf16.gmra.mxu0 %v795
      %v2198 = vpop.f32.mrf.mxu0
      %v2199 = vadd.f32 %v2150, %v2198
      %v2200 = vpop.f32.mrf.mxu0
      %v2201 = vadd.f32 %v2152, %v2200
      %2202 = vmatmul.bf16.gmra.mxu0 %v799
      %v2203 = vpop.f32.mrf.mxu0
      %v2204 = vadd.f32 %v2155, %v2203
      %v2205 = vpop.f32.mrf.mxu0
      %v2206 = vadd.f32 %v2157, %v2205
      %2207 = vdwg.mxu0
      %2208 = vmatpush.bf16.msra.mxu0 %v1344
      %2209 = vmatpush.bf16.msra.mxu0 %v1340
      %2210 = vmatpush.bf16.msra.mxu0 %v1336
      %2211 = vmatpush.bf16.msra.mxu0 %v1332
      %2212 = vmatpush.bf16.msra.mxu0 %v1328
      %2213 = vmatpush.bf16.msra.mxu0 %v1324
      %2214 = vmatpush.bf16.msra.mxu0 %v1320
      %2215 = vmatpush.bf16.msra.mxu0 %v1316
      %2216 = vmatmul.bf16.gmra.mxu0 %v772
      %v2217 = vpop.f32.mrf.mxu0
      %v2218 = vadd.f32 %v2169, %v2217
      %v2219 = vpop.f32.mrf.mxu0
      %v2220 = vadd.f32 %v2171, %v2219
      %2221 = vmatmul.bf16.gmra.mxu0 %v776
      %v2222 = vpop.f32.mrf.mxu0
      %v2223 = vadd.f32 %v2174, %v2222
      %v2224 = vpop.f32.mrf.mxu0
      %v2225 = vadd.f32 %v2176, %v2224
      %2226 = vmatmul.bf16.gmra.mxu0 %v780
      %v2227 = vpop.f32.mrf.mxu0
      %v2228 = vadd.f32 %v2179, %v2227
      %v2229 = vpop.f32.mrf.mxu0
      %v2230 = vadd.f32 %v2181, %v2229
      %2231 = vmatmul.bf16.gmra.mxu0 %v784
      %v2232 = vpop.f32.mrf.mxu0
      %v2233 = vadd.f32 %v2184, %v2232
      %v2234 = vpop.f32.mrf.mxu0
      %v2235 = vadd.f32 %v2186, %v2234
      %2236 = vmatmul.bf16.gmra.mxu0 %v788
      %v2237 = vpop.f32.mrf.mxu0
      %v2238 = vadd.f32 %v2189, %v2237
      %v2239 = vpop.f32.mrf.mxu0
      %v2240 = vadd.f32 %v2191, %v2239
      %2241 = vmatmul.bf16.gmra.mxu0 %v792
      %v2242 = vpop.f32.mrf.mxu0
      %v2243 = vadd.f32 %v2194, %v2242
      %v2244 = vpop.f32.mrf.mxu0
      %v2245 = vadd.f32 %v2196, %v2244
      %2246 = vmatmul.bf16.gmra.mxu0 %v796
      %v2247 = vpop.f32.mrf.mxu0
      %v2248 = vadd.f32 %v2199, %v2247
      %v2249 = vpop.f32.mrf.mxu0
      %v2250 = vadd.f32 %v2201, %v2249
      %2251 = vmatmul.bf16.gmra.mxu0 %v800
      %v2252 = vpop.f32.mrf.mxu0
      %v2253 = vadd.f32 %v2204, %v2252
      %v2254 = vpop.f32.mrf.mxu0
      %v2255 = vadd.f32 %v2206, %v2254
      %2256 = vdwg.mxu0
      %v2257 = vpack.c.bf16 %v1632, %v1630
      %v2258 = vpack.c.bf16 %v1828, %v1826
      %v2259 = vpack.c.bf16 %v2024, %v2022
      %v2260 = vpack.c.bf16 %v2220, %v2218
      %v2261 = vpack.c.bf16 %v1637, %v1635
      %v2262 = vpack.c.bf16 %v1833, %v1831
      %v2263 = vpack.c.bf16 %v2029, %v2027
      %v2264 = vpack.c.bf16 %v2225, %v2223
      %v2265 = vpack.c.bf16 %v1642, %v1640
      %v2266 = vpack.c.bf16 %v1838, %v1836
      %v2267 = vpack.c.bf16 %v2034, %v2032
      %v2268 = vpack.c.bf16 %v2230, %v2228
      %v2269 = vpack.c.bf16 %v1647, %v1645
      %v2270 = vpack.c.bf16 %v1843, %v1841
      %v2271 = vpack.c.bf16 %v2039, %v2037
      %v2272 = vpack.c.bf16 %v2235, %v2233
      %v2273 = vpack.c.bf16 %v1652, %v1650
      %v2274 = vpack.c.bf16 %v1848, %v1846
      %v2275 = vpack.c.bf16 %v2044, %v2042
      %v2276 = vpack.c.bf16 %v2240, %v2238
      %v2277 = vpack.c.bf16 %v1657, %v1655
      %v2278 = vpack.c.bf16 %v1853, %v1851
      %v2279 = vpack.c.bf16 %v2049, %v2047
      %v2280 = vpack.c.bf16 %v2245, %v2243
      %v2281 = vpack.c.bf16 %v1662, %v1660
      %v2282 = vpack.c.bf16 %v1858, %v1856
      %v2283 = vpack.c.bf16 %v2054, %v2052
      %v2284 = vpack.c.bf16 %v2250, %v2248
      %v2285 = vpack.c.bf16 %v1667, %v1665
      %v2286 = vpack.c.bf16 %v1863, %v1861
      %v2287 = vpack.c.bf16 %v2059, %v2057
      %v2288 = vpack.c.bf16 %v2255, %v2253
      %v2289 = vld [vmem:[%s4] sm:$0xf]
      %v2291 = vperm.slane %v2289, 0
      %v2292 = vperm.slane %v2289, 1
      %v2293 = vperm.slane %v2289, 2
      %v2294 = vperm.slane %v2289, 3
      %v2299 = vmul.f32 %v1630, %v2291
      %v2300 = vmul.f32 %v1826, %v2292
      %v2301 = vmul.f32 %v2022, %v2293
      %v2302 = vmul.f32 %v2218, %v2294
      %v2303 = vmul.f32 %v1632, %v2291
      %v2304 = vmul.f32 %v1828, %v2292
      %v2305 = vmul.f32 %v2024, %v2293
      %v2306 = vmul.f32 %v2220, %v2294
      %v2307 = vmul.f32 %v1635, %v2291
      %v2308 = vmul.f32 %v1831, %v2292
      %v2309 = vmul.f32 %v2027, %v2293
      %v2310 = vmul.f32 %v2223, %v2294
      %v2311 = vmul.f32 %v1637, %v2291
      %v2312 = vmul.f32 %v1833, %v2292
      %v2313 = vmul.f32 %v2029, %v2293
      %v2314 = vmul.f32 %v2225, %v2294
      %v2315 = vmul.f32 %v1640, %v2291
      %v2316 = vmul.f32 %v1836, %v2292
      %v2317 = vmul.f32 %v2032, %v2293
      %v2318 = vmul.f32 %v2228, %v2294
      %v2319 = vmul.f32 %v1642, %v2291
      %v2320 = vmul.f32 %v1838, %v2292
      %v2321 = vmul.f32 %v2034, %v2293
      %v2322 = vmul.f32 %v2230, %v2294
      %v2323 = vmul.f32 %v1645, %v2291
      %v2324 = vmul.f32 %v1841, %v2292
      %v2325 = vmul.f32 %v2037, %v2293
      %v2326 = vmul.f32 %v2233, %v2294
      %v2327 = vmul.f32 %v1647, %v2291
      %v2328 = vmul.f32 %v1843, %v2292
      %v2329 = vmul.f32 %v2039, %v2293
      %v2330 = vmul.f32 %v2235, %v2294
      %v2331 = vmul.f32 %v1650, %v2291
      %v2332 = vmul.f32 %v1846, %v2292
      %v2333 = vmul.f32 %v2042, %v2293
      %v2334 = vmul.f32 %v2238, %v2294
      %v2335 = vmul.f32 %v1652, %v2291
      %v2336 = vmul.f32 %v1848, %v2292
      %v2337 = vmul.f32 %v2044, %v2293
      %v2338 = vmul.f32 %v2240, %v2294
      %v2339 = vmul.f32 %v1655, %v2291
      %v2340 = vmul.f32 %v1851, %v2292
      %v2341 = vmul.f32 %v2047, %v2293
      %v2342 = vmul.f32 %v2243, %v2294
      %v2343 = vmul.f32 %v1657, %v2291
      %v2344 = vmul.f32 %v1853, %v2292
      %v2345 = vmul.f32 %v2049, %v2293
      %v2346 = vmul.f32 %v2245, %v2294
      %v2347 = vmul.f32 %v1660, %v2291
      %v2348 = vmul.f32 %v1856, %v2292
      %v2349 = vmul.f32 %v2052, %v2293
      %v2350 = vmul.f32 %v2248, %v2294
      %v2351 = vmul.f32 %v1662, %v2291
      %v2352 = vmul.f32 %v1858, %v2292
      %v2353 = vmul.f32 %v2054, %v2293
      %v2354 = vmul.f32 %v2250, %v2294
      %v2355 = vmul.f32 %v1665, %v2291
      %v2356 = vmul.f32 %v1861, %v2292
      %v2357 = vmul.f32 %v2057, %v2293
      %v2358 = vmul.f32 %v2253, %v2294
      %v2359 = vmul.f32 %v1667, %v2291
      %v2360 = vmul.f32 %v1863, %v2292
      %v2361 = vmul.f32 %v2059, %v2293
      %v2362 = vmul.f32 %v2255, %v2294
      %v2363 = vadd.f32 %v2299, %v2300
      %v2364 = vadd.f32 %v2363, %v2301
      %v2365 = vadd.f32 %v2364, %v2302
      %2366 = vadd.xlane.f32.xlu0 %v2365
      %v2367 = vpop.xlane.xlu0 %2366
      %v2368 = vadd.f32 %v2303, %v2304
      %v2369 = vadd.f32 %v2368, %v2305
      %v2370 = vadd.f32 %v2369, %v2306
      %2371 = vadd.xlane.f32.xlu0 %v2370
      %v2372 = vpop.xlane.xlu0 %2371
      %v2373 = vadd.f32 %v2307, %v2308
      %v2374 = vadd.f32 %v2373, %v2309
      %v2375 = vadd.f32 %v2374, %v2310
      %2376 = vadd.xlane.f32.xlu0 %v2375
      %v2377 = vpop.xlane.xlu0 %2376
      %v2378 = vadd.f32 %v2311, %v2312
      %v2379 = vadd.f32 %v2378, %v2313
      %v2380 = vadd.f32 %v2379, %v2314
      %2381 = vadd.xlane.f32.xlu0 %v2380
      %v2382 = vpop.xlane.xlu0 %2381
      %v2383 = vadd.f32 %v2315, %v2316
      %v2384 = vadd.f32 %v2383, %v2317
      %v2385 = vadd.f32 %v2384, %v2318
      %2386 = vadd.xlane.f32.xlu0 %v2385
      %v2387 = vpop.xlane.xlu0 %2386
      %v2388 = vadd.f32 %v2319, %v2320
      %v2389 = vadd.f32 %v2388, %v2321
      %v2390 = vadd.f32 %v2389, %v2322
      %2391 = vadd.xlane.f32.xlu0 %v2390
      %v2392 = vpop.xlane.xlu0 %2391
      %v2393 = vadd.f32 %v2323, %v2324
      %v2394 = vadd.f32 %v2393, %v2325
      %v2395 = vadd.f32 %v2394, %v2326
      %2396 = vadd.xlane.f32.xlu0 %v2395
      %v2397 = vpop.xlane.xlu0 %2396
      %v2398 = vadd.f32 %v2327, %v2328
      %v2399 = vadd.f32 %v2398, %v2329
      %v2400 = vadd.f32 %v2399, %v2330
      %2401 = vadd.xlane.f32.xlu0 %v2400
      %v2402 = vpop.xlane.xlu0 %2401
      %v2403 = vadd.f32 %v2331, %v2332
      %v2404 = vadd.f32 %v2403, %v2333
      %v2405 = vadd.f32 %v2404, %v2334
      %2406 = vadd.xlane.f32.xlu0 %v2405
      %v2407 = vpop.xlane.xlu0 %2406
      %v2408 = vadd.f32 %v2335, %v2336
      %v2409 = vadd.f32 %v2408, %v2337
      %v2410 = vadd.f32 %v2409, %v2338
      %2411 = vadd.xlane.f32.xlu0 %v2410
      %v2412 = vpop.xlane.xlu0 %2411
      %v2413 = vadd.f32 %v2339, %v2340
      %v2414 = vadd.f32 %v2413, %v2341
      %v2415 = vadd.f32 %v2414, %v2342
      %2416 = vadd.xlane.f32.xlu0 %v2415
      %v2417 = vpop.xlane.xlu0 %2416
      %v2418 = vadd.f32 %v2343, %v2344
      %v2419 = vadd.f32 %v2418, %v2345
      %v2420 = vadd.f32 %v2419, %v2346
      %2421 = vadd.xlane.f32.xlu0 %v2420
      %v2422 = vpop.xlane.xlu0 %2421
      %v2423 = vadd.f32 %v2347, %v2348
      %v2424 = vadd.f32 %v2423, %v2349
      %v2425 = vadd.f32 %v2424, %v2350
      %2426 = vadd.xlane.f32.xlu0 %v2425
      %v2427 = vpop.xlane.xlu0 %2426
      %v2428 = vadd.f32 %v2351, %v2352
      %v2429 = vadd.f32 %v2428, %v2353
      %v2430 = vadd.f32 %v2429, %v2354
      %2431 = vadd.xlane.f32.xlu0 %v2430
      %v2432 = vpop.xlane.xlu0 %2431
      %v2433 = vadd.f32 %v2355, %v2356
      %v2434 = vadd.f32 %v2433, %v2357
      %v2435 = vadd.f32 %v2434, %v2358
      %2436 = vadd.xlane.f32.xlu0 %v2435
      %v2437 = vpop.xlane.xlu0 %2436
      %v2438 = vadd.f32 %v2359, %v2360
      %v2439 = vadd.f32 %v2438, %v2361
      %v2440 = vadd.f32 %v2439, %v2362
      %2441 = vadd.xlane.f32.xlu0 %v2440
      %v2442 = vpop.xlane.xlu0 %2441
      %v2443 = vld [vmem:[%s3] sm:$0xf]
      %2445 = vst [vmem:[#allocation1] ss:$9 sm:$0xff] %v2443
      %v2446 = vld [vmem:[#allocation1] sm:$0xff]
      %v2447 = vld [vmem:[#allocation1 + $0x9] sm:$0xff]
      %v2448 = vld [vmem:[#allocation1 + $0x12] sm:$0xff]
      %v2449 = vld [vmem:[#allocation1 + $0x1b] sm:$0xff]
      %2454 = vmatpush.bf16.xpose.msra.mxu0 %v2285
      %2455 = vmatpush.bf16.xpose.msra.mxu0 %v2281
      %2456 = vmatpush.bf16.xpose.msra.mxu0 %v2277
      %2457 = vmatpush.bf16.xpose.msra.mxu0 %v2273
      %2458 = vmatpush.bf16.xpose.msra.mxu0 %v2269
      %2459 = vmatpush.bf16.xpose.msra.mxu0 %v2265
      %2460 = vmatpush.bf16.xpose.msra.mxu0 %v2261
      %2461 = vmatpush.bf16.xpose.msra.mxu0 %v2257
      %2462 = vmatmul.bf16.gmra.mxu0 %v2446
      %v2463 = vpop.f32.mrf.mxu0
      %v2464 = vadd.f32 0.0, %v2463
      %v2465 = vpop.f32.mrf.mxu0
      %2466 = vdwg.mxu0
      %2467 = vmatpush.bf16.xpose.msra.mxu0 %v2286
      %2468 = vmatpush.bf16.xpose.msra.mxu0 %v2282
      %2469 = vmatpush.bf16.xpose.msra.mxu0 %v2278
      %2470 = vmatpush.bf16.xpose.msra.mxu0 %v2274
      %2471 = vmatpush.bf16.xpose.msra.mxu0 %v2270
      %2472 = vmatpush.bf16.xpose.msra.mxu0 %v2266
      %2473 = vmatpush.bf16.xpose.msra.mxu0 %v2262
      %2474 = vmatpush.bf16.xpose.msra.mxu0 %v2258
      %2475 = vmatmul.bf16.gmra.mxu0 %v2447
      %v2476 = vpop.f32.mrf.mxu0
      %v2477 = vadd.f32 %v2464, %v2476
      %v2478 = vpop.f32.mrf.mxu0
      %2479 = vdwg.mxu0
      %2480 = vmatpush.bf16.xpose.msra.mxu0 %v2287
      %2481 = vmatpush.bf16.xpose.msra.mxu0 %v2283
      %2482 = vmatpush.bf16.xpose.msra.mxu0 %v2279
      %2483 = vmatpush.bf16.xpose.msra.mxu0 %v2275
      %2484 = vmatpush.bf16.xpose.msra.mxu0 %v2271
      %2485 = vmatpush.bf16.xpose.msra.mxu0 %v2267
      %2486 = vmatpush.bf16.xpose.msra.mxu0 %v2263
      %2487 = vmatpush.bf16.xpose.msra.mxu0 %v2259
      %2488 = vmatmul.bf16.gmra.mxu0 %v2448
      %v2489 = vpop.f32.mrf.mxu0
      %v2490 = vadd.f32 %v2477, %v2489
      %v2491 = vpop.f32.mrf.mxu0
      %2492 = vdwg.mxu0
      %2493 = vmatpush.bf16.xpose.msra.mxu0 %v2288
      %2494 = vmatpush.bf16.xpose.msra.mxu0 %v2284
      %2495 = vmatpush.bf16.xpose.msra.mxu0 %v2280
      %2496 = vmatpush.bf16.xpose.msra.mxu0 %v2276
      %2497 = vmatpush.bf16.xpose.msra.mxu0 %v2272
      %2498 = vmatpush.bf16.xpose.msra.mxu0 %v2268
      %2499 = vmatpush.bf16.xpose.msra.mxu0 %v2264
      %2500 = vmatpush.bf16.xpose.msra.mxu0 %v2260
      %2501 = vmatmul.bf16.gmra.mxu0 %v2449
      %v2502 = vpop.f32.mrf.mxu0
      %v2503 = vadd.f32 %v2490, %v2502
      %v2504 = vpop.f32.mrf.mxu0
      %2505 = vdwg.mxu0
      %v2506 = vperm.slane %v2503, 0
      %v2507 = vadd.f32 %v2367, %v2506
      %v2508 = vadd.f32 %v2372, %v2506
      %v2509 = vadd.f32 %v2377, %v2506
      %v2510 = vadd.f32 %v2382, %v2506
      %v2511 = vadd.f32 %v2387, %v2506
      %v2512 = vadd.f32 %v2392, %v2506
      %v2513 = vadd.f32 %v2397, %v2506
      %v2514 = vadd.f32 %v2402, %v2506
      %v2515 = vadd.f32 %v2407, %v2506
      %v2516 = vadd.f32 %v2412, %v2506
      %v2517 = vadd.f32 %v2417, %v2506
      %v2518 = vadd.f32 %v2422, %v2506
      %v2519 = vadd.f32 %v2427, %v2506
      %v2520 = vadd.f32 %v2432, %v2506
      %v2521 = vadd.f32 %v2437, %v2506
      %v2522 = vadd.f32 %v2442, %v2506
      %vm2523 = vcmp.gt.f32.partialorder %v2507, 0.0
      %vm2524 = vcmp.gt.f32.partialorder %v2508, 0.0
      %vm2525 = vcmp.gt.f32.partialorder %v2509, 0.0
      %vm2526 = vcmp.gt.f32.partialorder %v2510, 0.0
      %vm2527 = vcmp.gt.f32.partialorder %v2511, 0.0
      %vm2528 = vcmp.gt.f32.partialorder %v2512, 0.0
      %vm2529 = vcmp.gt.f32.partialorder %v2513, 0.0
      %vm2530 = vcmp.gt.f32.partialorder %v2514, 0.0
      %vm2531 = vcmp.gt.f32.partialorder %v2515, 0.0
      %vm2532 = vcmp.gt.f32.partialorder %v2516, 0.0
      %vm2533 = vcmp.gt.f32.partialorder %v2517, 0.0
      %vm2534 = vcmp.gt.f32.partialorder %v2518, 0.0
      %vm2535 = vcmp.gt.f32.partialorder %v2519, 0.0
      %vm2536 = vcmp.gt.f32.partialorder %v2520, 0.0
      %vm2537 = vcmp.gt.f32.partialorder %v2521, 0.0
      %vm2538 = vcmp.gt.f32.partialorder %v2522, 0.0
      %v2539 = vmul.f32 %v2507, 0.2
      %v2540 = vmul.f32 %v2508, 0.2
      %v2541 = vmul.f32 %v2509, 0.2
      %v2542 = vmul.f32 %v2510, 0.2
      %v2543 = vmul.f32 %v2511, 0.2
      %v2544 = vmul.f32 %v2512, 0.2
      %v2545 = vmul.f32 %v2513, 0.2
      %v2546 = vmul.f32 %v2514, 0.2
      %v2547 = vmul.f32 %v2515, 0.2
      %v2548 = vmul.f32 %v2516, 0.2
      %v2549 = vmul.f32 %v2517, 0.2
      %v2550 = vmul.f32 %v2518, 0.2
      %v2551 = vmul.f32 %v2519, 0.2
      %v2552 = vmul.f32 %v2520, 0.2
      %v2553 = vmul.f32 %v2521, 0.2
      %v2554 = vmul.f32 %v2522, 0.2
      %v2555 = vsel %vm2523, %v2507, %v2539
      %v2556 = vsel %vm2524, %v2508, %v2540
      %v2557 = vsel %vm2525, %v2509, %v2541
      %v2558 = vsel %vm2526, %v2510, %v2542
      %v2559 = vsel %vm2527, %v2511, %v2543
      %v2560 = vsel %vm2528, %v2512, %v2544
      %v2561 = vsel %vm2529, %v2513, %v2545
      %v2562 = vsel %vm2530, %v2514, %v2546
      %v2563 = vsel %vm2531, %v2515, %v2547
      %v2564 = vsel %vm2532, %v2516, %v2548
      %v2565 = vsel %vm2533, %v2517, %v2549
      %v2566 = vsel %vm2534, %v2518, %v2550
      %v2567 = vsel %vm2535, %v2519, %v2551
      %v2568 = vsel %vm2536, %v2520, %v2552
      %v2569 = vsel %vm2537, %v2521, %v2553
      %v2570 = vsel %vm2538, %v2522, %v2554
      %v2571 = vadd.f32 %v2555, %v529
      %v2572 = vadd.f32 %v2556, %v530
      %v2573 = vadd.f32 %v2557, %v531
      %v2574 = vadd.f32 %v2558, %v532
      %v2575 = vadd.f32 %v2559, %v533
      %v2576 = vadd.f32 %v2560, %v534
      %v2577 = vadd.f32 %v2561, %v535
      %v2578 = vadd.f32 %v2562, %v536
      %v2579 = vadd.f32 %v2563, %v537
      %v2580 = vadd.f32 %v2564, %v538
      %v2581 = vadd.f32 %v2565, %v539
      %v2582 = vadd.f32 %v2566, %v540
      %v2583 = vadd.f32 %v2567, %v541
      %v2584 = vadd.f32 %v2568, %v542
      %v2585 = vadd.f32 %v2569, %v543
      %v2586 = vadd.f32 %v2570, %v544
      %2587 = vmax.xlane.f32.xlu0 %v2571
      %v2588 = vpop.xlane.xlu0 %2587
      %2589 = vmax.xlane.f32.xlu0 %v2572
      %v2590 = vpop.xlane.xlu0 %2589
      %2591 = vmax.xlane.f32.xlu0 %v2573
      %v2592 = vpop.xlane.xlu0 %2591
      %2593 = vmax.xlane.f32.xlu0 %v2574
      %v2594 = vpop.xlane.xlu0 %2593
      %2595 = vmax.xlane.f32.xlu0 %v2575
      %v2596 = vpop.xlane.xlu0 %2595
      %2597 = vmax.xlane.f32.xlu0 %v2576
      %v2598 = vpop.xlane.xlu0 %2597
      %2599 = vmax.xlane.f32.xlu0 %v2577
      %v2600 = vpop.xlane.xlu0 %2599
      %2601 = vmax.xlane.f32.xlu0 %v2578
      %v2602 = vpop.xlane.xlu0 %2601
      %2603 = vmax.xlane.f32.xlu0 %v2579
      %v2604 = vpop.xlane.xlu0 %2603
      %2605 = vmax.xlane.f32.xlu0 %v2580
      %v2606 = vpop.xlane.xlu0 %2605
      %2607 = vmax.xlane.f32.xlu0 %v2581
      %v2608 = vpop.xlane.xlu0 %2607
      %2609 = vmax.xlane.f32.xlu0 %v2582
      %v2610 = vpop.xlane.xlu0 %2609
      %2611 = vmax.xlane.f32.xlu0 %v2583
      %v2612 = vpop.xlane.xlu0 %2611
      %2613 = vmax.xlane.f32.xlu0 %v2584
      %v2614 = vpop.xlane.xlu0 %2613
      %2615 = vmax.xlane.f32.xlu0 %v2585
      %v2616 = vpop.xlane.xlu0 %2615
      %2617 = vmax.xlane.f32.xlu0 %v2586
      %v2618 = vpop.xlane.xlu0 %2617
      %v2619 = vsub.f32 %v2571, %v2588
      %v2620 = vsub.f32 %v2572, %v2590
      %v2621 = vsub.f32 %v2573, %v2592
      %v2622 = vsub.f32 %v2574, %v2594
      %v2623 = vsub.f32 %v2575, %v2596
      %v2624 = vsub.f32 %v2576, %v2598
      %v2625 = vsub.f32 %v2577, %v2600
      %v2626 = vsub.f32 %v2578, %v2602
      %v2627 = vsub.f32 %v2579, %v2604
      %v2628 = vsub.f32 %v2580, %v2606
      %v2629 = vsub.f32 %v2581, %v2608
      %v2630 = vsub.f32 %v2582, %v2610
      %v2631 = vsub.f32 %v2583, %v2612
      %v2632 = vsub.f32 %v2584, %v2614
      %v2633 = vsub.f32 %v2585, %v2616
      %v2634 = vsub.f32 %v2586, %v2618
      %v2635 = vmul.f32 %v2619, 1.442695
      %v2636 = vpow.pop %v2635
      %v2637 = vmul.f32 %v2620, 1.442695
      %v2638 = vpow.pop %v2637
      %v2639 = vmul.f32 %v2621, 1.442695
      %v2640 = vpow.pop %v2639
      %v2641 = vmul.f32 %v2622, 1.442695
      %v2642 = vpow.pop %v2641
      %v2643 = vmul.f32 %v2623, 1.442695
      %v2644 = vpow.pop %v2643
      %v2645 = vmul.f32 %v2624, 1.442695
      %v2646 = vpow.pop %v2645
      %v2647 = vmul.f32 %v2625, 1.442695
      %v2648 = vpow.pop %v2647
      %v2649 = vmul.f32 %v2626, 1.442695
      %v2650 = vpow.pop %v2649
      %v2651 = vmul.f32 %v2627, 1.442695
      %v2652 = vpow.pop %v2651
      %v2653 = vmul.f32 %v2628, 1.442695
      %v2654 = vpow.pop %v2653
      %v2655 = vmul.f32 %v2629, 1.442695
      %v2656 = vpow.pop %v2655
      %v2657 = vmul.f32 %v2630, 1.442695
      %v2658 = vpow.pop %v2657
      %v2659 = vmul.f32 %v2631, 1.442695
      %v2660 = vpow.pop %v2659
      %v2661 = vmul.f32 %v2632, 1.442695
      %v2662 = vpow.pop %v2661
      %v2663 = vmul.f32 %v2633, 1.442695
      %v2664 = vpow.pop %v2663
      %v2665 = vmul.f32 %v2634, 1.442695
      %v2666 = vpow.pop %v2665
      %2667 = vadd.xlane.f32.xlu0 %v2636
      %v2668 = vpop.xlane.xlu0 %2667
      %2669 = vadd.xlane.f32.xlu0 %v2638
      %v2670 = vpop.xlane.xlu0 %2669
      %2671 = vadd.xlane.f32.xlu0 %v2640
      %v2672 = vpop.xlane.xlu0 %2671
      %2673 = vadd.xlane.f32.xlu0 %v2642
      %v2674 = vpop.xlane.xlu0 %2673
      %2675 = vadd.xlane.f32.xlu0 %v2644
      %v2676 = vpop.xlane.xlu0 %2675
      %2677 = vadd.xlane.f32.xlu0 %v2646
      %v2678 = vpop.xlane.xlu0 %2677
      %2679 = vadd.xlane.f32.xlu0 %v2648
      %v2680 = vpop.xlane.xlu0 %2679
      %2681 = vadd.xlane.f32.xlu0 %v2650
      %v2682 = vpop.xlane.xlu0 %2681
      %2683 = vadd.xlane.f32.xlu0 %v2652
      %v2684 = vpop.xlane.xlu0 %2683
      %2685 = vadd.xlane.f32.xlu0 %v2654
      %v2686 = vpop.xlane.xlu0 %2685
      %2687 = vadd.xlane.f32.xlu0 %v2656
      %v2688 = vpop.xlane.xlu0 %2687
      %2689 = vadd.xlane.f32.xlu0 %v2658
      %v2690 = vpop.xlane.xlu0 %2689
      %2691 = vadd.xlane.f32.xlu0 %v2660
      %v2692 = vpop.xlane.xlu0 %2691
      %2693 = vadd.xlane.f32.xlu0 %v2662
      %v2694 = vpop.xlane.xlu0 %2693
      %2695 = vadd.xlane.f32.xlu0 %v2664
      %v2696 = vpop.xlane.xlu0 %2695
      %2697 = vadd.xlane.f32.xlu0 %v2666
      %v2698 = vpop.xlane.xlu0 %2697
      %v2699 = vrcp.pop %v2668
      %v2700 = vrcp.pop %v2670
      %v2701 = vrcp.pop %v2672
      %v2702 = vrcp.pop %v2674
      %v2703 = vrcp.pop %v2676
      %v2704 = vrcp.pop %v2678
      %v2705 = vrcp.pop %v2680
      %v2706 = vrcp.pop %v2682
      %v2707 = vrcp.pop %v2684
      %v2708 = vrcp.pop %v2686
      %v2709 = vrcp.pop %v2688
      %v2710 = vrcp.pop %v2690
      %v2711 = vrcp.pop %v2692
      %v2712 = vrcp.pop %v2694
      %v2713 = vrcp.pop %v2696
      %v2714 = vrcp.pop %v2698
      %v2715 = vmul.f32 %v2636, %v2699
      %v2716 = vmul.f32 %v2638, %v2700
      %v2717 = vmul.f32 %v2640, %v2701
      %v2718 = vmul.f32 %v2642, %v2702
      %v2719 = vmul.f32 %v2644, %v2703
      %v2720 = vmul.f32 %v2646, %v2704
      %v2721 = vmul.f32 %v2648, %v2705
      %v2722 = vmul.f32 %v2650, %v2706
      %v2723 = vmul.f32 %v2652, %v2707
      %v2724 = vmul.f32 %v2654, %v2708
      %v2725 = vmul.f32 %v2656, %v2709
      %v2726 = vmul.f32 %v2658, %v2710
      %v2727 = vmul.f32 %v2660, %v2711
      %v2728 = vmul.f32 %v2662, %v2712
      %v2729 = vmul.f32 %v2664, %v2713
      %v2730 = vmul.f32 %v2666, %v2714
      %v2731 = vpack.c.bf16 %v2716, %v2715
      %v2732 = vpack.c.bf16 %v2718, %v2717
      %v2733 = vpack.c.bf16 %v2720, %v2719
      %v2734 = vpack.c.bf16 %v2722, %v2721
      %v2735 = vpack.c.bf16 %v2724, %v2723
      %v2736 = vpack.c.bf16 %v2726, %v2725
      %v2737 = vpack.c.bf16 %v2728, %v2727
      %v2738 = vpack.c.bf16 %v2730, %v2729
      %v2739 = vld [vmem:[%s5] sm:$0xf]
      %v2741 = vperm.slane %v2739, 0
      %v2742 = vperm.slane %v2739, 1
      %v2743 = vperm.slane %v2739, 2
      %v2744 = vperm.slane %v2739, 3
      %2749 = vmatpush.bf16.msra.mxu0 %v2285
      %2750 = vmatpush.bf16.msra.mxu0 %v2281
      %2751 = vmatpush.bf16.msra.mxu0 %v2277
      %2752 = vmatpush.bf16.msra.mxu0 %v2273
      %2753 = vmatpush.bf16.msra.mxu0 %v2269
      %2754 = vmatpush.bf16.msra.mxu0 %v2265
      %2755 = vmatpush.bf16.msra.mxu0 %v2261
      %2756 = vmatpush.bf16.msra.mxu0 %v2257
      %2757 = vmatmul.bf16.gmra.mxu0 %v2731
      %v2758 = vpop.f32.mrf.mxu0
      %v2759 = vadd.f32 %v2741, %v2758
      %v2760 = vpop.f32.mrf.mxu0
      %v2761 = vadd.f32 %v2741, %v2760
      %2762 = vmatmul.bf16.gmra.mxu0 %v2732
      %v2763 = vpop.f32.mrf.mxu0
      %v2764 = vadd.f32 %v2741, %v2763
      %v2765 = vpop.f32.mrf.mxu0
      %v2766 = vadd.f32 %v2741, %v2765
      %2767 = vmatmul.bf16.gmra.mxu0 %v2733
      %v2768 = vpop.f32.mrf.mxu0
      %v2769 = vadd.f32 %v2741, %v2768
      %v2770 = vpop.f32.mrf.mxu0
      %v2771 = vadd.f32 %v2741, %v2770
      %2772 = vmatmul.bf16.gmra.mxu0 %v2734
      %v2773 = vpop.f32.mrf.mxu0
      %v2774 = vadd.f32 %v2741, %v2773
      %v2775 = vpop.f32.mrf.mxu0
      %v2776 = vadd.f32 %v2741, %v2775
      %2777 = vmatmul.bf16.gmra.mxu0 %v2735
      %v2778 = vpop.f32.mrf.mxu0
      %v2779 = vadd.f32 %v2741, %v2778
      %v2780 = vpop.f32.mrf.mxu0
      %v2781 = vadd.f32 %v2741, %v2780
      %2782 = vmatmul.bf16.gmra.mxu0 %v2736
      %v2783 = vpop.f32.mrf.mxu0
      %v2784 = vadd.f32 %v2741, %v2783
      %v2785 = vpop.f32.mrf.mxu0
      %v2786 = vadd.f32 %v2741, %v2785
      %2787 = vmatmul.bf16.gmra.mxu0 %v2737
      %v2788 = vpop.f32.mrf.mxu0
      %v2789 = vadd.f32 %v2741, %v2788
      %v2790 = vpop.f32.mrf.mxu0
      %v2791 = vadd.f32 %v2741, %v2790
      %2792 = vmatmul.bf16.gmra.mxu0 %v2738
      %v2793 = vpop.f32.mrf.mxu0
      %v2794 = vadd.f32 %v2741, %v2793
      %v2795 = vpop.f32.mrf.mxu0
      %v2796 = vadd.f32 %v2741, %v2795
      %2797 = vdwg.mxu0
      %2798 = vmatpush.bf16.msra.mxu0 %v2286
      %2799 = vmatpush.bf16.msra.mxu0 %v2282
      %2800 = vmatpush.bf16.msra.mxu0 %v2278
      %2801 = vmatpush.bf16.msra.mxu0 %v2274
      %2802 = vmatpush.bf16.msra.mxu0 %v2270
      %2803 = vmatpush.bf16.msra.mxu0 %v2266
      %2804 = vmatpush.bf16.msra.mxu0 %v2262
      %2805 = vmatpush.bf16.msra.mxu0 %v2258
      %2806 = vmatmul.bf16.gmra.mxu0 %v2731
      %v2807 = vpop.f32.mrf.mxu0
      %v2808 = vadd.f32 %v2742, %v2807
      %v2809 = vpop.f32.mrf.mxu0
      %v2810 = vadd.f32 %v2742, %v2809
      %2811 = vmatmul.bf16.gmra.mxu0 %v2732
      %v2812 = vpop.f32.mrf.mxu0
      %v2813 = vadd.f32 %v2742, %v2812
      %v2814 = vpop.f32.mrf.mxu0
      %v2815 = vadd.f32 %v2742, %v2814
      %2816 = vmatmul.bf16.gmra.mxu0 %v2733
      %v2817 = vpop.f32.mrf.mxu0
      %v2818 = vadd.f32 %v2742, %v2817
      %v2819 = vpop.f32.mrf.mxu0
      %v2820 = vadd.f32 %v2742, %v2819
      %2821 = vmatmul.bf16.gmra.mxu0 %v2734
      %v2822 = vpop.f32.mrf.mxu0
      %v2823 = vadd.f32 %v2742, %v2822
      %v2824 = vpop.f32.mrf.mxu0
      %v2825 = vadd.f32 %v2742, %v2824
      %2826 = vmatmul.bf16.gmra.mxu0 %v2735
      %v2827 = vpop.f32.mrf.mxu0
      %v2828 = vadd.f32 %v2742, %v2827
      %v2829 = vpop.f32.mrf.mxu0
      %v2830 = vadd.f32 %v2742, %v2829
      %2831 = vmatmul.bf16.gmra.mxu0 %v2736
      %v2832 = vpop.f32.mrf.mxu0
      %v2833 = vadd.f32 %v2742, %v2832
      %v2834 = vpop.f32.mrf.mxu0
      %v2835 = vadd.f32 %v2742, %v2834
      %2836 = vmatmul.bf16.gmra.mxu0 %v2737
      %v2837 = vpop.f32.mrf.mxu0
      %v2838 = vadd.f32 %v2742, %v2837
      %v2839 = vpop.f32.mrf.mxu0
      %v2840 = vadd.f32 %v2742, %v2839
      %2841 = vmatmul.bf16.gmra.mxu0 %v2738
      %v2842 = vpop.f32.mrf.mxu0
      %v2843 = vadd.f32 %v2742, %v2842
      %v2844 = vpop.f32.mrf.mxu0
      %v2845 = vadd.f32 %v2742, %v2844
      %2846 = vdwg.mxu0
      %2847 = vmatpush.bf16.msra.mxu0 %v2287
      %2848 = vmatpush.bf16.msra.mxu0 %v2283
      %2849 = vmatpush.bf16.msra.mxu0 %v2279
      %2850 = vmatpush.bf16.msra.mxu0 %v2275
      %2851 = vmatpush.bf16.msra.mxu0 %v2271
      %2852 = vmatpush.bf16.msra.mxu0 %v2267
      %2853 = vmatpush.bf16.msra.mxu0 %v2263
      %2854 = vmatpush.bf16.msra.mxu0 %v2259
      %2855 = vmatmul.bf16.gmra.mxu0 %v2731
      %v2856 = vpop.f32.mrf.mxu0
      %v2857 = vadd.f32 %v2743, %v2856
      %v2858 = vpop.f32.mrf.mxu0
      %v2859 = vadd.f32 %v2743, %v2858
      %2860 = vmatmul.bf16.gmra.mxu0 %v2732
      %v2861 = vpop.f32.mrf.mxu0
      %v2862 = vadd.f32 %v2743, %v2861
      %v2863 = vpop.f32.mrf.mxu0
      %v2864 = vadd.f32 %v2743, %v2863
      %2865 = vmatmul.bf16.gmra.mxu0 %v2733
      %v2866 = vpop.f32.mrf.mxu0
      %v2867 = vadd.f32 %v2743, %v2866
      %v2868 = vpop.f32.mrf.mxu0
      %v2869 = vadd.f32 %v2743, %v2868
      %2870 = vmatmul.bf16.gmra.mxu0 %v2734
      %v2871 = vpop.f32.mrf.mxu0
      %v2872 = vadd.f32 %v2743, %v2871
      %v2873 = vpop.f32.mrf.mxu0
      %v2874 = vadd.f32 %v2743, %v2873
      %2875 = vmatmul.bf16.gmra.mxu0 %v2735
      %v2876 = vpop.f32.mrf.mxu0
      %v2877 = vadd.f32 %v2743, %v2876
      %v2878 = vpop.f32.mrf.mxu0
      %v2879 = vadd.f32 %v2743, %v2878
      %2880 = vmatmul.bf16.gmra.mxu0 %v2736
      %v2881 = vpop.f32.mrf.mxu0
      %v2882 = vadd.f32 %v2743, %v2881
      %v2883 = vpop.f32.mrf.mxu0
      %v2884 = vadd.f32 %v2743, %v2883
      %2885 = vmatmul.bf16.gmra.mxu0 %v2737
      %v2886 = vpop.f32.mrf.mxu0
      %v2887 = vadd.f32 %v2743, %v2886
      %v2888 = vpop.f32.mrf.mxu0
      %v2889 = vadd.f32 %v2743, %v2888
      %2890 = vmatmul.bf16.gmra.mxu0 %v2738
      %v2891 = vpop.f32.mrf.mxu0
      %v2892 = vadd.f32 %v2743, %v2891
      %v2893 = vpop.f32.mrf.mxu0
      %v2894 = vadd.f32 %v2743, %v2893
      %2895 = vdwg.mxu0
      %2896 = vmatpush.bf16.msra.mxu0 %v2288
      %2897 = vmatpush.bf16.msra.mxu0 %v2284
      %2898 = vmatpush.bf16.msra.mxu0 %v2280
      %2899 = vmatpush.bf16.msra.mxu0 %v2276
      %2900 = vmatpush.bf16.msra.mxu0 %v2272
      %2901 = vmatpush.bf16.msra.mxu0 %v2268
      %2902 = vmatpush.bf16.msra.mxu0 %v2264
      %2903 = vmatpush.bf16.msra.mxu0 %v2260
      %2904 = vmatmul.bf16.gmra.mxu0 %v2731
      %v2905 = vpop.f32.mrf.mxu0
      %v2906 = vadd.f32 %v2744, %v2905
      %v2907 = vpop.f32.mrf.mxu0
      %v2908 = vadd.f32 %v2744, %v2907
      %2909 = vmatmul.bf16.gmra.mxu0 %v2732
      %v2910 = vpop.f32.mrf.mxu0
      %v2911 = vadd.f32 %v2744, %v2910
      %v2912 = vpop.f32.mrf.mxu0
      %v2913 = vadd.f32 %v2744, %v2912
      %2914 = vmatmul.bf16.gmra.mxu0 %v2733
      %v2915 = vpop.f32.mrf.mxu0
      %v2916 = vadd.f32 %v2744, %v2915
      %v2917 = vpop.f32.mrf.mxu0
      %v2918 = vadd.f32 %v2744, %v2917
      %2919 = vmatmul.bf16.gmra.mxu0 %v2734
      %v2920 = vpop.f32.mrf.mxu0
      %v2921 = vadd.f32 %v2744, %v2920
      %v2922 = vpop.f32.mrf.mxu0
      %v2923 = vadd.f32 %v2744, %v2922
      %2924 = vmatmul.bf16.gmra.mxu0 %v2735
      %v2925 = vpop.f32.mrf.mxu0
      %v2926 = vadd.f32 %v2744, %v2925
      %v2927 = vpop.f32.mrf.mxu0
      %v2928 = vadd.f32 %v2744, %v2927
      %2929 = vmatmul.bf16.gmra.mxu0 %v2736
      %v2930 = vpop.f32.mrf.mxu0
      %v2931 = vadd.f32 %v2744, %v2930
      %v2932 = vpop.f32.mrf.mxu0
      %v2933 = vadd.f32 %v2744, %v2932
      %2934 = vmatmul.bf16.gmra.mxu0 %v2737
      %v2935 = vpop.f32.mrf.mxu0
      %v2936 = vadd.f32 %v2744, %v2935
      %v2937 = vpop.f32.mrf.mxu0
      %v2938 = vadd.f32 %v2744, %v2937
      %2939 = vmatmul.bf16.gmra.mxu0 %v2738
      %v2940 = vpop.f32.mrf.mxu0
      %v2941 = vadd.f32 %v2744, %v2940
      %v2942 = vpop.f32.mrf.mxu0
      %v2943 = vadd.f32 %v2744, %v2942
      %2944 = vdwg.mxu0
      %v2945 = vmax.f32 %v2759, 0.0
      %v2946 = vmax.f32 %v2808, 0.0
      %v2947 = vmax.f32 %v2857, 0.0
      %v2948 = vmax.f32 %v2906, 0.0
      %v2949 = vmax.f32 %v2761, 0.0
      %v2950 = vmax.f32 %v2810, 0.0
      %v2951 = vmax.f32 %v2859, 0.0
      %v2952 = vmax.f32 %v2908, 0.0
      %v2953 = vmax.f32 %v2764, 0.0
      %v2954 = vmax.f32 %v2813, 0.0
      %v2955 = vmax.f32 %v2862, 0.0
      %v2956 = vmax.f32 %v2911, 0.0
      %v2957 = vmax.f32 %v2766, 0.0
      %v2958 = vmax.f32 %v2815, 0.0
      %v2959 = vmax.f32 %v2864, 0.0
      %v2960 = vmax.f32 %v2913, 0.0
      %v2961 = vmax.f32 %v2769, 0.0
      %v2962 = vmax.f32 %v2818, 0.0
      %v2963 = vmax.f32 %v2867, 0.0
      %v2964 = vmax.f32 %v2916, 0.0
      %v2965 = vmax.f32 %v2771, 0.0
      %v2966 = vmax.f32 %v2820, 0.0
      %v2967 = vmax.f32 %v2869, 0.0
      %v2968 = vmax.f32 %v2918, 0.0
      %v2969 = vmax.f32 %v2774, 0.0
      %v2970 = vmax.f32 %v2823, 0.0
      %v2971 = vmax.f32 %v2872, 0.0
      %v2972 = vmax.f32 %v2921, 0.0
      %v2973 = vmax.f32 %v2776, 0.0
      %v2974 = vmax.f32 %v2825, 0.0
      %v2975 = vmax.f32 %v2874, 0.0
      %v2976 = vmax.f32 %v2923, 0.0
      %v2977 = vmax.f32 %v2779, 0.0
      %v2978 = vmax.f32 %v2828, 0.0
      %v2979 = vmax.f32 %v2877, 0.0
      %v2980 = vmax.f32 %v2926, 0.0
      %v2981 = vmax.f32 %v2781, 0.0
      %v2982 = vmax.f32 %v2830, 0.0
      %v2983 = vmax.f32 %v2879, 0.0
      %v2984 = vmax.f32 %v2928, 0.0
      %v2985 = vmax.f32 %v2784, 0.0
      %v2986 = vmax.f32 %v2833, 0.0
      %v2987 = vmax.f32 %v2882, 0.0
      %v2988 = vmax.f32 %v2931, 0.0
      %v2989 = vmax.f32 %v2786, 0.0
      %v2990 = vmax.f32 %v2835, 0.0
      %v2991 = vmax.f32 %v2884, 0.0
      %v2992 = vmax.f32 %v2933, 0.0
      %v2993 = vmax.f32 %v2789, 0.0
      %v2994 = vmax.f32 %v2838, 0.0
      %v2995 = vmax.f32 %v2887, 0.0
      %v2996 = vmax.f32 %v2936, 0.0
      %v2997 = vmax.f32 %v2791, 0.0
      %v2998 = vmax.f32 %v2840, 0.0
      %v2999 = vmax.f32 %v2889, 0.0
      %v3000 = vmax.f32 %v2938, 0.0
      %v3001 = vmax.f32 %v2794, 0.0
      %v3002 = vmax.f32 %v2843, 0.0
      %v3003 = vmax.f32 %v2892, 0.0
      %v3004 = vmax.f32 %v2941, 0.0
      %v3005 = vmax.f32 %v2796, 0.0
      %v3006 = vmax.f32 %v2845, 0.0
      %v3007 = vmax.f32 %v2894, 0.0
      %v3008 = vmax.f32 %v2943, 0.0
      %v3009 = vpack.c.bf16 %v2949, %v2945
      %v3010 = vpack.c.bf16 %v2950, %v2946
      %v3011 = vpack.c.bf16 %v2951, %v2947
      %v3012 = vpack.c.bf16 %v2952, %v2948
      %v3013 = vpack.c.bf16 %v2957, %v2953
      %v3014 = vpack.c.bf16 %v2958, %v2954
      %v3015 = vpack.c.bf16 %v2959, %v2955
      %v3016 = vpack.c.bf16 %v2960, %v2956
      %v3017 = vpack.c.bf16 %v2965, %v2961
      %v3018 = vpack.c.bf16 %v2966, %v2962
      %v3019 = vpack.c.bf16 %v2967, %v2963
      %v3020 = vpack.c.bf16 %v2968, %v2964
      %v3021 = vpack.c.bf16 %v2973, %v2969
      %v3022 = vpack.c.bf16 %v2974, %v2970
      %v3023 = vpack.c.bf16 %v2975, %v2971
      %v3024 = vpack.c.bf16 %v2976, %v2972
      %v3025 = vpack.c.bf16 %v2981, %v2977
      %v3026 = vpack.c.bf16 %v2982, %v2978
      %v3027 = vpack.c.bf16 %v2983, %v2979
      %v3028 = vpack.c.bf16 %v2984, %v2980
      %v3029 = vpack.c.bf16 %v2989, %v2985
      %v3030 = vpack.c.bf16 %v2990, %v2986
      %v3031 = vpack.c.bf16 %v2991, %v2987
      %v3032 = vpack.c.bf16 %v2992, %v2988
      %v3033 = vpack.c.bf16 %v2997, %v2993
      %v3034 = vpack.c.bf16 %v2998, %v2994
      %v3035 = vpack.c.bf16 %v2999, %v2995
      %v3036 = vpack.c.bf16 %v3000, %v2996
      %v3037 = vpack.c.bf16 %v3005, %v3001
      %v3038 = vpack.c.bf16 %v3006, %v3002
      %v3039 = vpack.c.bf16 %v3007, %v3003
      %v3040 = vpack.c.bf16 %v3008, %v3004
      %v3041 = vld [vmem:[%s6] sm:$0xff]
      %v3042 = vld [vmem:[%s6 + $0x8] sm:$0xff]
      %v3043 = vld [vmem:[%s6 + $0x10] sm:$0xff]
      %v3044 = vld [vmem:[%s6 + $0x18] sm:$0xff]
      %v3045 = vld [vmem:[%s6 + $0x20] sm:$0xff]
      %v3046 = vld [vmem:[%s6 + $0x28] sm:$0xff]
      %v3047 = vld [vmem:[%s6 + $0x30] sm:$0xff]
      %v3048 = vld [vmem:[%s6 + $0x38] sm:$0xff]
      %v3049 = vld [vmem:[%s6 + $0x40] sm:$0xff]
      %v3050 = vld [vmem:[%s6 + $0x48] sm:$0xff]
      %v3051 = vld [vmem:[%s6 + $0x50] sm:$0xff]
      %v3052 = vld [vmem:[%s6 + $0x58] sm:$0xff]
      %v3053 = vld [vmem:[%s6 + $0x60] sm:$0xff]
      %v3054 = vld [vmem:[%s6 + $0x68] sm:$0xff]
      %v3055 = vld [vmem:[%s6 + $0x70] sm:$0xff]
      %v3056 = vld [vmem:[%s6 + $0x78] sm:$0xff]
      %v3057 = vld [vmem:[%s6 + $0x80] sm:$0xff]
      %v3058 = vld [vmem:[%s6 + $0x88] sm:$0xff]
      %v3059 = vld [vmem:[%s6 + $0x90] sm:$0xff]
      %v3060 = vld [vmem:[%s6 + $0x98] sm:$0xff]
      %v3061 = vld [vmem:[%s6 + $0xa0] sm:$0xff]
      %v3062 = vld [vmem:[%s6 + $0xa8] sm:$0xff]
      %v3063 = vld [vmem:[%s6 + $0xb0] sm:$0xff]
      %v3064 = vld [vmem:[%s6 + $0xb8] sm:$0xff]
      %v3065 = vld [vmem:[%s6 + $0xc0] sm:$0xff]
      %v3066 = vld [vmem:[%s6 + $0xc8] sm:$0xff]
      %v3067 = vld [vmem:[%s6 + $0xd0] sm:$0xff]
      %v3068 = vld [vmem:[%s6 + $0xd8] sm:$0xff]
      %v3069 = vld [vmem:[%s6 + $0xe0] sm:$0xff]
      %v3070 = vld [vmem:[%s6 + $0xe8] sm:$0xff]
      %v3071 = vld [vmem:[%s6 + $0xf0] sm:$0xff]
      %v3072 = vld [vmem:[%s6 + $0xf8] sm:$0xff]
      %v3073 = vld [vmem:[%s6 + $0x100] sm:$0xff]
      %v3074 = vld [vmem:[%s6 + $0x108] sm:$0xff]
      %v3075 = vld [vmem:[%s6 + $0x110] sm:$0xff]
      %v3076 = vld [vmem:[%s6 + $0x118] sm:$0xff]
      %v3077 = vld [vmem:[%s6 + $0x120] sm:$0xff]
      %v3078 = vld [vmem:[%s6 + $0x128] sm:$0xff]
      %v3079 = vld [vmem:[%s6 + $0x130] sm:$0xff]
      %v3080 = vld [vmem:[%s6 + $0x138] sm:$0xff]
      %v3081 = vld [vmem:[%s6 + $0x140] sm:$0xff]
      %v3082 = vld [vmem:[%s6 + $0x148] sm:$0xff]
      %v3083 = vld [vmem:[%s6 + $0x150] sm:$0xff]
      %v3084 = vld [vmem:[%s6 + $0x158] sm:$0xff]
      %v3085 = vld [vmem:[%s6 + $0x160] sm:$0xff]
      %v3086 = vld [vmem:[%s6 + $0x168] sm:$0xff]
      %v3087 = vld [vmem:[%s6 + $0x170] sm:$0xff]
      %v3088 = vld [vmem:[%s6 + $0x178] sm:$0xff]
      %v3089 = vld [vmem:[%s6 + $0x180] sm:$0xff]
      %v3090 = vld [vmem:[%s6 + $0x188] sm:$0xff]
      %v3091 = vld [vmem:[%s6 + $0x190] sm:$0xff]
      %v3092 = vld [vmem:[%s6 + $0x198] sm:$0xff]
      %v3093 = vld [vmem:[%s6 + $0x1a0] sm:$0xff]
      %v3094 = vld [vmem:[%s6 + $0x1a8] sm:$0xff]
      %v3095 = vld [vmem:[%s6 + $0x1b0] sm:$0xff]
      %v3096 = vld [vmem:[%s6 + $0x1b8] sm:$0xff]
      %v3097 = vld [vmem:[%s6 + $0x1c0] sm:$0xff]
      %v3098 = vld [vmem:[%s6 + $0x1c8] sm:$0xff]
      %v3099 = vld [vmem:[%s6 + $0x1d0] sm:$0xff]
      %v3100 = vld [vmem:[%s6 + $0x1d8] sm:$0xff]
      %v3101 = vld [vmem:[%s6 + $0x1e0] sm:$0xff]
      %v3102 = vld [vmem:[%s6 + $0x1e8] sm:$0xff]
      %v3103 = vld [vmem:[%s6 + $0x1f0] sm:$0xff]
      %v3104 = vld [vmem:[%s6 + $0x1f8] sm:$0xff]
      %v3105 = vld [vmem:[%s7] sm:$0x3]
      %v3107 = vperm.slane %v3105, 0
      %v3108 = vperm.slane %v3105, 1
      %v3175 = vunpack.c.l.b16 %v3041
      %v3176 = vunpack.c.h.b16 %v3041
      %v3177 = vunpack.c.l.b16 %v3042
      %v3178 = vunpack.c.h.b16 %v3042
      %v3179 = vunpack.c.l.b16 %v3043
      %v3180 = vunpack.c.h.b16 %v3043
      %v3181 = vunpack.c.l.b16 %v3044
      %v3182 = vunpack.c.h.b16 %v3044
      %v3183 = vunpack.c.l.b16 %v3045
      %v3184 = vunpack.c.h.b16 %v3045
      %v3185 = vunpack.c.l.b16 %v3046
      %v3186 = vunpack.c.h.b16 %v3046
      %v3187 = vunpack.c.l.b16 %v3047
      %v3188 = vunpack.c.h.b16 %v3047
      %v3189 = vunpack.c.l.b16 %v3048
      %v3190 = vunpack.c.h.b16 %v3048
      %v3191 = vunpack.c.l.b16 %v3049
      %v3192 = vunpack.c.h.b16 %v3049
      %v3193 = vunpack.c.l.b16 %v3050
      %v3194 = vunpack.c.h.b16 %v3050
      %v3195 = vunpack.c.l.b16 %v3051
      %v3196 = vunpack.c.h.b16 %v3051
      %v3197 = vunpack.c.l.b16 %v3052
      %v3198 = vunpack.c.h.b16 %v3052
      %v3199 = vunpack.c.l.b16 %v3053
      %v3200 = vunpack.c.h.b16 %v3053
      %v3201 = vunpack.c.l.b16 %v3054
      %v3202 = vunpack.c.h.b16 %v3054
      %v3203 = vunpack.c.l.b16 %v3055
      %v3204 = vunpack.c.h.b16 %v3055
      %v3205 = vunpack.c.l.b16 %v3056
      %v3206 = vunpack.c.h.b16 %v3056
      %v3207 = vunpack.c.l.b16 %v3057
      %v3208 = vunpack.c.h.b16 %v3057
      %v3209 = vunpack.c.l.b16 %v3058
      %v3210 = vunpack.c.h.b16 %v3058
      %v3211 = vunpack.c.l.b16 %v3059
      %v3212 = vunpack.c.h.b16 %v3059
      %v3213 = vunpack.c.l.b16 %v3060
      %v3214 = vunpack.c.h.b16 %v3060
      %v3215 = vunpack.c.l.b16 %v3061
      %v3216 = vunpack.c.h.b16 %v3061
      %v3217 = vunpack.c.l.b16 %v3062
      %v3218 = vunpack.c.h.b16 %v3062
      %v3219 = vunpack.c.l.b16 %v3063
      %v3220 = vunpack.c.h.b16 %v3063
      %v3221 = vunpack.c.l.b16 %v3064
      %v3222 = vunpack.c.h.b16 %v3064
      %v3223 = vunpack.c.l.b16 %v3065
      %v3224 = vunpack.c.h.b16 %v3065
      %v3225 = vunpack.c.l.b16 %v3066
      %v3226 = vunpack.c.h.b16 %v3066
      %v3227 = vunpack.c.l.b16 %v3067
      %v3228 = vunpack.c.h.b16 %v3067
      %v3229 = vunpack.c.l.b16 %v3068
      %v3230 = vunpack.c.h.b16 %v3068
      %v3231 = vunpack.c.l.b16 %v3069
      %v3232 = vunpack.c.h.b16 %v3069
      %v3233 = vunpack.c.l.b16 %v3070
      %v3234 = vunpack.c.h.b16 %v3070
      %v3235 = vunpack.c.l.b16 %v3071
      %v3236 = vunpack.c.h.b16 %v3071
      %v3237 = vunpack.c.l.b16 %v3072
      %v3238 = vunpack.c.h.b16 %v3072
      %v3239 = vunpack.c.l.b16 %v3073
      %v3240 = vunpack.c.h.b16 %v3073
      %v3241 = vunpack.c.l.b16 %v3074
      %v3242 = vunpack.c.h.b16 %v3074
      %v3243 = vunpack.c.l.b16 %v3075
      %v3244 = vunpack.c.h.b16 %v3075
      %v3245 = vunpack.c.l.b16 %v3076
      %v3246 = vunpack.c.h.b16 %v3076
      %v3247 = vunpack.c.l.b16 %v3077
      %v3248 = vunpack.c.h.b16 %v3077
      %v3249 = vunpack.c.l.b16 %v3078
      %v3250 = vunpack.c.h.b16 %v3078
      %v3251 = vunpack.c.l.b16 %v3079
      %v3252 = vunpack.c.h.b16 %v3079
      %v3253 = vunpack.c.l.b16 %v3080
      %v3254 = vunpack.c.h.b16 %v3080
      %v3255 = vunpack.c.l.b16 %v3081
      %v3256 = vunpack.c.h.b16 %v3081
      %v3257 = vunpack.c.l.b16 %v3082
      %v3258 = vunpack.c.h.b16 %v3082
      %v3259 = vunpack.c.l.b16 %v3083
      %v3260 = vunpack.c.h.b16 %v3083
      %v3261 = vunpack.c.l.b16 %v3084
      %v3262 = vunpack.c.h.b16 %v3084
      %v3263 = vunpack.c.l.b16 %v3085
      %v3264 = vunpack.c.h.b16 %v3085
      %v3265 = vunpack.c.l.b16 %v3086
      %v3266 = vunpack.c.h.b16 %v3086
      %v3267 = vunpack.c.l.b16 %v3087
      %v3268 = vunpack.c.h.b16 %v3087
      %v3269 = vunpack.c.l.b16 %v3088
      %v3270 = vunpack.c.h.b16 %v3088
      %v3271 = vunpack.c.l.b16 %v3089
      %v3272 = vunpack.c.h.b16 %v3089
      %v3273 = vunpack.c.l.b16 %v3090
      %v3274 = vunpack.c.h.b16 %v3090
      %v3275 = vunpack.c.l.b16 %v3091
      %v3276 = vunpack.c.h.b16 %v3091
      %v3277 = vunpack.c.l.b16 %v3092
      %v3278 = vunpack.c.h.b16 %v3092
      %v3279 = vunpack.c.l.b16 %v3093
      %v3280 = vunpack.c.h.b16 %v3093
      %v3281 = vunpack.c.l.b16 %v3094
      %v3282 = vunpack.c.h.b16 %v3094
      %v3283 = vunpack.c.l.b16 %v3095
      %v3284 = vunpack.c.h.b16 %v3095
      %v3285 = vunpack.c.l.b16 %v3096
      %v3286 = vunpack.c.h.b16 %v3096
      %v3287 = vunpack.c.l.b16 %v3097
      %v3288 = vunpack.c.h.b16 %v3097
      %v3289 = vunpack.c.l.b16 %v3098
      %v3290 = vunpack.c.h.b16 %v3098
      %v3291 = vunpack.c.l.b16 %v3099
      %v3292 = vunpack.c.h.b16 %v3099
      %v3293 = vunpack.c.l.b16 %v3100
      %v3294 = vunpack.c.h.b16 %v3100
      %v3295 = vunpack.c.l.b16 %v3101
      %v3296 = vunpack.c.h.b16 %v3101
      %v3297 = vunpack.c.l.b16 %v3102
      %v3298 = vunpack.c.h.b16 %v3102
      %v3299 = vunpack.c.l.b16 %v3103
      %v3300 = vunpack.c.h.b16 %v3103
      %v3301 = vunpack.c.l.b16 %v3104
      %v3302 = vunpack.c.h.b16 %v3104
      %v3303 = vpack.c.b16 %v3177, %v3175
      %v3304 = vpack.c.b16 %v3178, %v3176
      %v3305 = vpack.c.b16 %v3181, %v3179
      %v3306 = vpack.c.b16 %v3182, %v3180
      %v3307 = vpack.c.b16 %v3185, %v3183
      %v3308 = vpack.c.b16 %v3186, %v3184
      %v3309 = vpack.c.b16 %v3189, %v3187
      %v3310 = vpack.c.b16 %v3190, %v3188
      %v3311 = vpack.c.b16 %v3193, %v3191
      %v3312 = vpack.c.b16 %v3194, %v3192
      %v3313 = vpack.c.b16 %v3197, %v3195
      %v3314 = vpack.c.b16 %v3198, %v3196
      %v3315 = vpack.c.b16 %v3201, %v3199
      %v3316 = vpack.c.b16 %v3202, %v3200
      %v3317 = vpack.c.b16 %v3205, %v3203
      %v3318 = vpack.c.b16 %v3206, %v3204
      %v3319 = vpack.c.b16 %v3209, %v3207
      %v3320 = vpack.c.b16 %v3210, %v3208
      %v3321 = vpack.c.b16 %v3213, %v3211
      %v3322 = vpack.c.b16 %v3214, %v3212
      %v3323 = vpack.c.b16 %v3217, %v3215
      %v3324 = vpack.c.b16 %v3218, %v3216
      %v3325 = vpack.c.b16 %v3221, %v3219
      %v3326 = vpack.c.b16 %v3222, %v3220
      %v3327 = vpack.c.b16 %v3225, %v3223
      %v3328 = vpack.c.b16 %v3226, %v3224
      %v3329 = vpack.c.b16 %v3229, %v3227
      %v3330 = vpack.c.b16 %v3230, %v3228
      %v3331 = vpack.c.b16 %v3233, %v3231
      %v3332 = vpack.c.b16 %v3234, %v3232
      %v3333 = vpack.c.b16 %v3237, %v3235
      %v3334 = vpack.c.b16 %v3238, %v3236
      %v3335 = vpack.c.b16 %v3241, %v3239
      %v3336 = vpack.c.b16 %v3242, %v3240
      %v3337 = vpack.c.b16 %v3245, %v3243
      %v3338 = vpack.c.b16 %v3246, %v3244
      %v3339 = vpack.c.b16 %v3249, %v3247
      %v3340 = vpack.c.b16 %v3250, %v3248
      %v3341 = vpack.c.b16 %v3253, %v3251
      %v3342 = vpack.c.b16 %v3254, %v3252
      %v3343 = vpack.c.b16 %v3257, %v3255
      %v3344 = vpack.c.b16 %v3258, %v3256
      %v3345 = vpack.c.b16 %v3261, %v3259
      %v3346 = vpack.c.b16 %v3262, %v3260
      %v3347 = vpack.c.b16 %v3265, %v3263
      %v3348 = vpack.c.b16 %v3266, %v3264
      %v3349 = vpack.c.b16 %v3269, %v3267
      %v3350 = vpack.c.b16 %v3270, %v3268
      %v3351 = vpack.c.b16 %v3273, %v3271
      %v3352 = vpack.c.b16 %v3274, %v3272
      %v3353 = vpack.c.b16 %v3277, %v3275
      %v3354 = vpack.c.b16 %v3278, %v3276
      %v3355 = vpack.c.b16 %v3281, %v3279
      %v3356 = vpack.c.b16 %v3282, %v3280
      %v3357 = vpack.c.b16 %v3285, %v3283
      %v3358 = vpack.c.b16 %v3286, %v3284
      %v3359 = vpack.c.b16 %v3289, %v3287
      %v3360 = vpack.c.b16 %v3290, %v3288
      %v3361 = vpack.c.b16 %v3293, %v3291
      %v3362 = vpack.c.b16 %v3294, %v3292
      %v3363 = vpack.c.b16 %v3297, %v3295
      %v3364 = vpack.c.b16 %v3298, %v3296
      %v3365 = vpack.c.b16 %v3301, %v3299
      %v3366 = vpack.c.b16 %v3302, %v3300
      %3431 = vmatpush.bf16.msra.mxu0 %v3317
      %3432 = vmatpush.bf16.msra.mxu0 %v3315
      %3433 = vmatpush.bf16.msra.mxu0 %v3313
      %3434 = vmatpush.bf16.msra.mxu0 %v3311
      %3435 = vmatpush.bf16.msra.mxu0 %v3309
      %3436 = vmatpush.bf16.msra.mxu0 %v3307
      %3437 = vmatpush.bf16.msra.mxu0 %v3305
      %3438 = vmatpush.bf16.msra.mxu0 %v3303
      %3439 = vmatmul.bf16.gmra.mxu0 %v3009
      %v3440 = vpop.f32.mrf.mxu0
      %v3441 = vadd.f32 %v3107, %v3440
      %v3442 = vpop.f32.mrf.mxu0
      %v3443 = vadd.f32 %v3107, %v3442
      %3444 = vmatmul.bf16.gmra.mxu0 %v3013
      %v3445 = vpop.f32.mrf.mxu0
      %v3446 = vadd.f32 %v3107, %v3445
      %v3447 = vpop.f32.mrf.mxu0
      %v3448 = vadd.f32 %v3107, %v3447
      %3449 = vmatmul.bf16.gmra.mxu0 %v3017
      %v3450 = vpop.f32.mrf.mxu0
      %v3451 = vadd.f32 %v3107, %v3450
      %v3452 = vpop.f32.mrf.mxu0
      %v3453 = vadd.f32 %v3107, %v3452
      %3454 = vmatmul.bf16.gmra.mxu0 %v3021
      %v3455 = vpop.f32.mrf.mxu0
      %v3456 = vadd.f32 %v3107, %v3455
      %v3457 = vpop.f32.mrf.mxu0
      %v3458 = vadd.f32 %v3107, %v3457
      %3459 = vmatmul.bf16.gmra.mxu0 %v3025
      %v3460 = vpop.f32.mrf.mxu0
      %v3461 = vadd.f32 %v3107, %v3460
      %v3462 = vpop.f32.mrf.mxu0
      %v3463 = vadd.f32 %v3107, %v3462
      %3464 = vmatmul.bf16.gmra.mxu0 %v3029
      %v3465 = vpop.f32.mrf.mxu0
      %v3466 = vadd.f32 %v3107, %v3465
      %v3467 = vpop.f32.mrf.mxu0
      %v3468 = vadd.f32 %v3107, %v3467
      %3469 = vmatmul.bf16.gmra.mxu0 %v3033
      %v3470 = vpop.f32.mrf.mxu0
      %v3471 = vadd.f32 %v3107, %v3470
      %v3472 = vpop.f32.mrf.mxu0
      %v3473 = vadd.f32 %v3107, %v3472
      %3474 = vmatmul.bf16.gmra.mxu0 %v3037
      %v3475 = vpop.f32.mrf.mxu0
      %v3476 = vadd.f32 %v3107, %v3475
      %v3477 = vpop.f32.mrf.mxu0
      %v3478 = vadd.f32 %v3107, %v3477
      %3479 = vdwg.mxu0
      %3480 = vmatpush.bf16.msra.mxu0 %v3333
      %3481 = vmatpush.bf16.msra.mxu0 %v3331
      %3482 = vmatpush.bf16.msra.mxu0 %v3329
      %3483 = vmatpush.bf16.msra.mxu0 %v3327
      %3484 = vmatpush.bf16.msra.mxu0 %v3325
      %3485 = vmatpush.bf16.msra.mxu0 %v3323
      %3486 = vmatpush.bf16.msra.mxu0 %v3321
      %3487 = vmatpush.bf16.msra.mxu0 %v3319
      %3488 = vmatmul.bf16.gmra.mxu0 %v3010
      %v3489 = vpop.f32.mrf.mxu0
      %v3490 = vadd.f32 %v3441, %v3489
      %v3491 = vpop.f32.mrf.mxu0
      %v3492 = vadd.f32 %v3443, %v3491
      %3493 = vmatmul.bf16.gmra.mxu0 %v3014
      %v3494 = vpop.f32.mrf.mxu0
      %v3495 = vadd.f32 %v3446, %v3494
      %v3496 = vpop.f32.mrf.mxu0
      %v3497 = vadd.f32 %v3448, %v3496
      %3498 = vmatmul.bf16.gmra.mxu0 %v3018
      %v3499 = vpop.f32.mrf.mxu0
      %v3500 = vadd.f32 %v3451, %v3499
      %v3501 = vpop.f32.mrf.mxu0
      %v3502 = vadd.f32 %v3453, %v3501
      %3503 = vmatmul.bf16.gmra.mxu0 %v3022
      %v3504 = vpop.f32.mrf.mxu0
      %v3505 = vadd.f32 %v3456, %v3504
      %v3506 = vpop.f32.mrf.mxu0
      %v3507 = vadd.f32 %v3458, %v3506
      %3508 = vmatmul.bf16.gmra.mxu0 %v3026
      %v3509 = vpop.f32.mrf.mxu0
      %v3510 = vadd.f32 %v3461, %v3509
      %v3511 = vpop.f32.mrf.mxu0
      %v3512 = vadd.f32 %v3463, %v3511
      %3513 = vmatmul.bf16.gmra.mxu0 %v3030
      %v3514 = vpop.f32.mrf.mxu0
      %v3515 = vadd.f32 %v3466, %v3514
      %v3516 = vpop.f32.mrf.mxu0
      %v3517 = vadd.f32 %v3468, %v3516
      %3518 = vmatmul.bf16.gmra.mxu0 %v3034
      %v3519 = vpop.f32.mrf.mxu0
      %v3520 = vadd.f32 %v3471, %v3519
      %v3521 = vpop.f32.mrf.mxu0
      %v3522 = vadd.f32 %v3473, %v3521
      %3523 = vmatmul.bf16.gmra.mxu0 %v3038
      %v3524 = vpop.f32.mrf.mxu0
      %v3525 = vadd.f32 %v3476, %v3524
      %v3526 = vpop.f32.mrf.mxu0
      %v3527 = vadd.f32 %v3478, %v3526
      %3528 = vdwg.mxu0
      %3529 = vmatpush.bf16.msra.mxu0 %v3349
      %3530 = vmatpush.bf16.msra.mxu0 %v3347
      %3531 = vmatpush.bf16.msra.mxu0 %v3345
      %3532 = vmatpush.bf16.msra.mxu0 %v3343
      %3533 = vmatpush.bf16.msra.mxu0 %v3341
      %3534 = vmatpush.bf16.msra.mxu0 %v3339
      %3535 = vmatpush.bf16.msra.mxu0 %v3337
      %3536 = vmatpush.bf16.msra.mxu0 %v3335
      %3537 = vmatmul.bf16.gmra.mxu0 %v3011
      %v3538 = vpop.f32.mrf.mxu0
      %v3539 = vadd.f32 %v3490, %v3538
      %v3540 = vpop.f32.mrf.mxu0
      %v3541 = vadd.f32 %v3492, %v3540
      %3542 = vmatmul.bf16.gmra.mxu0 %v3015
      %v3543 = vpop.f32.mrf.mxu0
      %v3544 = vadd.f32 %v3495, %v3543
      %v3545 = vpop.f32.mrf.mxu0
      %v3546 = vadd.f32 %v3497, %v3545
      %3547 = vmatmul.bf16.gmra.mxu0 %v3019
      %v3548 = vpop.f32.mrf.mxu0
      %v3549 = vadd.f32 %v3500, %v3548
      %v3550 = vpop.f32.mrf.mxu0
      %v3551 = vadd.f32 %v3502, %v3550
      %3552 = vmatmul.bf16.gmra.mxu0 %v3023
      %v3553 = vpop.f32.mrf.mxu0
      %v3554 = vadd.f32 %v3505, %v3553
      %v3555 = vpop.f32.mrf.mxu0
      %v3556 = vadd.f32 %v3507, %v3555
      %3557 = vmatmul.bf16.gmra.mxu0 %v3027
      %v3558 = vpop.f32.mrf.mxu0
      %v3559 = vadd.f32 %v3510, %v3558
      %v3560 = vpop.f32.mrf.mxu0
      %v3561 = vadd.f32 %v3512, %v3560
      %3562 = vmatmul.bf16.gmra.mxu0 %v3031
      %v3563 = vpop.f32.mrf.mxu0
      %v3564 = vadd.f32 %v3515, %v3563
      %v3565 = vpop.f32.mrf.mxu0
      %v3566 = vadd.f32 %v3517, %v3565
      %3567 = vmatmul.bf16.gmra.mxu0 %v3035
      %v3568 = vpop.f32.mrf.mxu0
      %v3569 = vadd.f32 %v3520, %v3568
      %v3570 = vpop.f32.mrf.mxu0
      %v3571 = vadd.f32 %v3522, %v3570
      %3572 = vmatmul.bf16.gmra.mxu0 %v3039
      %v3573 = vpop.f32.mrf.mxu0
      %v3574 = vadd.f32 %v3525, %v3573
      %v3575 = vpop.f32.mrf.mxu0
      %v3576 = vadd.f32 %v3527, %v3575
      %3577 = vdwg.mxu0
      %3578 = vmatpush.bf16.msra.mxu0 %v3365
      %3579 = vmatpush.bf16.msra.mxu0 %v3363
      %3580 = vmatpush.bf16.msra.mxu0 %v3361
      %3581 = vmatpush.bf16.msra.mxu0 %v3359
      %3582 = vmatpush.bf16.msra.mxu0 %v3357
      %3583 = vmatpush.bf16.msra.mxu0 %v3355
      %3584 = vmatpush.bf16.msra.mxu0 %v3353
      %3585 = vmatpush.bf16.msra.mxu0 %v3351
      %3586 = vmatmul.bf16.gmra.mxu0 %v3012
      %v3587 = vpop.f32.mrf.mxu0
      %v3588 = vadd.f32 %v3539, %v3587
      %v3589 = vpop.f32.mrf.mxu0
      %v3590 = vadd.f32 %v3541, %v3589
      %3591 = vmatmul.bf16.gmra.mxu0 %v3016
      %v3592 = vpop.f32.mrf.mxu0
      %v3593 = vadd.f32 %v3544, %v3592
      %v3594 = vpop.f32.mrf.mxu0
      %v3595 = vadd.f32 %v3546, %v3594
      %3596 = vmatmul.bf16.gmra.mxu0 %v3020
      %v3597 = vpop.f32.mrf.mxu0
      %v3598 = vadd.f32 %v3549, %v3597
      %v3599 = vpop.f32.mrf.mxu0
      %v3600 = vadd.f32 %v3551, %v3599
      %3601 = vmatmul.bf16.gmra.mxu0 %v3024
      %v3602 = vpop.f32.mrf.mxu0
      %v3603 = vadd.f32 %v3554, %v3602
      %v3604 = vpop.f32.mrf.mxu0
      %v3605 = vadd.f32 %v3556, %v3604
      %3606 = vmatmul.bf16.gmra.mxu0 %v3028
      %v3607 = vpop.f32.mrf.mxu0
      %v3608 = vadd.f32 %v3559, %v3607
      %v3609 = vpop.f32.mrf.mxu0
      %v3610 = vadd.f32 %v3561, %v3609
      %3611 = vmatmul.bf16.gmra.mxu0 %v3032
      %v3612 = vpop.f32.mrf.mxu0
      %v3613 = vadd.f32 %v3564, %v3612
      %v3614 = vpop.f32.mrf.mxu0
      %v3615 = vadd.f32 %v3566, %v3614
      %3616 = vmatmul.bf16.gmra.mxu0 %v3036
      %v3617 = vpop.f32.mrf.mxu0
      %v3618 = vadd.f32 %v3569, %v3617
      %v3619 = vpop.f32.mrf.mxu0
      %v3620 = vadd.f32 %v3571, %v3619
      %3621 = vmatmul.bf16.gmra.mxu0 %v3040
      %v3622 = vpop.f32.mrf.mxu0
      %v3623 = vadd.f32 %v3574, %v3622
      %v3624 = vpop.f32.mrf.mxu0
      %v3625 = vadd.f32 %v3576, %v3624
      %3626 = vdwg.mxu0
      %3627 = vmatpush.bf16.msra.mxu0 %v3318
      %3628 = vmatpush.bf16.msra.mxu0 %v3316
      %3629 = vmatpush.bf16.msra.mxu0 %v3314
      %3630 = vmatpush.bf16.msra.mxu0 %v3312
      %3631 = vmatpush.bf16.msra.mxu0 %v3310
      %3632 = vmatpush.bf16.msra.mxu0 %v3308
      %3633 = vmatpush.bf16.msra.mxu0 %v3306
      %3634 = vmatpush.bf16.msra.mxu0 %v3304
      %3635 = vmatmul.bf16.gmra.mxu0 %v3009
      %v3636 = vpop.f32.mrf.mxu0
      %v3637 = vadd.f32 %v3108, %v3636
      %v3638 = vpop.f32.mrf.mxu0
      %v3639 = vadd.f32 %v3108, %v3638
      %3640 = vmatmul.bf16.gmra.mxu0 %v3013
      %v3641 = vpop.f32.mrf.mxu0
      %v3642 = vadd.f32 %v3108, %v3641
      %v3643 = vpop.f32.mrf.mxu0
      %v3644 = vadd.f32 %v3108, %v3643
      %3645 = vmatmul.bf16.gmra.mxu0 %v3017
      %v3646 = vpop.f32.mrf.mxu0
      %v3647 = vadd.f32 %v3108, %v3646
      %v3648 = vpop.f32.mrf.mxu0
      %v3649 = vadd.f32 %v3108, %v3648
      %3650 = vmatmul.bf16.gmra.mxu0 %v3021
      %v3651 = vpop.f32.mrf.mxu0
      %v3652 = vadd.f32 %v3108, %v3651
      %v3653 = vpop.f32.mrf.mxu0
      %v3654 = vadd.f32 %v3108, %v3653
      %3655 = vmatmul.bf16.gmra.mxu0 %v3025
      %v3656 = vpop.f32.mrf.mxu0
      %v3657 = vadd.f32 %v3108, %v3656
      %v3658 = vpop.f32.mrf.mxu0
      %v3659 = vadd.f32 %v3108, %v3658
      %3660 = vmatmul.bf16.gmra.mxu0 %v3029
      %v3661 = vpop.f32.mrf.mxu0
      %v3662 = vadd.f32 %v3108, %v3661
      %v3663 = vpop.f32.mrf.mxu0
      %v3664 = vadd.f32 %v3108, %v3663
      %3665 = vmatmul.bf16.gmra.mxu0 %v3033
      %v3666 = vpop.f32.mrf.mxu0
      %v3667 = vadd.f32 %v3108, %v3666
      %v3668 = vpop.f32.mrf.mxu0
      %v3669 = vadd.f32 %v3108, %v3668
      %3670 = vmatmul.bf16.gmra.mxu0 %v3037
      %v3671 = vpop.f32.mrf.mxu0
      %v3672 = vadd.f32 %v3108, %v3671
      %v3673 = vpop.f32.mrf.mxu0
      %v3674 = vadd.f32 %v3108, %v3673
      %3675 = vdwg.mxu0
      %3676 = vmatpush.bf16.msra.mxu0 %v3334
      %3677 = vmatpush.bf16.msra.mxu0 %v3332
      %3678 = vmatpush.bf16.msra.mxu0 %v3330
      %3679 = vmatpush.bf16.msra.mxu0 %v3328
      %3680 = vmatpush.bf16.msra.mxu0 %v3326
      %3681 = vmatpush.bf16.msra.mxu0 %v3324
      %3682 = vmatpush.bf16.msra.mxu0 %v3322
      %3683 = vmatpush.bf16.msra.mxu0 %v3320
      %3684 = vmatmul.bf16.gmra.mxu0 %v3010
      %v3685 = vpop.f32.mrf.mxu0
      %v3686 = vadd.f32 %v3637, %v3685
      %v3687 = vpop.f32.mrf.mxu0
      %v3688 = vadd.f32 %v3639, %v3687
      %3689 = vmatmul.bf16.gmra.mxu0 %v3014
      %v3690 = vpop.f32.mrf.mxu0
      %v3691 = vadd.f32 %v3642, %v3690
      %v3692 = vpop.f32.mrf.mxu0
      %v3693 = vadd.f32 %v3644, %v3692
      %3694 = vmatmul.bf16.gmra.mxu0 %v3018
      %v3695 = vpop.f32.mrf.mxu0
      %v3696 = vadd.f32 %v3647, %v3695
      %v3697 = vpop.f32.mrf.mxu0
      %v3698 = vadd.f32 %v3649, %v3697
      %3699 = vmatmul.bf16.gmra.mxu0 %v3022
      %v3700 = vpop.f32.mrf.mxu0
      %v3701 = vadd.f32 %v3652, %v3700
      %v3702 = vpop.f32.mrf.mxu0
      %v3703 = vadd.f32 %v3654, %v3702
      %3704 = vmatmul.bf16.gmra.mxu0 %v3026
      %v3705 = vpop.f32.mrf.mxu0
      %v3706 = vadd.f32 %v3657, %v3705
      %v3707 = vpop.f32.mrf.mxu0
      %v3708 = vadd.f32 %v3659, %v3707
      %3709 = vmatmul.bf16.gmra.mxu0 %v3030
      %v3710 = vpop.f32.mrf.mxu0
      %v3711 = vadd.f32 %v3662, %v3710
      %v3712 = vpop.f32.mrf.mxu0
      %v3713 = vadd.f32 %v3664, %v3712
      %3714 = vmatmul.bf16.gmra.mxu0 %v3034
      %v3715 = vpop.f32.mrf.mxu0
      %v3716 = vadd.f32 %v3667, %v3715
      %v3717 = vpop.f32.mrf.mxu0
      %v3718 = vadd.f32 %v3669, %v3717
      %3719 = vmatmul.bf16.gmra.mxu0 %v3038
      %v3720 = vpop.f32.mrf.mxu0
      %v3721 = vadd.f32 %v3672, %v3720
      %v3722 = vpop.f32.mrf.mxu0
      %v3723 = vadd.f32 %v3674, %v3722
      %3724 = vdwg.mxu0
      %3725 = vmatpush.bf16.msra.mxu0 %v3350
      %3726 = vmatpush.bf16.msra.mxu0 %v3348
      %3727 = vmatpush.bf16.msra.mxu0 %v3346
      %3728 = vmatpush.bf16.msra.mxu0 %v3344
      %3729 = vmatpush.bf16.msra.mxu0 %v3342
      %3730 = vmatpush.bf16.msra.mxu0 %v3340
      %3731 = vmatpush.bf16.msra.mxu0 %v3338
      %3732 = vmatpush.bf16.msra.mxu0 %v3336
      %3733 = vmatmul.bf16.gmra.mxu0 %v3011
      %v3734 = vpop.f32.mrf.mxu0
      %v3735 = vadd.f32 %v3686, %v3734
      %v3736 = vpop.f32.mrf.mxu0
      %v3737 = vadd.f32 %v3688, %v3736
      %3738 = vmatmul.bf16.gmra.mxu0 %v3015
      %v3739 = vpop.f32.mrf.mxu0
      %v3740 = vadd.f32 %v3691, %v3739
      %v3741 = vpop.f32.mrf.mxu0
      %v3742 = vadd.f32 %v3693, %v3741
      %3743 = vmatmul.bf16.gmra.mxu0 %v3019
      %v3744 = vpop.f32.mrf.mxu0
      %v3745 = vadd.f32 %v3696, %v3744
      %v3746 = vpop.f32.mrf.mxu0
      %v3747 = vadd.f32 %v3698, %v3746
      %3748 = vmatmul.bf16.gmra.mxu0 %v3023
      %v3749 = vpop.f32.mrf.mxu0
      %v3750 = vadd.f32 %v3701, %v3749
      %v3751 = vpop.f32.mrf.mxu0
      %v3752 = vadd.f32 %v3703, %v3751
      %3753 = vmatmul.bf16.gmra.mxu0 %v3027
      %v3754 = vpop.f32.mrf.mxu0
      %v3755 = vadd.f32 %v3706, %v3754
      %v3756 = vpop.f32.mrf.mxu0
      %v3757 = vadd.f32 %v3708, %v3756
      %3758 = vmatmul.bf16.gmra.mxu0 %v3031
      %v3759 = vpop.f32.mrf.mxu0
      %v3760 = vadd.f32 %v3711, %v3759
      %v3761 = vpop.f32.mrf.mxu0
      %v3762 = vadd.f32 %v3713, %v3761
      %3763 = vmatmul.bf16.gmra.mxu0 %v3035
      %v3764 = vpop.f32.mrf.mxu0
      %v3765 = vadd.f32 %v3716, %v3764
      %v3766 = vpop.f32.mrf.mxu0
      %v3767 = vadd.f32 %v3718, %v3766
      %3768 = vmatmul.bf16.gmra.mxu0 %v3039
      %v3769 = vpop.f32.mrf.mxu0
      %v3770 = vadd.f32 %v3721, %v3769
      %v3771 = vpop.f32.mrf.mxu0
      %v3772 = vadd.f32 %v3723, %v3771
      %3773 = vdwg.mxu0
      %3774 = vmatpush.bf16.msra.mxu0 %v3366
      %3775 = vmatpush.bf16.msra.mxu0 %v3364
      %3776 = vmatpush.bf16.msra.mxu0 %v3362
      %3777 = vmatpush.bf16.msra.mxu0 %v3360
      %3778 = vmatpush.bf16.msra.mxu0 %v3358
      %3779 = vmatpush.bf16.msra.mxu0 %v3356
      %3780 = vmatpush.bf16.msra.mxu0 %v3354
      %3781 = vmatpush.bf16.msra.mxu0 %v3352
      %3782 = vmatmul.bf16.gmra.mxu0 %v3012
      %v3783 = vpop.f32.mrf.mxu0
      %v3784 = vadd.f32 %v3735, %v3783
      %v3785 = vpop.f32.mrf.mxu0
      %v3786 = vadd.f32 %v3737, %v3785
      %3787 = vmatmul.bf16.gmra.mxu0 %v3016
      %v3788 = vpop.f32.mrf.mxu0
      %v3789 = vadd.f32 %v3740, %v3788
      %v3790 = vpop.f32.mrf.mxu0
      %v3791 = vadd.f32 %v3742, %v3790
      %3792 = vmatmul.bf16.gmra.mxu0 %v3020
      %v3793 = vpop.f32.mrf.mxu0
      %v3794 = vadd.f32 %v3745, %v3793
      %v3795 = vpop.f32.mrf.mxu0
      %v3796 = vadd.f32 %v3747, %v3795
      %3797 = vmatmul.bf16.gmra.mxu0 %v3024
      %v3798 = vpop.f32.mrf.mxu0
      %v3799 = vadd.f32 %v3750, %v3798
      %v3800 = vpop.f32.mrf.mxu0
      %v3801 = vadd.f32 %v3752, %v3800
      %3802 = vmatmul.bf16.gmra.mxu0 %v3028
      %v3803 = vpop.f32.mrf.mxu0
      %v3804 = vadd.f32 %v3755, %v3803
      %v3805 = vpop.f32.mrf.mxu0
      %v3806 = vadd.f32 %v3757, %v3805
      %3807 = vmatmul.bf16.gmra.mxu0 %v3032
      %v3808 = vpop.f32.mrf.mxu0
      %v3809 = vadd.f32 %v3760, %v3808
      %v3810 = vpop.f32.mrf.mxu0
      %v3811 = vadd.f32 %v3762, %v3810
      %3812 = vmatmul.bf16.gmra.mxu0 %v3036
      %v3813 = vpop.f32.mrf.mxu0
      %v3814 = vadd.f32 %v3765, %v3813
      %v3815 = vpop.f32.mrf.mxu0
      %v3816 = vadd.f32 %v3767, %v3815
      %3817 = vmatmul.bf16.gmra.mxu0 %v3040
      %v3818 = vpop.f32.mrf.mxu0
      %v3819 = vadd.f32 %v3770, %v3818
      %v3820 = vpop.f32.mrf.mxu0
      %v3821 = vadd.f32 %v3772, %v3820
      %3822 = vdwg.mxu0
      %v3823 = vmax.f32 %v3588, 0.0
      %v3824 = vmax.f32 %v3784, 0.0
      %v3825 = vmax.f32 %v3590, 0.0
      %v3826 = vmax.f32 %v3786, 0.0
      %v3827 = vmax.f32 %v3593, 0.0
      %v3828 = vmax.f32 %v3789, 0.0
      %v3829 = vmax.f32 %v3595, 0.0
      %v3830 = vmax.f32 %v3791, 0.0
      %v3831 = vmax.f32 %v3598, 0.0
      %v3832 = vmax.f32 %v3794, 0.0
      %v3833 = vmax.f32 %v3600, 0.0
      %v3834 = vmax.f32 %v3796, 0.0
      %v3835 = vmax.f32 %v3603, 0.0
      %v3836 = vmax.f32 %v3799, 0.0
      %v3837 = vmax.f32 %v3605, 0.0
      %v3838 = vmax.f32 %v3801, 0.0
      %v3839 = vmax.f32 %v3608, 0.0
      %v3840 = vmax.f32 %v3804, 0.0
      %v3841 = vmax.f32 %v3610, 0.0
      %v3842 = vmax.f32 %v3806, 0.0
      %v3843 = vmax.f32 %v3613, 0.0
      %v3844 = vmax.f32 %v3809, 0.0
      %v3845 = vmax.f32 %v3615, 0.0
      %v3846 = vmax.f32 %v3811, 0.0
      %v3847 = vmax.f32 %v3618, 0.0
      %v3848 = vmax.f32 %v3814, 0.0
      %v3849 = vmax.f32 %v3620, 0.0
      %v3850 = vmax.f32 %v3816, 0.0
      %v3851 = vmax.f32 %v3623, 0.0
      %v3852 = vmax.f32 %v3819, 0.0
      %v3853 = vmax.f32 %v3625, 0.0
      %v3854 = vmax.f32 %v3821, 0.0
      %v3855 = vpack.c.bf16 %v3825, %v3823
      %v3856 = vpack.c.bf16 %v3826, %v3824
      %v3857 = vpack.c.bf16 %v3829, %v3827
      %v3858 = vpack.c.bf16 %v3830, %v3828
      %v3859 = vpack.c.bf16 %v3833, %v3831
      %v3860 = vpack.c.bf16 %v3834, %v3832
      %v3861 = vpack.c.bf16 %v3837, %v3835
      %v3862 = vpack.c.bf16 %v3838, %v3836
      %v3863 = vpack.c.bf16 %v3841, %v3839
      %v3864 = vpack.c.bf16 %v3842, %v3840
      %v3865 = vpack.c.bf16 %v3845, %v3843
      %v3866 = vpack.c.bf16 %v3846, %v3844
      %v3867 = vpack.c.bf16 %v3849, %v3847
      %v3868 = vpack.c.bf16 %v3850, %v3848
      %v3869 = vpack.c.bf16 %v3853, %v3851
      %v3870 = vpack.c.bf16 %v3854, %v3852
      %v3871 = vld [vmem:[%s8] sm:$0xf]
      %v3872 = vld [vmem:[%s8 + $0x4] sm:$0xf]
      %v3873 = vld [vmem:[%s8 + $0x8] sm:$0xf]
      %v3874 = vld [vmem:[%s8 + $0xc] sm:$0xf]
      %v3875 = vld [vmem:[%s8 + $0x10] sm:$0xf]
      %v3876 = vld [vmem:[%s8 + $0x14] sm:$0xf]
      %v3877 = vld [vmem:[%s8 + $0x18] sm:$0xf]
      %v3878 = vld [vmem:[%s8 + $0x1c] sm:$0xf]
      %v3879 = vld [vmem:[%s8 + $0x20] sm:$0xf]
      %v3880 = vld [vmem:[%s8 + $0x24] sm:$0xf]
      %v3881 = vld [vmem:[%s8 + $0x28] sm:$0xf]
      %v3882 = vld [vmem:[%s8 + $0x2c] sm:$0xf]
      %v3883 = vld [vmem:[%s8 + $0x30] sm:$0xf]
      %v3884 = vld [vmem:[%s8 + $0x34] sm:$0xf]
      %v3885 = vld [vmem:[%s8 + $0x38] sm:$0xf]
      %v3886 = vld [vmem:[%s8 + $0x3c] sm:$0xf]
      %v3887 = vld [vmem:[%s8 + $0x40] sm:$0xf]
      %v3888 = vld [vmem:[%s8 + $0x44] sm:$0xf]
      %v3889 = vld [vmem:[%s8 + $0x48] sm:$0xf]
      %v3890 = vld [vmem:[%s8 + $0x4c] sm:$0xf]
      %v3891 = vld [vmem:[%s8 + $0x50] sm:$0xf]
      %v3892 = vld [vmem:[%s8 + $0x54] sm:$0xf]
      %v3893 = vld [vmem:[%s8 + $0x58] sm:$0xf]
      %v3894 = vld [vmem:[%s8 + $0x5c] sm:$0xf]
      %v3895 = vld [vmem:[%s8 + $0x60] sm:$0xf]
      %v3896 = vld [vmem:[%s8 + $0x64] sm:$0xf]
      %v3897 = vld [vmem:[%s8 + $0x68] sm:$0xf]
      %v3898 = vld [vmem:[%s8 + $0x6c] sm:$0xf]
      %v3899 = vld [vmem:[%s8 + $0x70] sm:$0xf]
      %v3900 = vld [vmem:[%s8 + $0x74] sm:$0xf]
      %v3901 = vld [vmem:[%s8 + $0x78] sm:$0xf]
      %v3902 = vld [vmem:[%s8 + $0x7c] sm:$0xf]
      %v3903 = vld [vmem:[%s9] sm:$0x1]
      %v3905 = vperm.slane %v3903, 0
      %v3939 = vunpack.c.l.b16 %v3871
      %v3940 = vunpack.c.l.b16 %v3872
      %v3941 = vunpack.c.l.b16 %v3873
      %v3942 = vunpack.c.l.b16 %v3874
      %v3943 = vunpack.c.l.b16 %v3875
      %v3944 = vunpack.c.l.b16 %v3876
      %v3945 = vunpack.c.l.b16 %v3877
      %v3946 = vunpack.c.l.b16 %v3878
      %v3947 = vunpack.c.l.b16 %v3879
      %v3948 = vunpack.c.l.b16 %v3880
      %v3949 = vunpack.c.l.b16 %v3881
      %v3950 = vunpack.c.l.b16 %v3882
      %v3951 = vunpack.c.l.b16 %v3883
      %v3952 = vunpack.c.l.b16 %v3884
      %v3953 = vunpack.c.l.b16 %v3885
      %v3954 = vunpack.c.l.b16 %v3886
      %v3955 = vunpack.c.l.b16 %v3887
      %v3956 = vunpack.c.l.b16 %v3888
      %v3957 = vunpack.c.l.b16 %v3889
      %v3958 = vunpack.c.l.b16 %v3890
      %v3959 = vunpack.c.l.b16 %v3891
      %v3960 = vunpack.c.l.b16 %v3892
      %v3961 = vunpack.c.l.b16 %v3893
      %v3962 = vunpack.c.l.b16 %v3894
      %v3963 = vunpack.c.l.b16 %v3895
      %v3964 = vunpack.c.l.b16 %v3896
      %v3965 = vunpack.c.l.b16 %v3897
      %v3966 = vunpack.c.l.b16 %v3898
      %v3967 = vunpack.c.l.b16 %v3899
      %v3968 = vunpack.c.l.b16 %v3900
      %v3969 = vunpack.c.l.b16 %v3901
      %v3970 = vunpack.c.l.b16 %v3902
      %v3971 = vpack.c.b16 %v3940, %v3939
      %v3972 = vpack.c.b16 %v3942, %v3941
      %v3973 = vpack.c.b16 %v3944, %v3943
      %v3974 = vpack.c.b16 %v3946, %v3945
      %v3975 = vpack.c.b16 %v3948, %v3947
      %v3976 = vpack.c.b16 %v3950, %v3949
      %v3977 = vpack.c.b16 %v3952, %v3951
      %v3978 = vpack.c.b16 %v3954, %v3953
      %v3979 = vpack.c.b16 %v3956, %v3955
      %v3980 = vpack.c.b16 %v3958, %v3957
      %v3981 = vpack.c.b16 %v3960, %v3959
      %v3982 = vpack.c.b16 %v3962, %v3961
      %v3983 = vpack.c.b16 %v3964, %v3963
      %v3984 = vpack.c.b16 %v3966, %v3965
      %v3985 = vpack.c.b16 %v3968, %v3967
      %v3986 = vpack.c.b16 %v3970, %v3969
      %4003 = vmatpush.bf16.msra.mxu0 %v3978
      %4004 = vmatpush.bf16.msra.mxu0 %v3977
      %4005 = vmatpush.bf16.msra.mxu0 %v3976
      %4006 = vmatpush.bf16.msra.mxu0 %v3975
      %4007 = vmatpush.bf16.msra.mxu0 %v3974
      %4008 = vmatpush.bf16.msra.mxu0 %v3973
      %4009 = vmatpush.bf16.msra.mxu0 %v3972
      %4010 = vmatpush.bf16.msra.mxu0 %v3971
      %4011 = vmatmul.bf16.gmra.mxu0 %v3855
      %v4012 = vpop.f32.mrf.mxu0
      %v4013 = vadd.f32 %v3905, %v4012
      %v4014 = vpop.f32.mrf.mxu0
      %v4015 = vadd.f32 %v3905, %v4014
      %4016 = vmatmul.bf16.gmra.mxu0 %v3857
      %v4017 = vpop.f32.mrf.mxu0
      %v4018 = vadd.f32 %v3905, %v4017
      %v4019 = vpop.f32.mrf.mxu0
      %v4020 = vadd.f32 %v3905, %v4019
      %4021 = vmatmul.bf16.gmra.mxu0 %v3859
      %v4022 = vpop.f32.mrf.mxu0
      %v4023 = vadd.f32 %v3905, %v4022
      %v4024 = vpop.f32.mrf.mxu0
      %v4025 = vadd.f32 %v3905, %v4024
      %4026 = vmatmul.bf16.gmra.mxu0 %v3861
      %v4027 = vpop.f32.mrf.mxu0
      %v4028 = vadd.f32 %v3905, %v4027
      %v4029 = vpop.f32.mrf.mxu0
      %v4030 = vadd.f32 %v3905, %v4029
      %4031 = vmatmul.bf16.gmra.mxu0 %v3863
      %v4032 = vpop.f32.mrf.mxu0
      %v4033 = vadd.f32 %v3905, %v4032
      %v4034 = vpop.f32.mrf.mxu0
      %v4035 = vadd.f32 %v3905, %v4034
      %4036 = vmatmul.bf16.gmra.mxu0 %v3865
      %v4037 = vpop.f32.mrf.mxu0
      %v4038 = vadd.f32 %v3905, %v4037
      %v4039 = vpop.f32.mrf.mxu0
      %v4040 = vadd.f32 %v3905, %v4039
      %4041 = vmatmul.bf16.gmra.mxu0 %v3867
      %v4042 = vpop.f32.mrf.mxu0
      %v4043 = vadd.f32 %v3905, %v4042
      %v4044 = vpop.f32.mrf.mxu0
      %v4045 = vadd.f32 %v3905, %v4044
      %4046 = vmatmul.bf16.gmra.mxu0 %v3869
      %v4047 = vpop.f32.mrf.mxu0
      %v4048 = vadd.f32 %v3905, %v4047
      %v4049 = vpop.f32.mrf.mxu0
      %v4050 = vadd.f32 %v3905, %v4049
      %4051 = vdwg.mxu0
      %4052 = vmatpush.bf16.msra.mxu0 %v3986
      %4053 = vmatpush.bf16.msra.mxu0 %v3985
      %4054 = vmatpush.bf16.msra.mxu0 %v3984
      %4055 = vmatpush.bf16.msra.mxu0 %v3983
      %4056 = vmatpush.bf16.msra.mxu0 %v3982
      %4057 = vmatpush.bf16.msra.mxu0 %v3981
      %4058 = vmatpush.bf16.msra.mxu0 %v3980
      %4059 = vmatpush.bf16.msra.mxu0 %v3979
      %4060 = vmatmul.bf16.gmra.mxu0 %v3856
      %v4061 = vpop.f32.mrf.mxu0
      %v4062 = vadd.f32 %v4013, %v4061
      %v4063 = vpop.f32.mrf.mxu0
      %v4064 = vadd.f32 %v4015, %v4063
      %4065 = vmatmul.bf16.gmra.mxu0 %v3858
      %v4066 = vpop.f32.mrf.mxu0
      %v4067 = vadd.f32 %v4018, %v4066
      %v4068 = vpop.f32.mrf.mxu0
      %v4069 = vadd.f32 %v4020, %v4068
      %4070 = vmatmul.bf16.gmra.mxu0 %v3860
      %v4071 = vpop.f32.mrf.mxu0
      %v4072 = vadd.f32 %v4023, %v4071
      %v4073 = vpop.f32.mrf.mxu0
      %v4074 = vadd.f32 %v4025, %v4073
      %4075 = vmatmul.bf16.gmra.mxu0 %v3862
      %v4076 = vpop.f32.mrf.mxu0
      %v4077 = vadd.f32 %v4028, %v4076
      %v4078 = vpop.f32.mrf.mxu0
      %v4079 = vadd.f32 %v4030, %v4078
      %4080 = vmatmul.bf16.gmra.mxu0 %v3864
      %v4081 = vpop.f32.mrf.mxu0
      %v4082 = vadd.f32 %v4033, %v4081
      %v4083 = vpop.f32.mrf.mxu0
      %v4084 = vadd.f32 %v4035, %v4083
      %4085 = vmatmul.bf16.gmra.mxu0 %v3866
      %v4086 = vpop.f32.mrf.mxu0
      %v4087 = vadd.f32 %v4038, %v4086
      %v4088 = vpop.f32.mrf.mxu0
      %v4089 = vadd.f32 %v4040, %v4088
      %4090 = vmatmul.bf16.gmra.mxu0 %v3868
      %v4091 = vpop.f32.mrf.mxu0
      %v4092 = vadd.f32 %v4043, %v4091
      %v4093 = vpop.f32.mrf.mxu0
      %v4094 = vadd.f32 %v4045, %v4093
      %4095 = vmatmul.bf16.gmra.mxu0 %v3870
      %v4096 = vpop.f32.mrf.mxu0
      %v4097 = vadd.f32 %v4048, %v4096
      %v4098 = vpop.f32.mrf.mxu0
      %v4099 = vadd.f32 %v4050, %v4098
      %4100 = vdwg.mxu0
      %v4101 = vmax.f32 %v4062, 0.0
      %v4102 = vmax.f32 %v4064, 0.0
      %v4103 = vmax.f32 %v4067, 0.0
      %v4104 = vmax.f32 %v4069, 0.0
      %v4105 = vmax.f32 %v4072, 0.0
      %v4106 = vmax.f32 %v4074, 0.0
      %v4107 = vmax.f32 %v4077, 0.0
      %v4108 = vmax.f32 %v4079, 0.0
      %v4109 = vmax.f32 %v4082, 0.0
      %v4110 = vmax.f32 %v4084, 0.0
      %v4111 = vmax.f32 %v4087, 0.0
      %v4112 = vmax.f32 %v4089, 0.0
      %v4113 = vmax.f32 %v4092, 0.0
      %v4114 = vmax.f32 %v4094, 0.0
      %v4115 = vmax.f32 %v4097, 0.0
      %v4116 = vmax.f32 %v4099, 0.0
      %v4117 = vpack.c.bf16 %v4102, %v4101
      %v4118 = vpack.c.bf16 %v4104, %v4103
      %v4119 = vpack.c.bf16 %v4106, %v4105
      %v4120 = vpack.c.bf16 %v4108, %v4107
      %v4121 = vpack.c.bf16 %v4110, %v4109
      %v4122 = vpack.c.bf16 %v4112, %v4111
      %v4123 = vpack.c.bf16 %v4114, %v4113
      %v4124 = vpack.c.bf16 %v4116, %v4115
      %v4125 = vld [vmem:[%s10] sm:$0xf]
      %v4126 = vld [vmem:[%s10 + $0x4] sm:$0xf]
      %v4127 = vld [vmem:[%s10 + $0x8] sm:$0xf]
      %v4128 = vld [vmem:[%s10 + $0xc] sm:$0xf]
      %v4129 = vld [vmem:[%s10 + $0x10] sm:$0xf]
      %v4130 = vld [vmem:[%s10 + $0x14] sm:$0xf]
      %v4131 = vld [vmem:[%s10 + $0x18] sm:$0xf]
      %v4132 = vld [vmem:[%s10 + $0x1c] sm:$0xf]
      %v4133 = vld [vmem:[%s10 + $0x20] sm:$0xf]
      %v4134 = vld [vmem:[%s10 + $0x24] sm:$0xf]
      %v4135 = vld [vmem:[%s10 + $0x28] sm:$0xf]
      %v4136 = vld [vmem:[%s10 + $0x2c] sm:$0xf]
      %v4137 = vld [vmem:[%s10 + $0x30] sm:$0xf]
      %v4138 = vld [vmem:[%s10 + $0x34] sm:$0xf]
      %v4139 = vld [vmem:[%s10 + $0x38] sm:$0xf]
      %v4140 = vld [vmem:[%s10 + $0x3c] sm:$0xf]
      %v4141 = vld [vmem:[%s11] sm:$0x1]
      %v4143 = vperm.slane %v4141, 0
      %v4161 = vunpack.c.l.b16 %v4125
      %v4162 = vunpack.c.l.b16 %v4126
      %v4163 = vunpack.c.l.b16 %v4127
      %v4164 = vunpack.c.l.b16 %v4128
      %v4165 = vunpack.c.l.b16 %v4129
      %v4166 = vunpack.c.l.b16 %v4130
      %v4167 = vunpack.c.l.b16 %v4131
      %v4168 = vunpack.c.l.b16 %v4132
      %v4169 = vunpack.c.l.b16 %v4133
      %v4170 = vunpack.c.l.b16 %v4134
      %v4171 = vunpack.c.l.b16 %v4135
      %v4172 = vunpack.c.l.b16 %v4136
      %v4173 = vunpack.c.l.b16 %v4137
      %v4174 = vunpack.c.l.b16 %v4138
      %v4175 = vunpack.c.l.b16 %v4139
      %v4176 = vunpack.c.l.b16 %v4140
      %v4177 = vpack.c.b16 %v4162, %v4161
      %v4178 = vpack.c.b16 %v4164, %v4163
      %v4179 = vpack.c.b16 %v4166, %v4165
      %v4180 = vpack.c.b16 %v4168, %v4167
      %v4181 = vpack.c.b16 %v4170, %v4169
      %v4182 = vpack.c.b16 %v4172, %v4171
      %v4183 = vpack.c.b16 %v4174, %v4173
      %v4184 = vpack.c.b16 %v4176, %v4175
      %4193 = vmatpush.bf16.msra.mxu0 %v4184
      %4194 = vmatpush.bf16.msra.mxu0 %v4183
      %4195 = vmatpush.bf16.msra.mxu0 %v4182
      %4196 = vmatpush.bf16.msra.mxu0 %v4181
      %4197 = vmatpush.bf16.msra.mxu0 %v4180
      %4198 = vmatpush.bf16.msra.mxu0 %v4179
      %4199 = vmatpush.bf16.msra.mxu0 %v4178
      %4200 = vmatpush.bf16.msra.mxu0 %v4177
      %4201 = vmatmul.bf16.gmra.mxu0 %v4117
      %v4202 = vpop.f32.mrf.mxu0
      %v4203 = vadd.f32 %v4143, %v4202
      %v4204 = vpop.f32.mrf.mxu0
      %v4205 = vadd.f32 %v4143, %v4204
      %4206 = vmatmul.bf16.gmra.mxu0 %v4118
      %v4207 = vpop.f32.mrf.mxu0
      %v4208 = vadd.f32 %v4143, %v4207
      %v4209 = vpop.f32.mrf.mxu0
      %v4210 = vadd.f32 %v4143, %v4209
      %4211 = vmatmul.bf16.gmra.mxu0 %v4119
      %v4212 = vpop.f32.mrf.mxu0
      %v4213 = vadd.f32 %v4143, %v4212
      %v4214 = vpop.f32.mrf.mxu0
      %v4215 = vadd.f32 %v4143, %v4214
      %4216 = vmatmul.bf16.gmra.mxu0 %v4120
      %v4217 = vpop.f32.mrf.mxu0
      %v4218 = vadd.f32 %v4143, %v4217
      %v4219 = vpop.f32.mrf.mxu0
      %v4220 = vadd.f32 %v4143, %v4219
      %4221 = vmatmul.bf16.gmra.mxu0 %v4121
      %v4222 = vpop.f32.mrf.mxu0
      %v4223 = vadd.f32 %v4143, %v4222
      %v4224 = vpop.f32.mrf.mxu0
      %v4225 = vadd.f32 %v4143, %v4224
      %4226 = vmatmul.bf16.gmra.mxu0 %v4122
      %v4227 = vpop.f32.mrf.mxu0
      %v4228 = vadd.f32 %v4143, %v4227
      %v4229 = vpop.f32.mrf.mxu0
      %v4230 = vadd.f32 %v4143, %v4229
      %4231 = vmatmul.bf16.gmra.mxu0 %v4123
      %v4232 = vpop.f32.mrf.mxu0
      %v4233 = vadd.f32 %v4143, %v4232
      %v4234 = vpop.f32.mrf.mxu0
      %v4235 = vadd.f32 %v4143, %v4234
      %4236 = vmatmul.bf16.gmra.mxu0 %v4124
      %v4237 = vpop.f32.mrf.mxu0
      %v4238 = vadd.f32 %v4143, %v4237
      %v4239 = vpop.f32.mrf.mxu0
      %v4240 = vadd.f32 %v4143, %v4239
      %4241 = vdwg.mxu0
      %v4242 = vmax.f32 %v4203, 0.0
      %v4243 = vmax.f32 %v4205, 0.0
      %v4244 = vmax.f32 %v4208, 0.0
      %v4245 = vmax.f32 %v4210, 0.0
      %v4246 = vmax.f32 %v4213, 0.0
      %v4247 = vmax.f32 %v4215, 0.0
      %v4248 = vmax.f32 %v4218, 0.0
      %v4249 = vmax.f32 %v4220, 0.0
      %v4250 = vmax.f32 %v4223, 0.0
      %v4251 = vmax.f32 %v4225, 0.0
      %v4252 = vmax.f32 %v4228, 0.0
      %v4253 = vmax.f32 %v4230, 0.0
      %v4254 = vmax.f32 %v4233, 0.0
      %v4255 = vmax.f32 %v4235, 0.0
      %v4256 = vmax.f32 %v4238, 0.0
      %v4257 = vmax.f32 %v4240, 0.0
      %v4258 = vpack.c.bf16 %v4243, %v4242
      %v4259 = vpack.c.bf16 %v4245, %v4244
      %v4260 = vpack.c.bf16 %v4247, %v4246
      %v4261 = vpack.c.bf16 %v4249, %v4248
      %v4262 = vpack.c.bf16 %v4251, %v4250
      %v4263 = vpack.c.bf16 %v4253, %v4252
      %v4264 = vpack.c.bf16 %v4255, %v4254
      %v4265 = vpack.c.bf16 %v4257, %v4256
      %v4266 = vld [vmem:[%s12] sm:$0xf]
      %v4267 = vld [vmem:[%s12 + $0x4] sm:$0xf]
      %v4268 = vld [vmem:[%s12 + $0x8] sm:$0xf]
      %v4269 = vld [vmem:[%s12 + $0xc] sm:$0xf]
      %v4270 = vld [vmem:[%s12 + $0x10] sm:$0xf]
      %v4271 = vld [vmem:[%s12 + $0x14] sm:$0xf]
      %v4272 = vld [vmem:[%s12 + $0x18] sm:$0xf]
      %v4273 = vld [vmem:[%s12 + $0x1c] sm:$0xf]
      %v4274 = vld [vmem:[%s13] sm:$0x1]
      %v4276 = vperm.slane %v4274, 0
      %v4286 = vunpack.c.l.b16 %v4266
      %v4287 = vunpack.c.l.b16 %v4267
      %v4288 = vunpack.c.l.b16 %v4268
      %v4289 = vunpack.c.l.b16 %v4269
      %v4290 = vunpack.c.l.b16 %v4270
      %v4291 = vunpack.c.l.b16 %v4271
      %v4292 = vunpack.c.l.b16 %v4272
      %v4293 = vunpack.c.l.b16 %v4273
      %v4294 = vpack.c.b16 %v4287, %v4286
      %v4295 = vpack.c.b16 %v4289, %v4288
      %v4296 = vpack.c.b16 %v4291, %v4290
      %v4297 = vpack.c.b16 %v4293, %v4292
      %vm4302 = vcmask 523264
      %v4304 = vsel %vm4302, %v4258, 0
      %v4307 = vsel %vm4302, %v4259, 0
      %v4310 = vsel %vm4302, %v4260, 0
      %v4313 = vsel %vm4302, %v4261, 0
      %v4316 = vsel %vm4302, %v4262, 0
      %v4319 = vsel %vm4302, %v4263, 0
      %v4322 = vsel %vm4302, %v4264, 0
      %v4325 = vsel %vm4302, %v4265, 0
      %4327 = vmatpush.bf16.msra.mxu0 0
      %4328 = vmatpush.bf16.msra.mxu0 0
      %4329 = vmatpush.bf16.msra.mxu0 0
      %4330 = vmatpush.bf16.msra.mxu0 0
      %4331 = vmatpush.bf16.msra.mxu0 %v4297
      %4332 = vmatpush.bf16.msra.mxu0 %v4296
      %4333 = vmatpush.bf16.msra.mxu0 %v4295
      %4334 = vmatpush.bf16.msra.mxu0 %v4294
      %4335 = vmatmul.bf16.gmra.mxu0 %v4304
      %v4336 = vpop.f32.mrf.mxu0
      %v4337 = vadd.f32 %v4276, %v4336
      %v4338 = vpop.f32.mrf.mxu0
      %v4339 = vadd.f32 %v4276, %v4338
      %4340 = vmatmul.bf16.gmra.mxu0 %v4307
      %v4341 = vpop.f32.mrf.mxu0
      %v4342 = vadd.f32 %v4276, %v4341
      %v4343 = vpop.f32.mrf.mxu0
      %v4344 = vadd.f32 %v4276, %v4343
      %4345 = vmatmul.bf16.gmra.mxu0 %v4310
      %v4346 = vpop.f32.mrf.mxu0
      %v4347 = vadd.f32 %v4276, %v4346
      %v4348 = vpop.f32.mrf.mxu0
      %v4349 = vadd.f32 %v4276, %v4348
      %4350 = vmatmul.bf16.gmra.mxu0 %v4313
      %v4351 = vpop.f32.mrf.mxu0
      %v4352 = vadd.f32 %v4276, %v4351
      %v4353 = vpop.f32.mrf.mxu0
      %v4354 = vadd.f32 %v4276, %v4353
      %4355 = vmatmul.bf16.gmra.mxu0 %v4316
      %v4356 = vpop.f32.mrf.mxu0
      %v4357 = vadd.f32 %v4276, %v4356
      %v4358 = vpop.f32.mrf.mxu0
      %v4359 = vadd.f32 %v4276, %v4358
      %4360 = vmatmul.bf16.gmra.mxu0 %v4319
      %v4361 = vpop.f32.mrf.mxu0
      %v4362 = vadd.f32 %v4276, %v4361
      %v4363 = vpop.f32.mrf.mxu0
      %v4364 = vadd.f32 %v4276, %v4363
      %4365 = vmatmul.bf16.gmra.mxu0 %v4322
      %v4366 = vpop.f32.mrf.mxu0
      %v4367 = vadd.f32 %v4276, %v4366
      %v4368 = vpop.f32.mrf.mxu0
      %v4369 = vadd.f32 %v4276, %v4368
      %4370 = vmatmul.bf16.gmra.mxu0 %v4325
      %v4371 = vpop.f32.mrf.mxu0
      %v4372 = vadd.f32 %v4276, %v4371
      %v4373 = vpop.f32.mrf.mxu0
      %v4374 = vadd.f32 %v4276, %v4373
      %4375 = vdwg.mxu0
      %v4376 = vmul.f32 %v4337, %v4337
      %v4377 = vmul.f32 %v4339, %v4339
      %v4378 = vmul.f32 %v4342, %v4342
      %v4379 = vmul.f32 %v4344, %v4344
      %v4380 = vmul.f32 %v4347, %v4347
      %v4381 = vmul.f32 %v4349, %v4349
      %v4382 = vmul.f32 %v4352, %v4352
      %v4383 = vmul.f32 %v4354, %v4354
      %v4384 = vmul.f32 %v4357, %v4357
      %v4385 = vmul.f32 %v4359, %v4359
      %v4386 = vmul.f32 %v4362, %v4362
      %v4387 = vmul.f32 %v4364, %v4364
      %v4388 = vmul.f32 %v4367, %v4367
      %v4389 = vmul.f32 %v4369, %v4369
      %v4390 = vmul.f32 %v4372, %v4372
      %v4391 = vmul.f32 %v4374, %v4374
      %4392 = vadd.xlane.f32.xlu0 %v4376
      %v4393 = vpop.xlane.xlu0 %4392
      %4394 = vadd.xlane.f32.xlu0 %v4377
      %v4395 = vpop.xlane.xlu0 %4394
      %4396 = vadd.xlane.f32.xlu0 %v4378
      %v4397 = vpop.xlane.xlu0 %4396
      %4398 = vadd.xlane.f32.xlu0 %v4379
      %v4399 = vpop.xlane.xlu0 %4398
      %4400 = vadd.xlane.f32.xlu0 %v4380
      %v4401 = vpop.xlane.xlu0 %4400
      %4402 = vadd.xlane.f32.xlu0 %v4381
      %v4403 = vpop.xlane.xlu0 %4402
      %4404 = vadd.xlane.f32.xlu0 %v4382
      %v4405 = vpop.xlane.xlu0 %4404
      %4406 = vadd.xlane.f32.xlu0 %v4383
      %v4407 = vpop.xlane.xlu0 %4406
      %4408 = vadd.xlane.f32.xlu0 %v4384
      %v4409 = vpop.xlane.xlu0 %4408
      %4410 = vadd.xlane.f32.xlu0 %v4385
      %v4411 = vpop.xlane.xlu0 %4410
      %4412 = vadd.xlane.f32.xlu0 %v4386
      %v4413 = vpop.xlane.xlu0 %4412
      %4414 = vadd.xlane.f32.xlu0 %v4387
      %v4415 = vpop.xlane.xlu0 %4414
      %4416 = vadd.xlane.f32.xlu0 %v4388
      %v4417 = vpop.xlane.xlu0 %4416
      %4418 = vadd.xlane.f32.xlu0 %v4389
      %v4419 = vpop.xlane.xlu0 %4418
      %4420 = vadd.xlane.f32.xlu0 %v4390
      %v4421 = vpop.xlane.xlu0 %4420
      %4422 = vadd.xlane.f32.xlu0 %v4391
      %v4423 = vpop.xlane.xlu0 %4422
      %4424 = vmatpush.xpose.msra.mxu0 %v4374
      %4425 = vmatpush.xpose.msra.mxu0 %v4372
      %4426 = vmatpush.xpose.msra.mxu0 %v4369
      %4427 = vmatpush.xpose.msra.mxu0 %v4367
      %4428 = vmatpush.xpose.msra.mxu0 %v4364
      %4429 = vmatpush.xpose.msra.mxu0 %v4362
      %4430 = vmatpush.xpose.msra.mxu0 %v4359
      %4431 = vmatpush.xpose.msra.mxu0 %v4357
      %4432 = vmatpush.xpose.msra.mxu0 %v4354
      %4433 = vmatpush.xpose.msra.mxu0 %v4352
      %4434 = vmatpush.xpose.msra.mxu0 %v4349
      %4435 = vmatpush.xpose.msra.mxu0 %v4347
      %4436 = vmatpush.xpose.msra.mxu0 %v4344
      %4437 = vmatpush.xpose.msra.mxu0 %v4342
      %4438 = vmatpush.xpose.msra.mxu0 %v4339
      %4439 = vmatpush.xpose.msra.mxu0 %v4337
      %4440 = vmatmul.f32.gmra.mxu0 %v4337
      %v4441 = vpop.f32.mrf.mxu0
      %v4442 = vadd.f32 0.0, %v4441
      %4443 = vmatmul.f32.gmra.mxu0 %v4339
      %v4444 = vpop.f32.mrf.mxu0
      %v4445 = vadd.f32 0.0, %v4444
      %4446 = vmatmul.f32.gmra.mxu0 %v4342
      %v4447 = vpop.f32.mrf.mxu0
      %v4448 = vadd.f32 0.0, %v4447
      %4449 = vmatmul.f32.gmra.mxu0 %v4344
      %v4450 = vpop.f32.mrf.mxu0
      %v4451 = vadd.f32 0.0, %v4450
      %4452 = vmatmul.f32.gmra.mxu0 %v4347
      %v4453 = vpop.f32.mrf.mxu0
      %v4454 = vadd.f32 0.0, %v4453
      %4455 = vmatmul.f32.gmra.mxu0 %v4349
      %v4456 = vpop.f32.mrf.mxu0
      %v4457 = vadd.f32 0.0, %v4456
      %4458 = vmatmul.f32.gmra.mxu0 %v4352
      %v4459 = vpop.f32.mrf.mxu0
      %v4460 = vadd.f32 0.0, %v4459
      %4461 = vmatmul.f32.gmra.mxu0 %v4354
      %v4462 = vpop.f32.mrf.mxu0
      %v4463 = vadd.f32 0.0, %v4462
      %4464 = vmatmul.f32.gmra.mxu0 %v4357
      %v4465 = vpop.f32.mrf.mxu0
      %v4466 = vadd.f32 0.0, %v4465
      %4467 = vmatmul.f32.gmra.mxu0 %v4359
      %v4468 = vpop.f32.mrf.mxu0
      %v4469 = vadd.f32 0.0, %v4468
      %4470 = vmatmul.f32.gmra.mxu0 %v4362
      %v4471 = vpop.f32.mrf.mxu0
      %v4472 = vadd.f32 0.0, %v4471
      %4473 = vmatmul.f32.gmra.mxu0 %v4364
      %v4474 = vpop.f32.mrf.mxu0
      %v4475 = vadd.f32 0.0, %v4474
      %4476 = vmatmul.f32.gmra.mxu0 %v4367
      %v4477 = vpop.f32.mrf.mxu0
      %v4478 = vadd.f32 0.0, %v4477
      %4479 = vmatmul.f32.gmra.mxu0 %v4369
      %v4480 = vpop.f32.mrf.mxu0
      %v4481 = vadd.f32 0.0, %v4480
      %4482 = vmatmul.f32.gmra.mxu0 %v4372
      %v4483 = vpop.f32.mrf.mxu0
      %v4484 = vadd.f32 0.0, %v4483
      %4485 = vmatmul.f32.gmra.mxu0 %v4374
      %v4486 = vpop.f32.mrf.mxu0
      %v4487 = vadd.f32 0.0, %v4486
      %4488 = vdwg.mxu0
      %4489 = vxpose.xlu0.b32.start [1/16] %v4393, 128
      %4490 = vxpose.xlu0.b32.cont [2/16] %v4395, 128
      %4491 = vxpose.xlu0.b32.cont [3/16] %v4397, 128
      %4492 = vxpose.xlu0.b32.cont [4/16] %v4399, 128
      %4493 = vxpose.xlu0.b32.cont [5/16] %v4401, 128
      %4494 = vxpose.xlu0.b32.cont [6/16] %v4403, 128
      %4495 = vxpose.xlu0.b32.cont [7/16] %v4405, 128
      %4496 = vxpose.xlu0.b32.cont [8/16] %v4407, 128
      %4497 = vxpose.xlu0.b32.cont [9/16] %v4409, 128
      %4498 = vxpose.xlu0.b32.cont [10/16] %v4411, 128
      %4499 = vxpose.xlu0.b32.cont [11/16] %v4413, 128
      %4500 = vxpose.xlu0.b32.cont [12/16] %v4415, 128
      %4501 = vxpose.xlu0.b32.cont [13/16] %v4417, 128
      %4502 = vxpose.xlu0.b32.cont [14/16] %v4419, 128
      %4503 = vxpose.xlu0.b32.cont [15/16] %v4421, 128
      %4504 = vxpose.xlu0.b32.end [16/16] %v4423, 128
      %v4505 = vpop.trf.xlu0
      %v4506 = vpop.trf.xlu0
      %v4507 = vpop.trf.xlu0
      %v4508 = vpop.trf.xlu0
      %v4509 = vpop.trf.xlu0
      %v4510 = vpop.trf.xlu0
      %v4511 = vpop.trf.xlu0
      %v4512 = vpop.trf.xlu0
      %v4513 = vpop.trf.xlu0
      %v4514 = vpop.trf.xlu0
      %v4515 = vpop.trf.xlu0
      %v4516 = vpop.trf.xlu0
      %v4517 = vpop.trf.xlu0
      %v4518 = vpop.trf.xlu0
      %v4519 = vpop.trf.xlu0
      %v4520 = vpop.trf.xlu0
      %v4521 = vperm.slane %v4505, 0
      %v4522 = vadd.f32 %v4393, %v4521
      %v4523 = vadd.f32 %v4395, %v4521
      %v4524 = vadd.f32 %v4397, %v4521
      %v4525 = vadd.f32 %v4399, %v4521
      %v4526 = vadd.f32 %v4401, %v4521
      %v4527 = vadd.f32 %v4403, %v4521
      %v4528 = vadd.f32 %v4405, %v4521
      %v4529 = vadd.f32 %v4407, %v4521
      %v4530 = vadd.f32 %v4409, %v4521
      %v4531 = vadd.f32 %v4411, %v4521
      %v4532 = vadd.f32 %v4413, %v4521
      %v4533 = vadd.f32 %v4415, %v4521
      %v4534 = vadd.f32 %v4417, %v4521
      %v4535 = vadd.f32 %v4419, %v4521
      %v4536 = vadd.f32 %v4421, %v4521
      %v4537 = vadd.f32 %v4423, %v4521
      %v4538 = vmul.f32 %v4442, 2.0
      %v4539 = vmul.f32 %v4445, 2.0
      %v4540 = vmul.f32 %v4448, 2.0
      %v4541 = vmul.f32 %v4451, 2.0
      %v4542 = vmul.f32 %v4454, 2.0
      %v4543 = vmul.f32 %v4457, 2.0
      %v4544 = vmul.f32 %v4460, 2.0
      %v4545 = vmul.f32 %v4463, 2.0
      %v4546 = vmul.f32 %v4466, 2.0
      %v4547 = vmul.f32 %v4469, 2.0
      %v4548 = vmul.f32 %v4472, 2.0
      %v4549 = vmul.f32 %v4475, 2.0
      %v4550 = vmul.f32 %v4478, 2.0
      %v4551 = vmul.f32 %v4481, 2.0
      %v4552 = vmul.f32 %v4484, 2.0
      %v4553 = vmul.f32 %v4487, 2.0
      %v4554 = vsub.f32 %v4522, %v4538
      %v4555 = vsub.f32 %v4523, %v4539
      %v4556 = vsub.f32 %v4524, %v4540
      %v4557 = vsub.f32 %v4525, %v4541
      %v4558 = vsub.f32 %v4526, %v4542
      %v4559 = vsub.f32 %v4527, %v4543
      %v4560 = vsub.f32 %v4528, %v4544
      %v4561 = vsub.f32 %v4529, %v4545
      %v4562 = vsub.f32 %v4530, %v4546
      %v4563 = vsub.f32 %v4531, %v4547
      %v4564 = vsub.f32 %v4532, %v4548
      %v4565 = vsub.f32 %v4533, %v4549
      %v4566 = vsub.f32 %v4534, %v4550
      %v4567 = vsub.f32 %v4535, %v4551
      %v4568 = vsub.f32 %v4536, %v4552
      %v4569 = vsub.f32 %v4537, %v4553
      %v4570 = vmax.f32 %v4554, 0.0
      %v4571 = vmax.f32 %v4555, 0.0
      %v4572 = vmax.f32 %v4556, 0.0
      %v4573 = vmax.f32 %v4557, 0.0
      %v4574 = vmax.f32 %v4558, 0.0
      %v4575 = vmax.f32 %v4559, 0.0
      %v4576 = vmax.f32 %v4560, 0.0
      %v4577 = vmax.f32 %v4561, 0.0
      %v4578 = vmax.f32 %v4562, 0.0
      %v4579 = vmax.f32 %v4563, 0.0
      %v4580 = vmax.f32 %v4564, 0.0
      %v4581 = vmax.f32 %v4565, 0.0
      %v4582 = vmax.f32 %v4566, 0.0
      %v4583 = vmax.f32 %v4567, 0.0
      %v4584 = vmax.f32 %v4568, 0.0
      %v4585 = vmax.f32 %v4569, 0.0
      %v4586 = vrsqrt.pop %v4570
      %v4587 = vmul.f32 %v4586, %v4570
      %v4588 = vmul.f32 %v4587, %v4586
      %v4589 = vmul.f32 0.5, %v4588
      %v4590 = vsub.f32 1.5, %v4589
      %v4591 = vmul.f32 %v4586, %v4590
      %v4592 = vmul.f32 %v4570, %v4591
      %vm4593 = vcmp.eq.f32.partialorder %v4570, inf
      %v4594 = vsel %vm4593, %v4570, %v4592
      %vm4595 = vcmp.eq.f32.partialorder %v4570, 0.0
      %v4596 = vand.u32 %v4570, 2147483648
      %v4597 = vsel %vm4595, %v4596, %v4594
      %v4598 = vrsqrt.pop %v4571
      %v4599 = vmul.f32 %v4598, %v4571
      %v4600 = vmul.f32 %v4599, %v4598
      %v4601 = vmul.f32 0.5, %v4600
      %v4602 = vsub.f32 1.5, %v4601
      %v4603 = vmul.f32 %v4598, %v4602
      %v4604 = vmul.f32 %v4571, %v4603
      %vm4605 = vcmp.eq.f32.partialorder %v4571, inf
      %v4606 = vsel %vm4605, %v4571, %v4604
      %vm4607 = vcmp.eq.f32.partialorder %v4571, 0.0
      %v4608 = vand.u32 %v4571, 2147483648
      %v4609 = vsel %vm4607, %v4608, %v4606
      %v4610 = vrsqrt.pop %v4572
      %v4611 = vmul.f32 %v4610, %v4572
      %v4612 = vmul.f32 %v4611, %v4610
      %v4613 = vmul.f32 0.5, %v4612
      %v4614 = vsub.f32 1.5, %v4613
      %v4615 = vmul.f32 %v4610, %v4614
      %v4616 = vmul.f32 %v4572, %v4615
      %vm4617 = vcmp.eq.f32.partialorder %v4572, inf
      %v4618 = vsel %vm4617, %v4572, %v4616
      %vm4619 = vcmp.eq.f32.partialorder %v4572, 0.0
      %v4620 = vand.u32 %v4572, 2147483648
      %v4621 = vsel %vm4619, %v4620, %v4618
      %v4622 = vrsqrt.pop %v4573
      %v4623 = vmul.f32 %v4622, %v4573
      %v4624 = vmul.f32 %v4623, %v4622
      %v4625 = vmul.f32 0.5, %v4624
      %v4626 = vsub.f32 1.5, %v4625
      %v4627 = vmul.f32 %v4622, %v4626
      %v4628 = vmul.f32 %v4573, %v4627
      %vm4629 = vcmp.eq.f32.partialorder %v4573, inf
      %v4630 = vsel %vm4629, %v4573, %v4628
      %vm4631 = vcmp.eq.f32.partialorder %v4573, 0.0
      %v4632 = vand.u32 %v4573, 2147483648
      %v4633 = vsel %vm4631, %v4632, %v4630
      %v4634 = vrsqrt.pop %v4574
      %v4635 = vmul.f32 %v4634, %v4574
      %v4636 = vmul.f32 %v4635, %v4634
      %v4637 = vmul.f32 0.5, %v4636
      %v4638 = vsub.f32 1.5, %v4637
      %v4639 = vmul.f32 %v4634, %v4638
      %v4640 = vmul.f32 %v4574, %v4639
      %vm4641 = vcmp.eq.f32.partialorder %v4574, inf
      %v4642 = vsel %vm4641, %v4574, %v4640
      %vm4643 = vcmp.eq.f32.partialorder %v4574, 0.0
      %v4644 = vand.u32 %v4574, 2147483648
      %v4645 = vsel %vm4643, %v4644, %v4642
      %v4646 = vrsqrt.pop %v4575
      %v4647 = vmul.f32 %v4646, %v4575
      %v4648 = vmul.f32 %v4647, %v4646
      %v4649 = vmul.f32 0.5, %v4648
      %v4650 = vsub.f32 1.5, %v4649
      %v4651 = vmul.f32 %v4646, %v4650
      %v4652 = vmul.f32 %v4575, %v4651
      %vm4653 = vcmp.eq.f32.partialorder %v4575, inf
      %v4654 = vsel %vm4653, %v4575, %v4652
      %vm4655 = vcmp.eq.f32.partialorder %v4575, 0.0
      %v4656 = vand.u32 %v4575, 2147483648
      %v4657 = vsel %vm4655, %v4656, %v4654
      %v4658 = vrsqrt.pop %v4576
      %v4659 = vmul.f32 %v4658, %v4576
      %v4660 = vmul.f32 %v4659, %v4658
      %v4661 = vmul.f32 0.5, %v4660
      %v4662 = vsub.f32 1.5, %v4661
      %v4663 = vmul.f32 %v4658, %v4662
      %v4664 = vmul.f32 %v4576, %v4663
      %vm4665 = vcmp.eq.f32.partialorder %v4576, inf
      %v4666 = vsel %vm4665, %v4576, %v4664
      %vm4667 = vcmp.eq.f32.partialorder %v4576, 0.0
      %v4668 = vand.u32 %v4576, 2147483648
      %v4669 = vsel %vm4667, %v4668, %v4666
      %v4670 = vrsqrt.pop %v4577
      %v4671 = vmul.f32 %v4670, %v4577
      %v4672 = vmul.f32 %v4671, %v4670
      %v4673 = vmul.f32 0.5, %v4672
      %v4674 = vsub.f32 1.5, %v4673
      %v4675 = vmul.f32 %v4670, %v4674
      %v4676 = vmul.f32 %v4577, %v4675
      %vm4677 = vcmp.eq.f32.partialorder %v4577, inf
      %v4678 = vsel %vm4677, %v4577, %v4676
      %vm4679 = vcmp.eq.f32.partialorder %v4577, 0.0
      %v4680 = vand.u32 %v4577, 2147483648
      %v4681 = vsel %vm4679, %v4680, %v4678
      %v4682 = vrsqrt.pop %v4578
      %v4683 = vmul.f32 %v4682, %v4578
      %v4684 = vmul.f32 %v4683, %v4682
      %v4685 = vmul.f32 0.5, %v4684
      %v4686 = vsub.f32 1.5, %v4685
      %v4687 = vmul.f32 %v4682, %v4686
      %v4688 = vmul.f32 %v4578, %v4687
      %vm4689 = vcmp.eq.f32.partialorder %v4578, inf
      %v4690 = vsel %vm4689, %v4578, %v4688
      %vm4691 = vcmp.eq.f32.partialorder %v4578, 0.0
      %v4692 = vand.u32 %v4578, 2147483648
      %v4693 = vsel %vm4691, %v4692, %v4690
      %v4694 = vrsqrt.pop %v4579
      %v4695 = vmul.f32 %v4694, %v4579
      %v4696 = vmul.f32 %v4695, %v4694
      %v4697 = vmul.f32 0.5, %v4696
      %v4698 = vsub.f32 1.5, %v4697
      %v4699 = vmul.f32 %v4694, %v4698
      %v4700 = vmul.f32 %v4579, %v4699
      %vm4701 = vcmp.eq.f32.partialorder %v4579, inf
      %v4702 = vsel %vm4701, %v4579, %v4700
      %vm4703 = vcmp.eq.f32.partialorder %v4579, 0.0
      %v4704 = vand.u32 %v4579, 2147483648
      %v4705 = vsel %vm4703, %v4704, %v4702
      %v4706 = vrsqrt.pop %v4580
      %v4707 = vmul.f32 %v4706, %v4580
      %v4708 = vmul.f32 %v4707, %v4706
      %v4709 = vmul.f32 0.5, %v4708
      %v4710 = vsub.f32 1.5, %v4709
      %v4711 = vmul.f32 %v4706, %v4710
      %v4712 = vmul.f32 %v4580, %v4711
      %vm4713 = vcmp.eq.f32.partialorder %v4580, inf
      %v4714 = vsel %vm4713, %v4580, %v4712
      %vm4715 = vcmp.eq.f32.partialorder %v4580, 0.0
      %v4716 = vand.u32 %v4580, 2147483648
      %v4717 = vsel %vm4715, %v4716, %v4714
      %v4718 = vrsqrt.pop %v4581
      %v4719 = vmul.f32 %v4718, %v4581
      %v4720 = vmul.f32 %v4719, %v4718
      %v4721 = vmul.f32 0.5, %v4720
      %v4722 = vsub.f32 1.5, %v4721
      %v4723 = vmul.f32 %v4718, %v4722
      %v4724 = vmul.f32 %v4581, %v4723
      %vm4725 = vcmp.eq.f32.partialorder %v4581, inf
      %v4726 = vsel %vm4725, %v4581, %v4724
      %vm4727 = vcmp.eq.f32.partialorder %v4581, 0.0
      %v4728 = vand.u32 %v4581, 2147483648
      %v4729 = vsel %vm4727, %v4728, %v4726
      %v4730 = vrsqrt.pop %v4582
      %v4731 = vmul.f32 %v4730, %v4582
      %v4732 = vmul.f32 %v4731, %v4730
      %v4733 = vmul.f32 0.5, %v4732
      %v4734 = vsub.f32 1.5, %v4733
      %v4735 = vmul.f32 %v4730, %v4734
      %v4736 = vmul.f32 %v4582, %v4735
      %vm4737 = vcmp.eq.f32.partialorder %v4582, inf
      %v4738 = vsel %vm4737, %v4582, %v4736
      %vm4739 = vcmp.eq.f32.partialorder %v4582, 0.0
      %v4740 = vand.u32 %v4582, 2147483648
      %v4741 = vsel %vm4739, %v4740, %v4738
      %v4742 = vrsqrt.pop %v4583
      %v4743 = vmul.f32 %v4742, %v4583
      %v4744 = vmul.f32 %v4743, %v4742
      %v4745 = vmul.f32 0.5, %v4744
      %v4746 = vsub.f32 1.5, %v4745
      %v4747 = vmul.f32 %v4742, %v4746
      %v4748 = vmul.f32 %v4583, %v4747
      %vm4749 = vcmp.eq.f32.partialorder %v4583, inf
      %v4750 = vsel %vm4749, %v4583, %v4748
      %vm4751 = vcmp.eq.f32.partialorder %v4583, 0.0
      %v4752 = vand.u32 %v4583, 2147483648
      %v4753 = vsel %vm4751, %v4752, %v4750
      %v4754 = vrsqrt.pop %v4584
      %v4755 = vmul.f32 %v4754, %v4584
      %v4756 = vmul.f32 %v4755, %v4754
      %v4757 = vmul.f32 0.5, %v4756
      %v4758 = vsub.f32 1.5, %v4757
      %v4759 = vmul.f32 %v4754, %v4758
      %v4760 = vmul.f32 %v4584, %v4759
      %vm4761 = vcmp.eq.f32.partialorder %v4584, inf
      %v4762 = vsel %vm4761, %v4584, %v4760
      %vm4763 = vcmp.eq.f32.partialorder %v4584, 0.0
      %v4764 = vand.u32 %v4584, 2147483648
      %v4765 = vsel %vm4763, %v4764, %v4762
      %v4766 = vrsqrt.pop %v4585
      %v4767 = vmul.f32 %v4766, %v4585
      %v4768 = vmul.f32 %v4767, %v4766
      %v4769 = vmul.f32 0.5, %v4768
      %v4770 = vsub.f32 1.5, %v4769
      %v4771 = vmul.f32 %v4766, %v4770
      %v4772 = vmul.f32 %v4585, %v4771
      %vm4773 = vcmp.eq.f32.partialorder %v4585, inf
      %v4774 = vsel %vm4773, %v4585, %v4772
      %vm4775 = vcmp.eq.f32.partialorder %v4585, 0.0
      %v4776 = vand.u32 %v4585, 2147483648
      %v4777 = vsel %vm4775, %v4776, %v4774
      %4778 = vst [vmem:[%s494] sm:$0xff] %v4597
      %4779 = vst [vmem:[%s494 + $0x8] sm:$0xff] %v4609
      %4780 = vst [vmem:[%s494 + $0x10] sm:$0xff] %v4621
      %4781 = vst [vmem:[%s494 + $0x18] sm:$0xff] %v4633
      %4782 = vst [vmem:[%s494 + $0x20] sm:$0xff] %v4645
      %4783 = vst [vmem:[%s494 + $0x28] sm:$0xff] %v4657
      %4784 = vst [vmem:[%s494 + $0x30] sm:$0xff] %v4669
      %4785 = vst [vmem:[%s494 + $0x38] sm:$0xff] %v4681
      %4786 = vst [vmem:[%s494 + $0x40] sm:$0xff] %v4693
      %4787 = vst [vmem:[%s494 + $0x48] sm:$0xff] %v4705
      %4788 = vst [vmem:[%s494 + $0x50] sm:$0xff] %v4717
      %4789 = vst [vmem:[%s494 + $0x58] sm:$0xff] %v4729
      %4790 = vst [vmem:[%s494 + $0x60] sm:$0xff] %v4741
      %4791 = vst [vmem:[%s494 + $0x68] sm:$0xff] %v4753
      %4792 = vst [vmem:[%s494 + $0x70] sm:$0xff] %v4765
      %4793 = vst [vmem:[%s494 + $0x78] sm:$0xff] %v4777
      %s4794 = smul.u32 16, %s25
      %p4795 = scmp.lt.s32.totalorder %s4794, 31
      %s4796 = scalar_select %p4795, %s4794, 31
      %s4797 = smul.addr %s4796, 8
      %s4798 = scalar_lea.vmem %s14, %s4797
      // Predicated region
      $region77: #{forward_batched.1} parent=75 // pred_check
        %p4799 = pneg %p347
      $region78: #{forward_batched.1} parent=75 // pred_check_branch
        %4801 = sbr.rel (%p4799) target = $region80
      $region79: #{forward_batched.1} parent=75 // pred_region
        %s4802 = smul.u32 16, %s25
      $region80: #{forward_batched.1} parent=75 // pred_fallthru
        _
    $region76: #{forward_batched.1} parent=5 // pred_fallthru
      _
    %p4803 = scmp.le.s32.totalorder 2, %s20
    // Predicated region
    $region81: #{forward_batched.1} parent=5 // pred_check
      %p4804 = pneg %p4803
    $region82: #{forward_batched.1} parent=5 // pred_check_branch
      %4806 = sbr.rel (%p4804) target = $region84
    $region83: #{forward_batched.1} parent=5 // pred_region
      %s4807 = ssub.s32 %s20, 2
      // Predicated region
      $region85: #{forward_batched.1} parent=83 // pred_check
        %p4808 = pneg %p353
      $region86: #{forward_batched.1} parent=83 // pred_check_branch
        %4810 = sbr.rel (%p4808) target = $region88
      $region87: #{forward_batched.1} parent=83 // pred_region
        %s4811 = smul.u32 16, %s26
        %p4812 = scmp.lt.s32.totalorder %s4811, 31
        %s4813 = scalar_select %p4812, %s4811, 31
        %s4814 = smul.addr %s4813, 8
        %s4815 = scalar_lea.vmem %s14, %s4814
      $region88: #{forward_batched.1} parent=83 // pred_fallthru
        _
    $region84: #{forward_batched.1} parent=5 // pred_fallthru
      _
  $region6: #{forward_batched.1} parent=0 // loop_footer
    %s24 = sadd.s32 1, %s20
  $region7: #{forward_batched.1} parent=0 // loop_footer_branch
    %19 = sbr.rel target = $region3
  $region8: #{forward_batched.1} parent=0 // loop_exit
    _

</llo_original>
